<compile_context>
chip_gen: v7x
topology: tpu7x:2x2x1
jax: 0.10.0
libtpu: 0.0.40
codegen_flags: <defaults>
</compile_context>

<pallas_src>
import functools

import jax
import jax.numpy as jnp
from jax.experimental import pallas as pl
from jax.experimental.pallas import tpu as pltpu

LN_EPS = 1e-5          # torch.nn.LayerNorm default
OUT_PAD = 64           # per-branch lane padding of the logits (2*OUT_PAD = 128 lanes)
_INV_SQRT2 = 0.70710678118654752440


def _cdiv(a, b):
    return -(-a // b)


def _round_up(a, m):
    return _cdiv(a, m) * m


def _gelu_exact(x):
    # matches torch.nn.GELU() default (erf-based, approximate='none').
    # NOTE(v5e): if bit-parity is not required, jax.nn.gelu(x, approximate=True)
    # moves the transcendental onto the EUP tanh slot.
    return 0.5 * x * (1.0 + jax.lax.erf(x * jnp.float32(_INV_SQRT2)))


def _ln_gelu(x, gamma, beta):
    # LayerNorm (over last axis) -> Dropout(eval=identity) -> GELU, all in f32
    mu = jnp.mean(x, axis=-1, keepdims=True)
    var = jnp.mean(jnp.square(x - mu), axis=-1, keepdims=True)
    xn = (x - mu) * jax.lax.rsqrt(var + jnp.float32(LN_EPS))
    return _gelu_exact(xn * gamma + beta)


# --------------------------------------------------------------------------- #
# Kernel
# --------------------------------------------------------------------------- #
def esg_head_kernel(seq_ref, mask_ref, watt_ref, batt_ref,
                    W0_ref, b0_ref, g0_ref, beta0_ref,
                    Wp1_ref, bp1_ref, gp1_ref, betap1_ref,
                    We1_ref, be1_ref, ge1_ref, betae1_ref,
                    Wout_ref, bout_ref,
                    out_ref):
    seq = seq_ref[...]                                   # [Bt, S, H]  bf16
    mask = mask_ref[...]                                 # [Bt, S]     f32 (1 keep, 0 pad)
    Bt, S, H = seq.shape
    cdt = seq.dtype                                      # matmul-operand dtype (bf16)

    # ---- 4-head attention pooling -----------------------------------------
    # Scores: consume seq in its native [*, H] layout ([Bt*S,H] @ [H,4] MXU
    # matmul, no relayout of the big tile), then swap only the tiny [Bt,S,4]
    # result into the lane-dense [Bt,4,S] softmax layout.
    scores = jnp.dot(seq.reshape(Bt * S, H), watt_ref[...],
                     preferred_element_type=jnp.float32)            # [Bt*S, 4]
    scores = jnp.swapaxes(scores.reshape(Bt, S, 4), 1, 2)           # [Bt, 4, S]
    scores = scores + batt_ref[...][None, :, :]                     # per-head bias [4,1]
    # finite large-negative instead of -inf: fully-masked (padded) rows stay NaN-free
    scores = jnp.where(mask[:, None, :] == 0.0, jnp.float32(-1e30), scores)
    m = jnp.max(scores, axis=-1, keepdims=True)                     # [Bt, 4, 1]
    e = jnp.exp(scores - m)
    l = jnp.sum(e, axis=-1, keepdims=True)                          # [Bt, 4, 1]
    inv_l = pl.reciprocal(l, approx=True)                           # EUP, not a VPU divide
    # mean over heads of per-head softmax probs; the 1/4 folds into the same scale
    probs_mean = 0.25 * jnp.sum(e * inv_l, axis=1)                  # [Bt, S] f32
    # weighted sum over seq as a batched (1,S)x(S,H) MXU matmul (no [Bt,S,H] temp);
    # probs cast to bf16 for the MXU (inference tolerance vs the fp32 torch ref)
    pooled = jnp.einsum('bqs,bsh->bqh',
                        probs_mean[:, None, :].astype(cdt), seq,
                        preferred_element_type=jnp.float32).reshape(Bt, H)

    # ---- residual block 0: promise & evidence fused along N (one [H,2H] matmul) ----
    x0 = jnp.dot(pooled.astype(cdt), W0_ref[...],
                 preferred_element_type=jnp.float32) + b0_ref[...]  # [Bt, 2H]
    g0 = g0_ref[...]
    beta0 = beta0_ref[...]
    ph = _ln_gelu(x0[:, :H], g0[:, :H], beta0[:, :H]) + pooled
    eh = _ln_gelu(x0[:, H:], g0[:, H:], beta0[:, H:]) + pooled

    # ---- residual block 1 (different inputs -> separate [H,H] matmuls) ----
    xp = jnp.dot(ph.astype(cdt), Wp1_ref[...],
                 preferred_element_type=jnp.float32) + bp1_ref[...]
    ph = _ln_gelu(xp, gp1_ref[...], betap1_ref[...]) + ph
    xe = jnp.dot(eh.astype(cdt), We1_ref[...],
                 preferred_element_type=jnp.float32) + be1_ref[...]
    eh = _ln_gelu(xe, ge1_ref[...], betae1_ref[...]) + eh

    # ---- fused output projection: one [Bt,2H]@[2H,128] matmul, lane-dense slab ----
    he = jnp.concatenate([ph, eh], axis=-1).astype(cdt)             # [Bt, 2H]
    out_ref[...] = (jnp.dot(he, Wout_ref[...], preferred_element_type=jnp.float32)
                    + bout_ref[...])


_WEIGHT_NAMES = ("watt", "batt", "W0", "b0", "g0", "beta0",
                 "Wp1", "bp1", "gp1", "betap1",
                 "We1", "be1", "ge1", "betae1",
                 "Wout", "bout")


# --------------------------------------------------------------------------- #
# Parameters
# --------------------------------------------------------------------------- #
def make_params(key, hidden, num_labels, vocab):
    """Deterministic init mirroring ESGModel._init_weights:
    Linear/Embedding weights ~ N(0, 0.02), Linear biases = 0, LayerNorm = (1, 0)."""
    std = 0.02
    ks = jax.random.split(key, 6)

    def w(k, shape):
        return (std * jax.random.normal(k, shape)).astype(jnp.float32)

    return dict(
        embed=w(ks[0], (vocab, hidden)),            # stand-in for base_model outputs
        watt=w(ks[1], (hidden, 4)),                 # 4 attention heads, Linear(H, 1) each
        batt=jnp.zeros((1, 4), jnp.float32),
        Wp=w(ks[2], (2, hidden, hidden)),
        bp=jnp.zeros((2, hidden), jnp.float32),
        gp=jnp.ones((2, hidden), jnp.float32),
        betap=jnp.zeros((2, hidden), jnp.float32),
        Wpo=w(ks[3], (hidden, num_labels)),
        bpo=jnp.zeros((1, num_labels), jnp.float32),
        We=w(ks[4], (2, hidden, hidden)),
        be=jnp.zeros((2, hidden), jnp.float32),
        ge=jnp.ones((2, hidden), jnp.float32),
        betae=jnp.zeros((2, hidden), jnp.float32),
        Weo=w(ks[5], (hidden, num_labels)),
        beo=jnp.zeros((1, num_labels), jnp.float32),
    )


def prepare_inference_params(params):
    """One-time weight preprocessing: bf16 matmul operands, branch fusion, single
    lane-dense padded output projection [2H, 128] = [promise | evidence]."""
    bf = jnp.bfloat16
    H = params["watt"].shape[0]
    nl = params["Wpo"].shape[1]
    assert nl <= OUT_PAD
    Wout = jnp.zeros((2 * H, 2 * OUT_PAD), jnp.float32)
    Wout = Wout.at[:H, :nl].set(params["Wpo"])
    Wout = Wout.at[H:, OUT_PAD:OUT_PAD + nl].set(params["Weo"])
    bout = (jnp.zeros((1, 2 * OUT_PAD), jnp.float32)
            .at[:, :nl].set(params["bpo"])
            .at[:, OUT_PAD:OUT_PAD + nl].set(params["beo"]))
    return dict(
        embed=params["embed"].astype(bf),                       # gather output already bf16
        watt=params["watt"].astype(bf),                         # [H, 4]
        batt=params["batt"].reshape(4, 1).astype(jnp.float32),
        W0=jnp.concatenate([params["Wp"][0], params["We"][0]], axis=1).astype(bf),   # [H, 2H]
        b0=jnp.concatenate([params["bp"][0], params["be"][0]])[None, :],
        g0=jnp.concatenate([params["gp"][0], params["ge"][0]])[None, :],
        beta0=jnp.concatenate([params["betap"][0], params["betae"][0]])[None, :],
        Wp1=params["Wp"][1].astype(bf), bp1=params["bp"][1][None, :],
        gp1=params["gp"][1][None, :], betap1=params["betap"][1][None, :],
        We1=params["We"][1].astype(bf), be1=params["be"][1][None, :],
        ge1=params["ge"][1][None, :], betae1=params["betae"][1][None, :],
        Wout=Wout.astype(bf), bout=bout,
    )


# --------------------------------------------------------------------------- #
# Tiling derivation (VMEM-aware)
# --------------------------------------------------------------------------- #
def _tpu_vmem_capacity_bytes():
    try:
        info = pltpu.get_tpu_info()
        cap = getattr(info, "vmem_capacity_bytes", None)
        if cap:
            return int(cap)
    except Exception:
        pass
    return 64 * 1024 * 1024     # conservative default (v7x per-TensorCore VMEM)


def _derive_tiling(B, S, H, weight_bytes):
    """Pick (batch_tile, vmem_limit_bytes) from the device's VMEM capacity.
    At roberta-large shapes (S=512, H=1024): ~16 rows on v7x (64 MiB/TC),
    ~32-48 rows on v5e/v6e (128 MiB)."""
    vmem_cap = _tpu_vmem_capacity_bytes()
    vmem_limit = max(32 << 20, min(vmem_cap - (12 << 20), int(0.85 * vmem_cap)))
    # per batch-row VMEM: double-buffered bf16 seq row + f32 mask row + f32 out row
    # + in-kernel f32 temporaries (scores/probs [4,S], hidden vectors [~2H]).
    per_row = 2 * (S * H * 2 + S * 4) + 2 * 128 * 4 + 3 * 4 * S * 4 + 16 * H * 4
    budget = vmem_limit - weight_bytes - (4 << 20)       # headroom for scratch
    bt_max = max(8, min(256, budget // max(per_row, 1)))
    bt_max = (bt_max // 8) * 8

    b_pad = _round_up(B, 8)
    bt = min(bt_max, b_pad)
    n_steps = _cdiv(b_pad, bt)
    if n_steps == 1 and b_pad >= 32:
        n_steps = 2        # keep >=2 grid steps so ("parallel",) can use both TensorCores
    bt = _round_up(_cdiv(b_pad, n_steps), 8)
    return int(bt), int(vmem_limit)


# --------------------------------------------------------------------------- #
# Forward
# --------------------------------------------------------------------------- #
@functools.partial(
    jax.jit,
    static_argnames=("num_labels", "batch_tile", "vmem_limit", "single_buffer_weights"))
def _esg_forward_impl(input_ids, attention_mask, prep, *, num_labels, batch_tile,
                      vmem_limit, single_buffer_weights):
    # TODO(synk): the pretrained roberta-large AutoModel has no in-script Pallas
    # equivalent; its last_hidden_state is emulated by a bf16 embedding lookup.
    seq = prep["embed"][input_ids]                  # [B, S, H] bf16
    mask = attention_mask.astype(jnp.float32)       # [B, S]
    B, S, H = seq.shape

    Bt = batch_tile
    Bp = _cdiv(B, Bt) * Bt
    if Bp != B:                                     # padded rows have mask == 0
        seq = jnp.pad(seq, ((0, Bp - B), (0, 0), (0, 0)))
        mask = jnp.pad(mask, ((0, Bp - B), (0, 0)))

    def _seq_map(i):
        return (i, 0, 0)

    def _row_map(i):
        return (i, 0)

    def _weight_spec(shape):
        idx = lambda i: (0,) * len(shape)
        if single_buffer_weights and hasattr(pl, "Buffered"):
            try:
                # constant block index every grid step -> one VMEM buffer is enough
                return pl.BlockSpec(shape, idx, pipeline_mode=pl.Buffered(1))
            except TypeError:
                pass
        return pl.BlockSpec(shape, idx)

    in_specs = [
        pl.BlockSpec((Bt, S, H), _seq_map),         # activations: pipelined over batch
        pl.BlockSpec((Bt, S), _row_map),
    ] + [_weight_spec(tuple(prep[name].shape)) for name in _WEIGHT_NAMES]

    out = pl.pallas_call(
        esg_head_kernel,
        grid=(Bp // Bt,),
        in_specs=in_specs,
        out_specs=pl.BlockSpec((Bt, 2 * OUT_PAD), _row_map),
        out_shape=jax.ShapeDtypeStruct((Bp, 2 * OUT_PAD), jnp.float32),
        compiler_params=pltpu.CompilerParams(
            dimension_semantics=("parallel",),       # megacore batch sharding
            vmem_limit_bytes=int(vmem_limit),
        ),
    )(seq, mask, *[prep[name] for name in _WEIGHT_NAMES])

    promise_logits = out[:B, :num_labels]
    evidence_logits = out[:B, OUT_PAD:OUT_PAD + num_labels]
    return promise_logits, evidence_logits


def esg_forward(input_ids, attention_mask, prep, *, num_labels,
                batch_tile=None, vmem_limit=None):
    B, S = input_ids.shape
    H = prep["watt"].shape[0]
    if batch_tile is None or vmem_limit is None:
        weight_bytes = sum(int(prep[n].size) * prep[n].dtype.itemsize
                           for n in _WEIGHT_NAMES)
        bt, vl = _derive_tiling(B, S, H, weight_bytes)
        batch_tile = int(batch_tile or bt)
        vmem_limit = int(vmem_limit or vl)
    try:
        return _esg_forward_impl(
            input_ids, attention_mask, prep, num_labels=num_labels,
            batch_tile=batch_tile, vmem_limit=vmem_limit, single_buffer_weights=True)
    except Exception:
        # pipeline_mode=pl.Buffered(1) unsupported on this jax build -> default buffering
        return _esg_forward_impl(
            input_ids, attention_mask, prep, num_labels=num_labels,
            batch_tile=batch_tile, vmem_limit=vmem_limit, single_buffer_weights=False)


if __name__ == "__main__":
    B, S, H = 2, 8, 32          # small shapes consistent with the module's forward
    VOCAB = 100
    NUM_LABELS = 2              # num_labels_promise == num_labels_evidence == 2

    key = jax.random.PRNGKey(0)
    k_param, k_ids = jax.random.split(key)
    params = make_params(k_param, H, NUM_LABELS, VOCAB)
    prep = prepare_inference_params(params)

    input_ids = jax.random.randint(k_ids, (B, S), 0, VOCAB, dtype=jnp.int32)
    attention_mask = jnp.array([[1, 1, 1, 1, 1, 1, 1, 1],
                                [1, 1, 1, 1, 1, 0, 0, 0]], dtype=jnp.float32)

    promise_logits, evidence_logits = esg_forward(
        input_ids, attention_mask, prep, num_labels=NUM_LABELS)
    jax.block_until_ready((promise_logits, evidence_logits))

    assert promise_logits.shape == (B, NUM_LABELS)
    assert evidence_logits.shape == (B, NUM_LABELS)
    assert bool(jnp.all(jnp.isfinite(promise_logits)))
    assert bool(jnp.all(jnp.isfinite(evidence_logits)))
    print("KERNEL_OK")
</pallas_src>

<mosaic_0001>
module attributes {stable_mosaic.version = 11 : i64} {
  func.func @esg_head_kernel(%arg0: i32, %arg1: memref<8x8x32xbf16, #tpu.memory_space<vmem>>, %arg2: memref<8x8xf32, #tpu.memory_space<vmem>>, %arg3: memref<32x4xbf16, #tpu.memory_space<vmem>>, %arg4: memref<4x1xf32, #tpu.memory_space<vmem>>, %arg5: memref<32x64xbf16, #tpu.memory_space<vmem>>, %arg6: memref<1x64xf32, #tpu.memory_space<vmem>>, %arg7: memref<1x64xf32, #tpu.memory_space<vmem>>, %arg8: memref<1x64xf32, #tpu.memory_space<vmem>>, %arg9: memref<32x32xbf16, #tpu.memory_space<vmem>>, %arg10: memref<1x32xf32, #tpu.memory_space<vmem>>, %arg11: memref<1x32xf32, #tpu.memory_space<vmem>>, %arg12: memref<1x32xf32, #tpu.memory_space<vmem>>, %arg13: memref<32x32xbf16, #tpu.memory_space<vmem>>, %arg14: memref<1x32xf32, #tpu.memory_space<vmem>>, %arg15: memref<1x32xf32, #tpu.memory_space<vmem>>, %arg16: memref<1x32xf32, #tpu.memory_space<vmem>>, %arg17: memref<64x128xbf16, #tpu.memory_space<vmem>>, %arg18: memref<1x128xf32, #tpu.memory_space<vmem>>, %arg19: memref<8x128xf32, #tpu.memory_space<vmem>>) attributes {dimension_semantics = [#tpu.dimension_semantics<parallel>], iteration_bounds = array<i64: 1>, scalar_prefetch = 0 : i64, scratch_operands = 0 : i64, tpu.core_type = #tpu.core_type<tc>, window_params = [{transform_indices = @transform_0, window_bounds = array<i64: 8, 8, 32>}, {transform_indices = @transform_1, window_bounds = array<i64: 8, 8>}, {pipeline_mode = #tpu.pipeline_mode<synchronous>, transform_indices = @transform_2, window_bounds = array<i64: 32, 4>}, {pipeline_mode = #tpu.pipeline_mode<synchronous>, transform_indices = @transform_3, window_bounds = array<i64: 4, 1>}, {pipeline_mode = #tpu.pipeline_mode<synchronous>, transform_indices = @transform_4, window_bounds = array<i64: 32, 64>}, {pipeline_mode = #tpu.pipeline_mode<synchronous>, transform_indices = @transform_5, window_bounds = array<i64: 1, 64>}, {pipeline_mode = #tpu.pipeline_mode<synchronous>, transform_indices = @transform_6, window_bounds = array<i64: 1, 64>}, {pipeline_mode = #tpu.pipeline_mode<synchronous>, transform_indices = @transform_7, window_bounds = array<i64: 1, 64>}, {pipeline_mode = #tpu.pipeline_mode<synchronous>, transform_indices = @transform_8, window_bounds = array<i64: 32, 32>}, {pipeline_mode = #tpu.pipeline_mode<synchronous>, transform_indices = @transform_9, window_bounds = array<i64: 1, 32>}, {pipeline_mode = #tpu.pipeline_mode<synchronous>, transform_indices = @transform_10, window_bounds = array<i64: 1, 32>}, {pipeline_mode = #tpu.pipeline_mode<synchronous>, transform_indices = @transform_11, window_bounds = array<i64: 1, 32>}, {pipeline_mode = #tpu.pipeline_mode<synchronous>, transform_indices = @transform_12, window_bounds = array<i64: 32, 32>}, {pipeline_mode = #tpu.pipeline_mode<synchronous>, transform_indices = @transform_13, window_bounds = array<i64: 1, 32>}, {pipeline_mode = #tpu.pipeline_mode<synchronous>, transform_indices = @transform_14, window_bounds = array<i64: 1, 32>}, {pipeline_mode = #tpu.pipeline_mode<synchronous>, transform_indices = @transform_15, window_bounds = array<i64: 1, 32>}, {pipeline_mode = #tpu.pipeline_mode<synchronous>, transform_indices = @transform_16, window_bounds = array<i64: 64, 128>}, {pipeline_mode = #tpu.pipeline_mode<synchronous>, transform_indices = @transform_17, window_bounds = array<i64: 1, 128>}, {transform_indices = @transform_18, window_bounds = array<i64: 8, 128>}]} {
    %c0 = arith.constant 0 : index
    %c0_0 = arith.constant 0 : index
    %c0_1 = arith.constant 0 : index
    %0 = vector.load %arg1[%c0, %c0_0, %c0_1] : memref<8x8x32xbf16, #tpu.memory_space<vmem>>, vector<8x8x32xbf16>
    %c0_2 = arith.constant 0 : index
    %c0_3 = arith.constant 0 : index
    %1 = vector.load %arg2[%c0_2, %c0_3] : memref<8x8xf32, #tpu.memory_space<vmem>>, vector<8x8xf32>
    %2 = vector.shape_cast %0 : vector<8x8x32xbf16> to vector<64x32xbf16>
    %c0_4 = arith.constant 0 : index
    %c0_5 = arith.constant 0 : index
    %3 = vector.load %arg3[%c0_4, %c0_5] : memref<32x4xbf16, #tpu.memory_space<vmem>>, vector<32x4xbf16>
    %cst = arith.constant dense<0.000000e+00> : vector<64x4xf32>
    %4 = tpu.matmul %2, %3, %cst {dimension_numbers = #tpu.dot_dimension_numbers<[1], [0], [0], [1], [0, 0, 1, 1], [], []>} : vector<64x32xbf16>, vector<32x4xbf16>, vector<64x4xf32> -> vector<64x4xf32>
    %5 = vector.shape_cast %4 : vector<64x4xf32> to vector<8x8x4xf32>
    %6 = tpu.transpose %5, [0, 2, 1] : vector<8x8x4xf32> -> vector<8x4x8xf32>
    %c0_6 = arith.constant 0 : index
    %c0_7 = arith.constant 0 : index
    %7 = vector.load %arg4[%c0_6, %c0_7] : memref<4x1xf32, #tpu.memory_space<vmem>>, vector<4x1xf32>
    %8 = vector.shape_cast %7 : vector<4x1xf32> to vector<1x4x1xf32>
    %9 = vector.broadcast %8 : vector<1x4x1xf32> to vector<8x4x8xf32>
    %10 = arith.addf %6, %9 : vector<8x4x8xf32>
    %11 = vector.shape_cast %1 : vector<8x8xf32> to vector<8x1x8xf32>
    %cst_8 = arith.constant 0.000000e+00 : f32
    %12 = vector.broadcast %cst_8 : f32 to vector<8x1x8xf32>
    %13 = arith.cmpf oeq, %11, %12 : vector<8x1x8xf32>
    %cst_9 = arith.constant -1.000000e+30 : f32
    %14 = vector.shape_cast %13 : vector<8x1x8xi1> to vector<8x1x8xi1>
    %15 = vector.broadcast %14 : vector<8x1x8xi1> to vector<8x4x8xi1>
    %16 = vector.broadcast %cst_9 : f32 to vector<8x4x8xf32>
    %17 = arith.select %15, %16, %10 : vector<8x4x8xi1>, vector<8x4x8xf32>
    %cst_10 = arith.constant dense<0xFF800000> : vector<8x4xf32>
    %18 = vector.multi_reduction <maximumf>, %17, %cst_10 [2] : vector<8x4x8xf32> to vector<8x4xf32>
    %19 = vector.shape_cast %18 : vector<8x4xf32> to vector<8x4x1xf32>
    %20 = vector.broadcast %19 : vector<8x4x1xf32> to vector<8x4x8xf32>
    %21 = arith.subf %17, %20 : vector<8x4x8xf32>
    %22 = math.exp %21 : vector<8x4x8xf32>
    %cst_11 = arith.constant dense<0.000000e+00> : vector<8x4xf32>
    %23 = vector.multi_reduction <add>, %22, %cst_11 [2] : vector<8x4x8xf32> to vector<8x4xf32>
    %24 = vector.shape_cast %23 : vector<8x4xf32> to vector<8x4x1xf32>
    %25 = tpu.reciprocal %24 {approx = true} : vector<8x4x1xf32> -> vector<8x4x1xf32>
    %26 = vector.broadcast %25 : vector<8x4x1xf32> to vector<8x4x8xf32>
    %27 = arith.mulf %22, %26 : vector<8x4x8xf32>
    %cst_12 = arith.constant dense<0.000000e+00> : vector<8x8xf32>
    %28 = vector.multi_reduction <add>, %27, %cst_12 [1] : vector<8x4x8xf32> to vector<8x8xf32>
    %cst_13 = arith.constant 2.500000e-01 : f32
    %29 = vector.broadcast %cst_13 : f32 to vector<8x8xf32>
    %30 = arith.mulf %29, %28 : vector<8x8xf32>
    %31 = vector.shape_cast %30 : vector<8x8xf32> to vector<8x1x8xf32>
    %32 = arith.truncf %31 : vector<8x1x8xf32> to vector<8x1x8xbf16>
    "tpu.trace_start"() <{level = 10 : i32, message = "bqs,bsh->bqh"}> : () -> ()
    %cst_14 = arith.constant dense<0.000000e+00> : vector<8x1x32xf32>
    %33 = tpu.matmul %32, %0, %cst_14 {dimension_numbers = #tpu.dot_dimension_numbers<[2], [1], [1], [2], [0, 0, 0, 1, 1, 2], [0], [0]>} : vector<8x1x8xbf16>, vector<8x8x32xbf16>, vector<8x1x32xf32> -> vector<8x1x32xf32>
    "tpu.trace_stop"() : () -> ()
    %34 = vector.shape_cast %33 : vector<8x1x32xf32> to vector<8x32xf32>
    %35 = arith.truncf %34 : vector<8x32xf32> to vector<8x32xbf16>
    %c0_15 = arith.constant 0 : index
    %c0_16 = arith.constant 0 : index
    %36 = vector.load %arg5[%c0_15, %c0_16] : memref<32x64xbf16, #tpu.memory_space<vmem>>, vector<32x64xbf16>
    %cst_17 = arith.constant dense<0.000000e+00> : vector<8x64xf32>
    %37 = tpu.matmul %35, %36, %cst_17 {dimension_numbers = #tpu.dot_dimension_numbers<[1], [0], [0], [1], [0, 0, 1, 1], [], []>} : vector<8x32xbf16>, vector<32x64xbf16>, vector<8x64xf32> -> vector<8x64xf32>
    %c0_18 = arith.constant 0 : index
    %c0_19 = arith.constant 0 : index
    %38 = vector.load %arg6[%c0_18, %c0_19] : memref<1x64xf32, #tpu.memory_space<vmem>>, vector<1x64xf32>
    %39 = vector.broadcast %38 : vector<1x64xf32> to vector<8x64xf32>
    %40 = arith.addf %37, %39 : vector<8x64xf32>
    %c0_20 = arith.constant 0 : index
    %c0_21 = arith.constant 0 : index
    %41 = vector.load %arg7[%c0_20, %c0_21] : memref<1x64xf32, #tpu.memory_space<vmem>>, vector<1x64xf32>
    %c0_22 = arith.constant 0 : index
    %c0_23 = arith.constant 0 : index
    %42 = vector.load %arg8[%c0_22, %c0_23] : memref<1x64xf32, #tpu.memory_space<vmem>>, vector<1x64xf32>
    %43 = vector.extract_strided_slice %40 {offsets = [0, 0], sizes = [8, 32], strides = [1, 1]} : vector<8x64xf32> to vector<8x32xf32>
    %44 = vector.extract_strided_slice %41 {offsets = [0, 0], sizes = [1, 32], strides = [1, 1]} : vector<1x64xf32> to vector<1x32xf32>
    %45 = vector.extract_strided_slice %42 {offsets = [0, 0], sizes = [1, 32], strides = [1, 1]} : vector<1x64xf32> to vector<1x32xf32>
    %cst_24 = arith.constant dense<0.000000e+00> : vector<8xf32>
    %46 = vector.multi_reduction <add>, %43, %cst_24 [1] : vector<8x32xf32> to vector<8xf32>
    %47 = vector.shape_cast %46 : vector<8xf32> to vector<8x1xf32>
    %cst_25 = arith.constant 3.200000e+01 : f32
    %48 = vector.broadcast %cst_25 : f32 to vector<8x1xf32>
    %49 = arith.divf %47, %48 : vector<8x1xf32>
    %50 = vector.broadcast %49 : vector<8x1xf32> to vector<8x32xf32>
    %51 = arith.subf %43, %50 : vector<8x32xf32>
    %52 = arith.mulf %51, %51 : vector<8x32xf32>
    %cst_26 = arith.constant dense<0.000000e+00> : vector<8xf32>
    %53 = vector.multi_reduction <add>, %52, %cst_26 [1] : vector<8x32xf32> to vector<8xf32>
    %54 = vector.shape_cast %53 : vector<8xf32> to vector<8x1xf32>
    %cst_27 = arith.constant 3.200000e+01 : f32
    %55 = vector.broadcast %cst_27 : f32 to vector<8x1xf32>
    %56 = arith.divf %54, %55 : vector<8x1xf32>
    %57 = vector.broadcast %49 : vector<8x1xf32> to vector<8x32xf32>
    %58 = arith.subf %43, %57 : vector<8x32xf32>
    %cst_28 = arith.constant 9.99999974E-6 : f32
    %59 = vector.broadcast %cst_28 : f32 to vector<8x1xf32>
    %60 = arith.addf %56, %59 : vector<8x1xf32>
    %61 = math.rsqrt %60 : vector<8x1xf32>
    %62 = vector.broadcast %61 : vector<8x1xf32> to vector<8x32xf32>
    %63 = arith.mulf %58, %62 : vector<8x32xf32>
    %64 = vector.broadcast %44 : vector<1x32xf32> to vector<8x32xf32>
    %65 = arith.mulf %63, %64 : vector<8x32xf32>
    %66 = vector.broadcast %45 : vector<1x32xf32> to vector<8x32xf32>
    %67 = arith.addf %65, %66 : vector<8x32xf32>
    %cst_29 = arith.constant 5.000000e-01 : f32
    %68 = vector.broadcast %cst_29 : f32 to vector<8x32xf32>
    %69 = arith.mulf %68, %67 : vector<8x32xf32>
    %cst_30 = arith.constant 0.707106769 : f32
    %70 = vector.broadcast %cst_30 : f32 to vector<8x32xf32>
    %71 = arith.mulf %67, %70 : vector<8x32xf32>
    %72 = math.erf %71 : vector<8x32xf32>
    %cst_31 = arith.constant 1.000000e+00 : f32
    %73 = vector.broadcast %cst_31 : f32 to vector<8x32xf32>
    %74 = arith.addf %73, %72 : vector<8x32xf32>
    %75 = arith.mulf %69, %74 : vector<8x32xf32>
    %76 = arith.addf %75, %34 : vector<8x32xf32>
    %77 = vector.extract_strided_slice %40 {offsets = [0, 32], sizes = [8, 32], strides = [1, 1]} : vector<8x64xf32> to vector<8x32xf32>
    %78 = vector.extract_strided_slice %41 {offsets = [0, 32], sizes = [1, 32], strides = [1, 1]} : vector<1x64xf32> to vector<1x32xf32>
    %79 = vector.extract_strided_slice %42 {offsets = [0, 32], sizes = [1, 32], strides = [1, 1]} : vector<1x64xf32> to vector<1x32xf32>
    %cst_32 = arith.constant dense<0.000000e+00> : vector<8xf32>
    %80 = vector.multi_reduction <add>, %77, %cst_32 [1] : vector<8x32xf32> to vector<8xf32>
    %81 = vector.shape_cast %80 : vector<8xf32> to vector<8x1xf32>
    %cst_33 = arith.constant 3.200000e+01 : f32
    %82 = vector.broadcast %cst_33 : f32 to vector<8x1xf32>
    %83 = arith.divf %81, %82 : vector<8x1xf32>
    %84 = vector.broadcast %83 : vector<8x1xf32> to vector<8x32xf32>
    %85 = arith.subf %77, %84 : vector<8x32xf32>
    %86 = arith.mulf %85, %85 : vector<8x32xf32>
    %cst_34 = arith.constant dense<0.000000e+00> : vector<8xf32>
    %87 = vector.multi_reduction <add>, %86, %cst_34 [1] : vector<8x32xf32> to vector<8xf32>
    %88 = vector.shape_cast %87 : vector<8xf32> to vector<8x1xf32>
    %cst_35 = arith.constant 3.200000e+01 : f32
    %89 = vector.broadcast %cst_35 : f32 to vector<8x1xf32>
    %90 = arith.divf %88, %89 : vector<8x1xf32>
    %91 = vector.broadcast %83 : vector<8x1xf32> to vector<8x32xf32>
    %92 = arith.subf %77, %91 : vector<8x32xf32>
    %cst_36 = arith.constant 9.99999974E-6 : f32
    %93 = vector.broadcast %cst_36 : f32 to vector<8x1xf32>
    %94 = arith.addf %90, %93 : vector<8x1xf32>
    %95 = math.rsqrt %94 : vector<8x1xf32>
    %96 = vector.broadcast %95 : vector<8x1xf32> to vector<8x32xf32>
    %97 = arith.mulf %92, %96 : vector<8x32xf32>
    %98 = vector.broadcast %78 : vector<1x32xf32> to vector<8x32xf32>
    %99 = arith.mulf %97, %98 : vector<8x32xf32>
    %100 = vector.broadcast %79 : vector<1x32xf32> to vector<8x32xf32>
    %101 = arith.addf %99, %100 : vector<8x32xf32>
    %cst_37 = arith.constant 5.000000e-01 : f32
    %102 = vector.broadcast %cst_37 : f32 to vector<8x32xf32>
    %103 = arith.mulf %102, %101 : vector<8x32xf32>
    %cst_38 = arith.constant 0.707106769 : f32
    %104 = vector.broadcast %cst_38 : f32 to vector<8x32xf32>
    %105 = arith.mulf %101, %104 : vector<8x32xf32>
    %106 = math.erf %105 : vector<8x32xf32>
    %cst_39 = arith.constant 1.000000e+00 : f32
    %107 = vector.broadcast %cst_39 : f32 to vector<8x32xf32>
    %108 = arith.addf %107, %106 : vector<8x32xf32>
    %109 = arith.mulf %103, %108 : vector<8x32xf32>
    %110 = arith.addf %109, %34 : vector<8x32xf32>
    %111 = arith.truncf %76 : vector<8x32xf32> to vector<8x32xbf16>
    %c0_40 = arith.constant 0 : index
    %c0_41 = arith.constant 0 : index
    %112 = vector.load %arg9[%c0_40, %c0_41] : memref<32x32xbf16, #tpu.memory_space<vmem>>, vector<32x32xbf16>
    %cst_42 = arith.constant dense<0.000000e+00> : vector<8x32xf32>
    %113 = tpu.matmul %111, %112, %cst_42 {dimension_numbers = #tpu.dot_dimension_numbers<[1], [0], [0], [1], [0, 0, 1, 1], [], []>} : vector<8x32xbf16>, vector<32x32xbf16>, vector<8x32xf32> -> vector<8x32xf32>
    %c0_43 = arith.constant 0 : index
    %c0_44 = arith.constant 0 : index
    %114 = vector.load %arg10[%c0_43, %c0_44] : memref<1x32xf32, #tpu.memory_space<vmem>>, vector<1x32xf32>
    %115 = vector.broadcast %114 : vector<1x32xf32> to vector<8x32xf32>
    %116 = arith.addf %113, %115 : vector<8x32xf32>
    %c0_45 = arith.constant 0 : index
    %c0_46 = arith.constant 0 : index
    %117 = vector.load %arg11[%c0_45, %c0_46] : memref<1x32xf32, #tpu.memory_space<vmem>>, vector<1x32xf32>
    %c0_47 = arith.constant 0 : index
    %c0_48 = arith.constant 0 : index
    %118 = vector.load %arg12[%c0_47, %c0_48] : memref<1x32xf32, #tpu.memory_space<vmem>>, vector<1x32xf32>
    %cst_49 = arith.constant dense<0.000000e+00> : vector<8xf32>
    %119 = vector.multi_reduction <add>, %116, %cst_49 [1] : vector<8x32xf32> to vector<8xf32>
    %120 = vector.shape_cast %119 : vector<8xf32> to vector<8x1xf32>
    %cst_50 = arith.constant 3.200000e+01 : f32
    %121 = vector.broadcast %cst_50 : f32 to vector<8x1xf32>
    %122 = arith.divf %120, %121 : vector<8x1xf32>
    %123 = vector.broadcast %122 : vector<8x1xf32> to vector<8x32xf32>
    %124 = arith.subf %116, %123 : vector<8x32xf32>
    %125 = arith.mulf %124, %124 : vector<8x32xf32>
    %cst_51 = arith.constant dense<0.000000e+00> : vector<8xf32>
    %126 = vector.multi_reduction <add>, %125, %cst_51 [1] : vector<8x32xf32> to vector<8xf32>
    %127 = vector.shape_cast %126 : vector<8xf32> to vector<8x1xf32>
    %cst_52 = arith.constant 3.200000e+01 : f32
    %128 = vector.broadcast %cst_52 : f32 to vector<8x1xf32>
    %129 = arith.divf %127, %128 : vector<8x1xf32>
    %130 = vector.broadcast %122 : vector<8x1xf32> to vector<8x32xf32>
    %131 = arith.subf %116, %130 : vector<8x32xf32>
    %cst_53 = arith.constant 9.99999974E-6 : f32
    %132 = vector.broadcast %cst_53 : f32 to vector<8x1xf32>
    %133 = arith.addf %129, %132 : vector<8x1xf32>
    %134 = math.rsqrt %133 : vector<8x1xf32>
    %135 = vector.broadcast %134 : vector<8x1xf32> to vector<8x32xf32>
    %136 = arith.mulf %131, %135 : vector<8x32xf32>
    %137 = vector.broadcast %117 : vector<1x32xf32> to vector<8x32xf32>
    %138 = arith.mulf %136, %137 : vector<8x32xf32>
    %139 = vector.broadcast %118 : vector<1x32xf32> to vector<8x32xf32>
    %140 = arith.addf %138, %139 : vector<8x32xf32>
    %cst_54 = arith.constant 5.000000e-01 : f32
    %141 = vector.broadcast %cst_54 : f32 to vector<8x32xf32>
    %142 = arith.mulf %141, %140 : vector<8x32xf32>
    %cst_55 = arith.constant 0.707106769 : f32
    %143 = vector.broadcast %cst_55 : f32 to vector<8x32xf32>
    %144 = arith.mulf %140, %143 : vector<8x32xf32>
    %145 = math.erf %144 : vector<8x32xf32>
    %cst_56 = arith.constant 1.000000e+00 : f32
    %146 = vector.broadcast %cst_56 : f32 to vector<8x32xf32>
    %147 = arith.addf %146, %145 : vector<8x32xf32>
    %148 = arith.mulf %142, %147 : vector<8x32xf32>
    %149 = arith.addf %148, %76 : vector<8x32xf32>
    %150 = arith.truncf %110 : vector<8x32xf32> to vector<8x32xbf16>
    %c0_57 = arith.constant 0 : index
    %c0_58 = arith.constant 0 : index
    %151 = vector.load %arg13[%c0_57, %c0_58] : memref<32x32xbf16, #tpu.memory_space<vmem>>, vector<32x32xbf16>
    %cst_59 = arith.constant dense<0.000000e+00> : vector<8x32xf32>
    %152 = tpu.matmul %150, %151, %cst_59 {dimension_numbers = #tpu.dot_dimension_numbers<[1], [0], [0], [1], [0, 0, 1, 1], [], []>} : vector<8x32xbf16>, vector<32x32xbf16>, vector<8x32xf32> -> vector<8x32xf32>
    %c0_60 = arith.constant 0 : index
    %c0_61 = arith.constant 0 : index
    %153 = vector.load %arg14[%c0_60, %c0_61] : memref<1x32xf32, #tpu.memory_space<vmem>>, vector<1x32xf32>
    %154 = vector.broadcast %153 : vector<1x32xf32> to vector<8x32xf32>
    %155 = arith.addf %152, %154 : vector<8x32xf32>
    %c0_62 = arith.constant 0 : index
    %c0_63 = arith.constant 0 : index
    %156 = vector.load %arg15[%c0_62, %c0_63] : memref<1x32xf32, #tpu.memory_space<vmem>>, vector<1x32xf32>
    %c0_64 = arith.constant 0 : index
    %c0_65 = arith.constant 0 : index
    %157 = vector.load %arg16[%c0_64, %c0_65] : memref<1x32xf32, #tpu.memory_space<vmem>>, vector<1x32xf32>
    %cst_66 = arith.constant dense<0.000000e+00> : vector<8xf32>
    %158 = vector.multi_reduction <add>, %155, %cst_66 [1] : vector<8x32xf32> to vector<8xf32>
    %159 = vector.shape_cast %158 : vector<8xf32> to vector<8x1xf32>
    %cst_67 = arith.constant 3.200000e+01 : f32
    %160 = vector.broadcast %cst_67 : f32 to vector<8x1xf32>
    %161 = arith.divf %159, %160 : vector<8x1xf32>
    %162 = vector.broadcast %161 : vector<8x1xf32> to vector<8x32xf32>
    %163 = arith.subf %155, %162 : vector<8x32xf32>
    %164 = arith.mulf %163, %163 : vector<8x32xf32>
    %cst_68 = arith.constant dense<0.000000e+00> : vector<8xf32>
    %165 = vector.multi_reduction <add>, %164, %cst_68 [1] : vector<8x32xf32> to vector<8xf32>
    %166 = vector.shape_cast %165 : vector<8xf32> to vector<8x1xf32>
    %cst_69 = arith.constant 3.200000e+01 : f32
    %167 = vector.broadcast %cst_69 : f32 to vector<8x1xf32>
    %168 = arith.divf %166, %167 : vector<8x1xf32>
    %169 = vector.broadcast %161 : vector<8x1xf32> to vector<8x32xf32>
    %170 = arith.subf %155, %169 : vector<8x32xf32>
    %cst_70 = arith.constant 9.99999974E-6 : f32
    %171 = vector.broadcast %cst_70 : f32 to vector<8x1xf32>
    %172 = arith.addf %168, %171 : vector<8x1xf32>
    %173 = math.rsqrt %172 : vector<8x1xf32>
    %174 = vector.broadcast %173 : vector<8x1xf32> to vector<8x32xf32>
    %175 = arith.mulf %170, %174 : vector<8x32xf32>
    %176 = vector.broadcast %156 : vector<1x32xf32> to vector<8x32xf32>
    %177 = arith.mulf %175, %176 : vector<8x32xf32>
    %178 = vector.broadcast %157 : vector<1x32xf32> to vector<8x32xf32>
    %179 = arith.addf %177, %178 : vector<8x32xf32>
    %cst_71 = arith.constant 5.000000e-01 : f32
    %180 = vector.broadcast %cst_71 : f32 to vector<8x32xf32>
    %181 = arith.mulf %180, %179 : vector<8x32xf32>
    %cst_72 = arith.constant 0.707106769 : f32
    %182 = vector.broadcast %cst_72 : f32 to vector<8x32xf32>
    %183 = arith.mulf %179, %182 : vector<8x32xf32>
    %184 = math.erf %183 : vector<8x32xf32>
    %cst_73 = arith.constant 1.000000e+00 : f32
    %185 = vector.broadcast %cst_73 : f32 to vector<8x32xf32>
    %186 = arith.addf %185, %184 : vector<8x32xf32>
    %187 = arith.mulf %181, %186 : vector<8x32xf32>
    %188 = arith.addf %187, %110 : vector<8x32xf32>
    %189 = tpu.concatenate %149, %188 in 1 : vector<8x32xf32>, vector<8x32xf32> -> vector<8x64xf32>
    %190 = arith.truncf %189 : vector<8x64xf32> to vector<8x64xbf16>
    %c0_74 = arith.constant 0 : index
    %c0_75 = arith.constant 0 : index
    %191 = vector.load %arg17[%c0_74, %c0_75] : memref<64x128xbf16, #tpu.memory_space<vmem>>, vector<64x128xbf16>
    %cst_76 = arith.constant dense<0.000000e+00> : vector<8x128xf32>
    %192 = tpu.matmul %190, %191, %cst_76 {dimension_numbers = #tpu.dot_dimension_numbers<[1], [0], [0], [1], [0, 0, 1, 1], [], []>} : vector<8x64xbf16>, vector<64x128xbf16>, vector<8x128xf32> -> vector<8x128xf32>
    %c0_77 = arith.constant 0 : index
    %c0_78 = arith.constant 0 : index
    %193 = vector.load %arg18[%c0_77, %c0_78] : memref<1x128xf32, #tpu.memory_space<vmem>>, vector<1x128xf32>
    %194 = vector.broadcast %193 : vector<1x128xf32> to vector<8x128xf32>
    %195 = arith.addf %192, %194 : vector<8x128xf32>
    %c0_79 = arith.constant 0 : index
    %c0_80 = arith.constant 0 : index
    %196 = vector.load %arg19[%c0_79, %c0_80] : memref<8x128xf32, #tpu.memory_space<vmem>>, vector<8x128xf32>
    tpu.vector_store %arg19[%c0_79, %c0_80], %195 {strides = array<i32>} : memref<8x128xf32, #tpu.memory_space<vmem>>, vector<8x128xf32>,
    return
  }
  func.func @transform_0(%arg0: i32) -> (i32, i32, i32) {
    %c0_i32 = arith.constant 0 : i32
    %c0_i32_0 = arith.constant 0 : i32
    %c0_i32_1 = arith.constant 0 : i32
    return %arg0, %c0_i32, %c0_i32_0 : i32, i32, i32
  }
  func.func @transform_1(%arg0: i32) -> (i32, i32) {
    %c0_i32 = arith.constant 0 : i32
    %c0_i32_0 = arith.constant 0 : i32
    return %arg0, %c0_i32 : i32, i32
  }
  func.func @transform_2(%arg0: i32) -> (i32, i32) {
    %c0_i32 = arith.constant 0 : i32
    %c0_i32_0 = arith.constant 0 : i32
    %c0_i32_1 = arith.constant 0 : i32
    return %c0_i32, %c0_i32_0 : i32, i32
  }
  func.func @transform_3(%arg0: i32) -> (i32, i32) {
    %c0_i32 = arith.constant 0 : i32
    %c0_i32_0 = arith.constant 0 : i32
    %c0_i32_1 = arith.constant 0 : i32
    return %c0_i32, %c0_i32_0 : i32, i32
  }
  func.func @transform_4(%arg0: i32) -> (i32, i32) {
    %c0_i32 = arith.constant 0 : i32
    %c0_i32_0 = arith.constant 0 : i32
    %c0_i32_1 = arith.constant 0 : i32
    return %c0_i32, %c0_i32_0 : i32, i32
  }
  func.func @transform_5(%arg0: i32) -> (i32, i32) {
    %c0_i32 = arith.constant 0 : i32
    %c0_i32_0 = arith.constant 0 : i32
    %c0_i32_1 = arith.constant 0 : i32
    return %c0_i32, %c0_i32_0 : i32, i32
  }
  func.func @transform_6(%arg0: i32) -> (i32, i32) {
    %c0_i32 = arith.constant 0 : i32
    %c0_i32_0 = arith.constant 0 : i32
    %c0_i32_1 = arith.constant 0 : i32
    return %c0_i32, %c0_i32_0 : i32, i32
  }
  func.func @transform_7(%arg0: i32) -> (i32, i32) {
    %c0_i32 = arith.constant 0 : i32
    %c0_i32_0 = arith.constant 0 : i32
    %c0_i32_1 = arith.constant 0 : i32
    return %c0_i32, %c0_i32_0 : i32, i32
  }
  func.func @transform_8(%arg0: i32) -> (i32, i32) {
    %c0_i32 = arith.constant 0 : i32
    %c0_i32_0 = arith.constant 0 : i32
    %c0_i32_1 = arith.constant 0 : i32
    return %c0_i32, %c0_i32_0 : i32, i32
  }
  func.func @transform_9(%arg0: i32) -> (i32, i32) {
    %c0_i32 = arith.constant 0 : i32
    %c0_i32_0 = arith.constant 0 : i32
    %c0_i32_1 = arith.constant 0 : i32
    return %c0_i32, %c0_i32_0 : i32, i32
  }
  func.func @transform_10(%arg0: i32) -> (i32, i32) {
    %c0_i32 = arith.constant 0 : i32
    %c0_i32_0 = arith.constant 0 : i32
    %c0_i32_1 = arith.constant 0 : i32
    return %c0_i32, %c0_i32_0 : i32, i32
  }
  func.func @transform_11(%arg0: i32) -> (i32, i32) {
    %c0_i32 = arith.constant 0 : i32
    %c0_i32_0 = arith.constant 0 : i32
    %c0_i32_1 = arith.constant 0 : i32
    return %c0_i32, %c0_i32_0 : i32, i32
  }
  func.func @transform_12(%arg0: i32) -> (i32, i32) {
    %c0_i32 = arith.constant 0 : i32
    %c0_i32_0 = arith.constant 0 : i32
    %c0_i32_1 = arith.constant 0 : i32
    return %c0_i32, %c0_i32_0 : i32, i32
  }
  func.func @transform_13(%arg0: i32) -> (i32, i32) {
    %c0_i32 = arith.constant 0 : i32
    %c0_i32_0 = arith.constant 0 : i32
    %c0_i32_1 = arith.constant 0 : i32
    return %c0_i32, %c0_i32_0 : i32, i32
  }
  func.func @transform_14(%arg0: i32) -> (i32, i32) {
    %c0_i32 = arith.constant 0 : i32
    %c0_i32_0 = arith.constant 0 : i32
    %c0_i32_1 = arith.constant 0 : i32
    return %c0_i32, %c0_i32_0 : i32, i32
  }
  func.func @transform_15(%arg0: i32) -> (i32, i32) {
    %c0_i32 = arith.constant 0 : i32
    %c0_i32_0 = arith.constant 0 : i32
    %c0_i32_1 = arith.constant 0 : i32
    return %c0_i32, %c0_i32_0 : i32, i32
  }
  func.func @transform_16(%arg0: i32) -> (i32, i32) {
    %c0_i32 = arith.constant 0 : i32
    %c0_i32_0 = arith.constant 0 : i32
    %c0_i32_1 = arith.constant 0 : i32
    return %c0_i32, %c0_i32_0 : i32, i32
  }
  func.func @transform_17(%arg0: i32) -> (i32, i32) {
    %c0_i32 = arith.constant 0 : i32
    %c0_i32_0 = arith.constant 0 : i32
    %c0_i32_1 = arith.constant 0 : i32
    return %c0_i32, %c0_i32_0 : i32, i32
  }
  func.func @transform_18(%arg0: i32) -> (i32, i32) {
    %c0_i32 = arith.constant 0 : i32
    %c0_i32_0 = arith.constant 0 : i32
    return %arg0, %c0_i32 : i32, i32
  }
}

module attributes {stable_mosaic.version = 11 : i64} {
  func.func @esg_head_kernel(%arg0: i32, %arg1: memref<8x8x32xbf16, #tpu.memory_space<vmem>>, %arg2: memref<8x8xf32, #tpu.memory_space<vmem>>, %arg3: memref<32x4xbf16, #tpu.memory_space<vmem>>, %arg4: memref<4x1xf32, #tpu.memory_space<vmem>>, %arg5: memref<32x64xbf16, #tpu.memory_space<vmem>>, %arg6: memref<1x64xf32, #tpu.memory_space<vmem>>, %arg7: memref<1x64xf32, #tpu.memory_space<vmem>>, %arg8: memref<1x64xf32, #tpu.memory_space<vmem>>, %arg9: memref<32x32xbf16, #tpu.memory_space<vmem>>, %arg10: memref<1x32xf32, #tpu.memory_space<vmem>>, %arg11: memref<1x32xf32, #tpu.memory_space<vmem>>, %arg12: memref<1x32xf32, #tpu.memory_space<vmem>>, %arg13: memref<32x32xbf16, #tpu.memory_space<vmem>>, %arg14: memref<1x32xf32, #tpu.memory_space<vmem>>, %arg15: memref<1x32xf32, #tpu.memory_space<vmem>>, %arg16: memref<1x32xf32, #tpu.memory_space<vmem>>, %arg17: memref<64x128xbf16, #tpu.memory_space<vmem>>, %arg18: memref<1x128xf32, #tpu.memory_space<vmem>>, %arg19: memref<8x128xf32, #tpu.memory_space<vmem>>) attributes {dimension_semantics = [#tpu.dimension_semantics<parallel>], iteration_bounds = array<i64: 1>, scalar_prefetch = 0 : i64, scratch_operands = 0 : i64, tpu.core_type = #tpu.core_type<tc>, window_params = [{transform_indices = @transform_0, window_bounds = array<i64: 8, 8, 32>}, {transform_indices = @transform_1, window_bounds = array<i64: 8, 8>}, {pipeline_mode = #tpu.pipeline_mode<synchronous>, transform_indices = @transform_2, window_bounds = array<i64: 32, 4>}, {pipeline_mode = #tpu.pipeline_mode<synchronous>, transform_indices = @transform_3, window_bounds = array<i64: 4, 1>}, {pipeline_mode = #tpu.pipeline_mode<synchronous>, transform_indices = @transform_4, window_bounds = array<i64: 32, 64>}, {pipeline_mode = #tpu.pipeline_mode<synchronous>, transform_indices = @transform_5, window_bounds = array<i64: 1, 64>}, {pipeline_mode = #tpu.pipeline_mode<synchronous>, transform_indices = @transform_6, window_bounds = array<i64: 1, 64>}, {pipeline_mode = #tpu.pipeline_mode<synchronous>, transform_indices = @transform_7, window_bounds = array<i64: 1, 64>}, {pipeline_mode = #tpu.pipeline_mode<synchronous>, transform_indices = @transform_8, window_bounds = array<i64: 32, 32>}, {pipeline_mode = #tpu.pipeline_mode<synchronous>, transform_indices = @transform_9, window_bounds = array<i64: 1, 32>}, {pipeline_mode = #tpu.pipeline_mode<synchronous>, transform_indices = @transform_10, window_bounds = array<i64: 1, 32>}, {pipeline_mode = #tpu.pipeline_mode<synchronous>, transform_indices = @transform_11, window_bounds = array<i64: 1, 32>}, {pipeline_mode = #tpu.pipeline_mode<synchronous>, transform_indices = @transform_12, window_bounds = array<i64: 32, 32>}, {pipeline_mode = #tpu.pipeline_mode<synchronous>, transform_indices = @transform_13, window_bounds = array<i64: 1, 32>}, {pipeline_mode = #tpu.pipeline_mode<synchronous>, transform_indices = @transform_14, window_bounds = array<i64: 1, 32>}, {pipeline_mode = #tpu.pipeline_mode<synchronous>, transform_indices = @transform_15, window_bounds = array<i64: 1, 32>}, {pipeline_mode = #tpu.pipeline_mode<synchronous>, transform_indices = @transform_16, window_bounds = array<i64: 64, 128>}, {pipeline_mode = #tpu.pipeline_mode<synchronous>, transform_indices = @transform_17, window_bounds = array<i64: 1, 128>}, {transform_indices = @transform_18, window_bounds = array<i64: 8, 128>}]} {
    %c0 = arith.constant 0 : index
    %c0_0 = arith.constant 0 : index
    %c0_1 = arith.constant 0 : index
    %0 = vector.load %arg1[%c0, %c0_0, %c0_1] : memref<8x8x32xbf16, #tpu.memory_space<vmem>>, vector<8x8x32xbf16>
    %c0_2 = arith.constant 0 : index
    %c0_3 = arith.constant 0 : index
    %1 = vector.load %arg2[%c0_2, %c0_3] : memref<8x8xf32, #tpu.memory_space<vmem>>, vector<8x8xf32>
    %2 = vector.shape_cast %0 : vector<8x8x32xbf16> to vector<64x32xbf16>
    %c0_4 = arith.constant 0 : index
    %c0_5 = arith.constant 0 : index
    %3 = vector.load %arg3[%c0_4, %c0_5] : memref<32x4xbf16, #tpu.memory_space<vmem>>, vector<32x4xbf16>
    %cst = arith.constant dense<0.000000e+00> : vector<64x4xf32>
    %4 = tpu.matmul %2, %3, %cst {dimension_numbers = #tpu.dot_dimension_numbers<[1], [0], [0], [1], [0, 0, 1, 1], [], []>} : vector<64x32xbf16>, vector<32x4xbf16>, vector<64x4xf32> -> vector<64x4xf32>
    %5 = vector.shape_cast %4 : vector<64x4xf32> to vector<8x8x4xf32>
    %6 = tpu.transpose %5, [0, 2, 1] : vector<8x8x4xf32> -> vector<8x4x8xf32>
    %c0_6 = arith.constant 0 : index
    %c0_7 = arith.constant 0 : index
    %7 = vector.load %arg4[%c0_6, %c0_7] : memref<4x1xf32, #tpu.memory_space<vmem>>, vector<4x1xf32>
    %8 = vector.shape_cast %7 : vector<4x1xf32> to vector<1x4x1xf32>
    %9 = vector.broadcast %8 : vector<1x4x1xf32> to vector<8x4x8xf32>
    %10 = arith.addf %6, %9 : vector<8x4x8xf32>
    %11 = vector.shape_cast %1 : vector<8x8xf32> to vector<8x1x8xf32>
    %cst_8 = arith.constant 0.000000e+00 : f32
    %12 = vector.broadcast %cst_8 : f32 to vector<8x1x8xf32>
    %13 = arith.cmpf oeq, %11, %12 : vector<8x1x8xf32>
    %cst_9 = arith.constant -1.000000e+30 : f32
    %14 = vector.shape_cast %13 : vector<8x1x8xi1> to vector<8x1x8xi1>
    %15 = vector.broadcast %14 : vector<8x1x8xi1> to vector<8x4x8xi1>
    %16 = vector.broadcast %cst_9 : f32 to vector<8x4x8xf32>
    %17 = arith.select %15, %16, %10 : vector<8x4x8xi1>, vector<8x4x8xf32>
    %cst_10 = arith.constant dense<0xFF800000> : vector<8x4xf32>
    %18 = vector.multi_reduction <maximumf>, %17, %cst_10 [2] : vector<8x4x8xf32> to vector<8x4xf32>
    %19 = vector.shape_cast %18 : vector<8x4xf32> to vector<8x4x1xf32>
    %20 = vector.broadcast %19 : vector<8x4x1xf32> to vector<8x4x8xf32>
    %21 = arith.subf %17, %20 : vector<8x4x8xf32>
    %22 = math.exp %21 : vector<8x4x8xf32>
    %cst_11 = arith.constant dense<0.000000e+00> : vector<8x4xf32>
    %23 = vector.multi_reduction <add>, %22, %cst_11 [2] : vector<8x4x8xf32> to vector<8x4xf32>
    %24 = vector.shape_cast %23 : vector<8x4xf32> to vector<8x4x1xf32>
    %25 = tpu.reciprocal %24 {approx = true} : vector<8x4x1xf32> -> vector<8x4x1xf32>
    %26 = vector.broadcast %25 : vector<8x4x1xf32> to vector<8x4x8xf32>
    %27 = arith.mulf %22, %26 : vector<8x4x8xf32>
    %cst_12 = arith.constant dense<0.000000e+00> : vector<8x8xf32>
    %28 = vector.multi_reduction <add>, %27, %cst_12 [1] : vector<8x4x8xf32> to vector<8x8xf32>
    %cst_13 = arith.constant 2.500000e-01 : f32
    %29 = vector.broadcast %cst_13 : f32 to vector<8x8xf32>
    %30 = arith.mulf %29, %28 : vector<8x8xf32>
    %31 = vector.shape_cast %30 : vector<8x8xf32> to vector<8x1x8xf32>
    %32 = arith.truncf %31 : vector<8x1x8xf32> to vector<8x1x8xbf16>
    "tpu.trace_start"() <{level = 10 : i32, message = "bqs,bsh->bqh"}> : () -> ()
    %cst_14 = arith.constant dense<0.000000e+00> : vector<8x1x32xf32>
    %33 = tpu.matmul %32, %0, %cst_14 {dimension_numbers = #tpu.dot_dimension_numbers<[2], [1], [1], [2], [0, 0, 0, 1, 1, 2], [0], [0]>} : vector<8x1x8xbf16>, vector<8x8x32xbf16>, vector<8x1x32xf32> -> vector<8x1x32xf32>
    "tpu.trace_stop"() : () -> ()
    %34 = vector.shape_cast %33 : vector<8x1x32xf32> to vector<8x32xf32>
    %35 = arith.truncf %34 : vector<8x32xf32> to vector<8x32xbf16>
    %c0_15 = arith.constant 0 : index
    %c0_16 = arith.constant 0 : index
    %36 = vector.load %arg5[%c0_15, %c0_16] : memref<32x64xbf16, #tpu.memory_space<vmem>>, vector<32x64xbf16>
    %cst_17 = arith.constant dense<0.000000e+00> : vector<8x64xf32>
    %37 = tpu.matmul %35, %36, %cst_17 {dimension_numbers = #tpu.dot_dimension_numbers<[1], [0], [0], [1], [0, 0, 1, 1], [], []>} : vector<8x32xbf16>, vector<32x64xbf16>, vector<8x64xf32> -> vector<8x64xf32>
    %c0_18 = arith.constant 0 : index
    %c0_19 = arith.constant 0 : index
    %38 = vector.load %arg6[%c0_18, %c0_19] : memref<1x64xf32, #tpu.memory_space<vmem>>, vector<1x64xf32>
    %39 = vector.broadcast %38 : vector<1x64xf32> to vector<8x64xf32>
    %40 = arith.addf %37, %39 : vector<8x64xf32>
    %c0_20 = arith.constant 0 : index
    %c0_21 = arith.constant 0 : index
    %41 = vector.load %arg7[%c0_20, %c0_21] : memref<1x64xf32, #tpu.memory_space<vmem>>, vector<1x64xf32>
    %c0_22 = arith.constant 0 : index
    %c0_23 = arith.constant 0 : index
    %42 = vector.load %arg8[%c0_22, %c0_23] : memref<1x64xf32, #tpu.memory_space<vmem>>, vector<1x64xf32>
    %43 = vector.extract_strided_slice %40 {offsets = [0, 0], sizes = [8, 32], strides = [1, 1]} : vector<8x64xf32> to vector<8x32xf32>
    %44 = vector.extract_strided_slice %41 {offsets = [0, 0], sizes = [1, 32], strides = [1, 1]} : vector<1x64xf32> to vector<1x32xf32>
    %45 = vector.extract_strided_slice %42 {offsets = [0, 0], sizes = [1, 32], strides = [1, 1]} : vector<1x64xf32> to vector<1x32xf32>
    %cst_24 = arith.constant dense<0.000000e+00> : vector<8xf32>
    %46 = vector.multi_reduction <add>, %43, %cst_24 [1] : vector<8x32xf32> to vector<8xf32>
    %47 = vector.shape_cast %46 : vector<8xf32> to vector<8x1xf32>
    %cst_25 = arith.constant 3.200000e+01 : f32
    %48 = vector.broadcast %cst_25 : f32 to vector<8x1xf32>
    %49 = arith.divf %47, %48 : vector<8x1xf32>
    %50 = vector.broadcast %49 : vector<8x1xf32> to vector<8x32xf32>
    %51 = arith.subf %43, %50 : vector<8x32xf32>
    %52 = arith.mulf %51, %51 : vector<8x32xf32>
    %cst_26 = arith.constant dense<0.000000e+00> : vector<8xf32>
    %53 = vector.multi_reduction <add>, %52, %cst_26 [1] : vector<8x32xf32> to vector<8xf32>
    %54 = vector.shape_cast %53 : vector<8xf32> to vector<8x1xf32>
    %cst_27 = arith.constant 3.200000e+01 : f32
    %55 = vector.broadcast %cst_27 : f32 to vector<8x1xf32>
    %56 = arith.divf %54, %55 : vector<8x1xf32>
    %57 = vector.broadcast %49 : vector<8x1xf32> to vector<8x32xf32>
    %58 = arith.subf %43, %57 : vector<8x32xf32>
    %cst_28 = arith.constant 9.99999974E-6 : f32
    %59 = vector.broadcast %cst_28 : f32 to vector<8x1xf32>
    %60 = arith.addf %56, %59 : vector<8x1xf32>
    %61 = math.rsqrt %60 : vector<8x1xf32>
    %62 = vector.broadcast %61 : vector<8x1xf32> to vector<8x32xf32>
    %63 = arith.mulf %58, %62 : vector<8x32xf32>
    %64 = vector.broadcast %44 : vector<1x32xf32> to vector<8x32xf32>
    %65 = arith.mulf %63, %64 : vector<8x32xf32>
    %66 = vector.broadcast %45 : vector<1x32xf32> to vector<8x32xf32>
    %67 = arith.addf %65, %66 : vector<8x32xf32>
    %cst_29 = arith.constant 5.000000e-01 : f32
    %68 = vector.broadcast %cst_29 : f32 to vector<8x32xf32>
    %69 = arith.mulf %68, %67 : vector<8x32xf32>
    %cst_30 = arith.constant 0.707106769 : f32
    %70 = vector.broadcast %cst_30 : f32 to vector<8x32xf32>
    %71 = arith.mulf %67, %70 : vector<8x32xf32>
    %72 = math.erf %71 : vector<8x32xf32>
    %cst_31 = arith.constant 1.000000e+00 : f32
    %73 = vector.broadcast %cst_31 : f32 to vector<8x32xf32>
    %74 = arith.addf %73, %72 : vector<8x32xf32>
    %75 = arith.mulf %69, %74 : vector<8x32xf32>
    %76 = arith.addf %75, %34 : vector<8x32xf32>
    %77 = vector.extract_strided_slice %40 {offsets = [0, 32], sizes = [8, 32], strides = [1, 1]} : vector<8x64xf32> to vector<8x32xf32>
    %78 = vector.extract_strided_slice %41 {offsets = [0, 32], sizes = [1, 32], strides = [1, 1]} : vector<1x64xf32> to vector<1x32xf32>
    %79 = vector.extract_strided_slice %42 {offsets = [0, 32], sizes = [1, 32], strides = [1, 1]} : vector<1x64xf32> to vector<1x32xf32>
    %cst_32 = arith.constant dense<0.000000e+00> : vector<8xf32>
    %80 = vector.multi_reduction <add>, %77, %cst_32 [1] : vector<8x32xf32> to vector<8xf32>
    %81 = vector.shape_cast %80 : vector<8xf32> to vector<8x1xf32>
    %cst_33 = arith.constant 3.200000e+01 : f32
    %82 = vector.broadcast %cst_33 : f32 to vector<8x1xf32>
    %83 = arith.divf %81, %82 : vector<8x1xf32>
    %84 = vector.broadcast %83 : vector<8x1xf32> to vector<8x32xf32>
    %85 = arith.subf %77, %84 : vector<8x32xf32>
    %86 = arith.mulf %85, %85 : vector<8x32xf32>
    %cst_34 = arith.constant dense<0.000000e+00> : vector<8xf32>
    %87 = vector.multi_reduction <add>, %86, %cst_34 [1] : vector<8x32xf32> to vector<8xf32>
    %88 = vector.shape_cast %87 : vector<8xf32> to vector<8x1xf32>
    %cst_35 = arith.constant 3.200000e+01 : f32
    %89 = vector.broadcast %cst_35 : f32 to vector<8x1xf32>
    %90 = arith.divf %88, %89 : vector<8x1xf32>
    %91 = vector.broadcast %83 : vector<8x1xf32> to vector<8x32xf32>
    %92 = arith.subf %77, %91 : vector<8x32xf32>
    %cst_36 = arith.constant 9.99999974E-6 : f32
    %93 = vector.broadcast %cst_36 : f32 to vector<8x1xf32>
    %94 = arith.addf %90, %93 : vector<8x1xf32>
    %95 = math.rsqrt %94 : vector<8x1xf32>
    %96 = vector.broadcast %95 : vector<8x1xf32> to vector<8x32xf32>
    %97 = arith.mulf %92, %96 : vector<8x32xf32>
    %98 = vector.broadcast %78 : vector<1x32xf32> to vector<8x32xf32>
    %99 = arith.mulf %97, %98 : vector<8x32xf32>
    %100 = vector.broadcast %79 : vector<1x32xf32> to vector<8x32xf32>
    %101 = arith.addf %99, %100 : vector<8x32xf32>
    %cst_37 = arith.constant 5.000000e-01 : f32
    %102 = vector.broadcast %cst_37 : f32 to vector<8x32xf32>
    %103 = arith.mulf %102, %101 : vector<8x32xf32>
    %cst_38 = arith.constant 0.707106769 : f32
    %104 = vector.broadcast %cst_38 : f32 to vector<8x32xf32>
    %105 = arith.mulf %101, %104 : vector<8x32xf32>
    %106 = math.erf %105 : vector<8x32xf32>
    %cst_39 = arith.constant 1.000000e+00 : f32
    %107 = vector.broadcast %cst_39 : f32 to vector<8x32xf32>
    %108 = arith.addf %107, %106 : vector<8x32xf32>
    %109 = arith.mulf %103, %108 : vector<8x32xf32>
    %110 = arith.addf %109, %34 : vector<8x32xf32>
    %111 = arith.truncf %76 : vector<8x32xf32> to vector<8x32xbf16>
    %c0_40 = arith.constant 0 : index
    %c0_41 = arith.constant 0 : index
    %112 = vector.load %arg9[%c0_40, %c0_41] : memref<32x32xbf16, #tpu.memory_space<vmem>>, vector<32x32xbf16>
    %cst_42 = arith.constant dense<0.000000e+00> : vector<8x32xf32>
    %113 = tpu.matmul %111, %112, %cst_42 {dimension_numbers = #tpu.dot_dimension_numbers<[1], [0], [0], [1], [0, 0, 1, 1], [], []>} : vector<8x32xbf16>, vector<32x32xbf16>, vector<8x32xf32> -> vector<8x32xf32>
    %c0_43 = arith.constant 0 : index
    %c0_44 = arith.constant 0 : index
    %114 = vector.load %arg10[%c0_43, %c0_44] : memref<1x32xf32, #tpu.memory_space<vmem>>, vector<1x32xf32>
    %115 = vector.broadcast %114 : vector<1x32xf32> to vector<8x32xf32>
    %116 = arith.addf %113, %115 : vector<8x32xf32>
    %c0_45 = arith.constant 0 : index
    %c0_46 = arith.constant 0 : index
    %117 = vector.load %arg11[%c0_45, %c0_46] : memref<1x32xf32, #tpu.memory_space<vmem>>, vector<1x32xf32>
    %c0_47 = arith.constant 0 : index
    %c0_48 = arith.constant 0 : index
    %118 = vector.load %arg12[%c0_47, %c0_48] : memref<1x32xf32, #tpu.memory_space<vmem>>, vector<1x32xf32>
    %cst_49 = arith.constant dense<0.000000e+00> : vector<8xf32>
    %119 = vector.multi_reduction <add>, %116, %cst_49 [1] : vector<8x32xf32> to vector<8xf32>
    %120 = vector.shape_cast %119 : vector<8xf32> to vector<8x1xf32>
    %cst_50 = arith.constant 3.200000e+01 : f32
    %121 = vector.broadcast %cst_50 : f32 to vector<8x1xf32>
    %122 = arith.divf %120, %121 : vector<8x1xf32>
    %123 = vector.broadcast %122 : vector<8x1xf32> to vector<8x32xf32>
    %124 = arith.subf %116, %123 : vector<8x32xf32>
    %125 = arith.mulf %124, %124 : vector<8x32xf32>
    %cst_51 = arith.constant dense<0.000000e+00> : vector<8xf32>
    %126 = vector.multi_reduction <add>, %125, %cst_51 [1] : vector<8x32xf32> to vector<8xf32>
    %127 = vector.shape_cast %126 : vector<8xf32> to vector<8x1xf32>
    %cst_52 = arith.constant 3.200000e+01 : f32
    %128 = vector.broadcast %cst_52 : f32 to vector<8x1xf32>
    %129 = arith.divf %127, %128 : vector<8x1xf32>
    %130 = vector.broadcast %122 : vector<8x1xf32> to vector<8x32xf32>
    %131 = arith.subf %116, %130 : vector<8x32xf32>
    %cst_53 = arith.constant 9.99999974E-6 : f32
    %132 = vector.broadcast %cst_53 : f32 to vector<8x1xf32>
    %133 = arith.addf %129, %132 : vector<8x1xf32>
    %134 = math.rsqrt %133 : vector<8x1xf32>
    %135 = vector.broadcast %134 : vector<8x1xf32> to vector<8x32xf32>
    %136 = arith.mulf %131, %135 : vector<8x32xf32>
    %137 = vector.broadcast %117 : vector<1x32xf32> to vector<8x32xf32>
    %138 = arith.mulf %136, %137 : vector<8x32xf32>
    %139 = vector.broadcast %118 : vector<1x32xf32> to vector<8x32xf32>
    %140 = arith.addf %138, %139 : vector<8x32xf32>
    %cst_54 = arith.constant 5.000000e-01 : f32
    %141 = vector.broadcast %cst_54 : f32 to vector<8x32xf32>
    %142 = arith.mulf %141, %140 : vector<8x32xf32>
    %cst_55 = arith.constant 0.707106769 : f32
    %143 = vector.broadcast %cst_55 : f32 to vector<8x32xf32>
    %144 = arith.mulf %140, %143 : vector<8x32xf32>
    %145 = math.erf %144 : vector<8x32xf32>
    %cst_56 = arith.constant 1.000000e+00 : f32
    %146 = vector.broadcast %cst_56 : f32 to vector<8x32xf32>
    %147 = arith.addf %146, %145 : vector<8x32xf32>
    %148 = arith.mulf %142, %147 : vector<8x32xf32>
    %149 = arith.addf %148, %76 : vector<8x32xf32>
    %150 = arith.truncf %110 : vector<8x32xf32> to vector<8x32xbf16>
    %c0_57 = arith.constant 0 : index
    %c0_58 = arith.constant 0 : index
    %151 = vector.load %arg13[%c0_57, %c0_58] : memref<32x32xbf16, #tpu.memory_space<vmem>>, vector<32x32xbf16>
    %cst_59 = arith.constant dense<0.000000e+00> : vector<8x32xf32>
    %152 = tpu.matmul %150, %151, %cst_59 {dimension_numbers = #tpu.dot_dimension_numbers<[1], [0], [0], [1], [0, 0, 1, 1], [], []>} : vector<8x32xbf16>, vector<32x32xbf16>, vector<8x32xf32> -> vector<8x32xf32>
    %c0_60 = arith.constant 0 : index
    %c0_61 = arith.constant 0 : index
    %153 = vector.load %arg14[%c0_60, %c0_61] : memref<1x32xf32, #tpu.memory_space<vmem>>, vector<1x32xf32>
    %154 = vector.broadcast %153 : vector<1x32xf32> to vector<8x32xf32>
    %155 = arith.addf %152, %154 : vector<8x32xf32>
    %c0_62 = arith.constant 0 : index
    %c0_63 = arith.constant 0 : index
    %156 = vector.load %arg15[%c0_62, %c0_63] : memref<1x32xf32, #tpu.memory_space<vmem>>, vector<1x32xf32>
    %c0_64 = arith.constant 0 : index
    %c0_65 = arith.constant 0 : index
    %157 = vector.load %arg16[%c0_64, %c0_65] : memref<1x32xf32, #tpu.memory_space<vmem>>, vector<1x32xf32>
    %cst_66 = arith.constant dense<0.000000e+00> : vector<8xf32>
    %158 = vector.multi_reduction <add>, %155, %cst_66 [1] : vector<8x32xf32> to vector<8xf32>
    %159 = vector.shape_cast %158 : vector<8xf32> to vector<8x1xf32>
    %cst_67 = arith.constant 3.200000e+01 : f32
    %160 = vector.broadcast %cst_67 : f32 to vector<8x1xf32>
    %161 = arith.divf %159, %160 : vector<8x1xf32>
    %162 = vector.broadcast %161 : vector<8x1xf32> to vector<8x32xf32>
    %163 = arith.subf %155, %162 : vector<8x32xf32>
    %164 = arith.mulf %163, %163 : vector<8x32xf32>
    %cst_68 = arith.constant dense<0.000000e+00> : vector<8xf32>
    %165 = vector.multi_reduction <add>, %164, %cst_68 [1] : vector<8x32xf32> to vector<8xf32>
    %166 = vector.shape_cast %165 : vector<8xf32> to vector<8x1xf32>
    %cst_69 = arith.constant 3.200000e+01 : f32
    %167 = vector.broadcast %cst_69 : f32 to vector<8x1xf32>
    %168 = arith.divf %166, %167 : vector<8x1xf32>
    %169 = vector.broadcast %161 : vector<8x1xf32> to vector<8x32xf32>
    %170 = arith.subf %155, %169 : vector<8x32xf32>
    %cst_70 = arith.constant 9.99999974E-6 : f32
    %171 = vector.broadcast %cst_70 : f32 to vector<8x1xf32>
    %172 = arith.addf %168, %171 : vector<8x1xf32>
    %173 = math.rsqrt %172 : vector<8x1xf32>
    %174 = vector.broadcast %173 : vector<8x1xf32> to vector<8x32xf32>
    %175 = arith.mulf %170, %174 : vector<8x32xf32>
    %176 = vector.broadcast %156 : vector<1x32xf32> to vector<8x32xf32>
    %177 = arith.mulf %175, %176 : vector<8x32xf32>
    %178 = vector.broadcast %157 : vector<1x32xf32> to vector<8x32xf32>
    %179 = arith.addf %177, %178 : vector<8x32xf32>
    %cst_71 = arith.constant 5.000000e-01 : f32
    %180 = vector.broadcast %cst_71 : f32 to vector<8x32xf32>
    %181 = arith.mulf %180, %179 : vector<8x32xf32>
    %cst_72 = arith.constant 0.707106769 : f32
    %182 = vector.broadcast %cst_72 : f32 to vector<8x32xf32>
    %183 = arith.mulf %179, %182 : vector<8x32xf32>
    %184 = math.erf %183 : vector<8x32xf32>
    %cst_73 = arith.constant 1.000000e+00 : f32
    %185 = vector.broadcast %cst_73 : f32 to vector<8x32xf32>
    %186 = arith.addf %185, %184 : vector<8x32xf32>
    %187 = arith.mulf %181, %186 : vector<8x32xf32>
    %188 = arith.addf %187, %110 : vector<8x32xf32>
    %189 = tpu.concatenate %149, %188 in 1 : vector<8x32xf32>, vector<8x32xf32> -> vector<8x64xf32>
    %190 = arith.truncf %189 : vector<8x64xf32> to vector<8x64xbf16>
    %c0_74 = arith.constant 0 : index
    %c0_75 = arith.constant 0 : index
    %191 = vector.load %arg17[%c0_74, %c0_75] : memref<64x128xbf16, #tpu.memory_space<vmem>>, vector<64x128xbf16>
    %cst_76 = arith.constant dense<0.000000e+00> : vector<8x128xf32>
    %192 = tpu.matmul %190, %191, %cst_76 {dimension_numbers = #tpu.dot_dimension_numbers<[1], [0], [0], [1], [0, 0, 1, 1], [], []>} : vector<8x64xbf16>, vector<64x128xbf16>, vector<8x128xf32> -> vector<8x128xf32>
    %c0_77 = arith.constant 0 : index
    %c0_78 = arith.constant 0 : index
    %193 = vector.load %arg18[%c0_77, %c0_78] : memref<1x128xf32, #tpu.memory_space<vmem>>, vector<1x128xf32>
    %194 = vector.broadcast %193 : vector<1x128xf32> to vector<8x128xf32>
    %195 = arith.addf %192, %194 : vector<8x128xf32>
    %c0_79 = arith.constant 0 : index
    %c0_80 = arith.constant 0 : index
    %196 = vector.load %arg19[%c0_79, %c0_80] : memref<8x128xf32, #tpu.memory_space<vmem>>, vector<8x128xf32>
    tpu.vector_store %arg19[%c0_79, %c0_80], %195 {strides = array<i32>} : memref<8x128xf32, #tpu.memory_space<vmem>>, vector<8x128xf32>,
    return
  }
  func.func @transform_0(%arg0: i32) -> (i32, i32, i32) {
    %c0_i32 = arith.constant 0 : i32
    %c0_i32_0 = arith.constant 0 : i32
    %c0_i32_1 = arith.constant 0 : i32
    return %arg0, %c0_i32, %c0_i32_0 : i32, i32, i32
  }
  func.func @transform_1(%arg0: i32) -> (i32, i32) {
    %c0_i32 = arith.constant 0 : i32
    %c0_i32_0 = arith.constant 0 : i32
    return %arg0, %c0_i32 : i32, i32
  }
  func.func @transform_2(%arg0: i32) -> (i32, i32) {
    %c0_i32 = arith.constant 0 : i32
    %c0_i32_0 = arith.constant 0 : i32
    %c0_i32_1 = arith.constant 0 : i32
    return %c0_i32, %c0_i32_0 : i32, i32
  }
  func.func @transform_3(%arg0: i32) -> (i32, i32) {
    %c0_i32 = arith.constant 0 : i32
    %c0_i32_0 = arith.constant 0 : i32
    %c0_i32_1 = arith.constant 0 : i32
    return %c0_i32, %c0_i32_0 : i32, i32
  }
  func.func @transform_4(%arg0: i32) -> (i32, i32) {
    %c0_i32 = arith.constant 0 : i32
    %c0_i32_0 = arith.constant 0 : i32
    %c0_i32_1 = arith.constant 0 : i32
    return %c0_i32, %c0_i32_0 : i32, i32
  }
  func.func @transform_5(%arg0: i32) -> (i32, i32) {
    %c0_i32 = arith.constant 0 : i32
    %c0_i32_0 = arith.constant 0 : i32
    %c0_i32_1 = arith.constant 0 : i32
    return %c0_i32, %c0_i32_0 : i32, i32
  }
  func.func @transform_6(%arg0: i32) -> (i32, i32) {
    %c0_i32 = arith.constant 0 : i32
    %c0_i32_0 = arith.constant 0 : i32
    %c0_i32_1 = arith.constant 0 : i32
    return %c0_i32, %c0_i32_0 : i32, i32
  }
  func.func @transform_7(%arg0: i32) -> (i32, i32) {
    %c0_i32 = arith.constant 0 : i32
    %c0_i32_0 = arith.constant 0 : i32
    %c0_i32_1 = arith.constant 0 : i32
    return %c0_i32, %c0_i32_0 : i32, i32
  }
  func.func @transform_8(%arg0: i32) -> (i32, i32) {
    %c0_i32 = arith.constant 0 : i32
    %c0_i32_0 = arith.constant 0 : i32
    %c0_i32_1 = arith.constant 0 : i32
    return %c0_i32, %c0_i32_0 : i32, i32
  }
  func.func @transform_9(%arg0: i32) -> (i32, i32) {
    %c0_i32 = arith.constant 0 : i32
    %c0_i32_0 = arith.constant 0 : i32
    %c0_i32_1 = arith.constant 0 : i32
    return %c0_i32, %c0_i32_0 : i32, i32
  }
  func.func @transform_10(%arg0: i32) -> (i32, i32) {
    %c0_i32 = arith.constant 0 : i32
    %c0_i32_0 = arith.constant 0 : i32
    %c0_i32_1 = arith.constant 0 : i32
    return %c0_i32, %c0_i32_0 : i32, i32
  }
  func.func @transform_11(%arg0: i32) -> (i32, i32) {
    %c0_i32 = arith.constant 0 : i32
    %c0_i32_0 = arith.constant 0 : i32
    %c0_i32_1 = arith.constant 0 : i32
    return %c0_i32, %c0_i32_0 : i32, i32
  }
  func.func @transform_12(%arg0: i32) -> (i32, i32) {
    %c0_i32 = arith.constant 0 : i32
    %c0_i32_0 = arith.constant 0 : i32
    %c0_i32_1 = arith.constant 0 : i32
    return %c0_i32, %c0_i32_0 : i32, i32
  }
  func.func @transform_13(%arg0: i32) -> (i32, i32) {
    %c0_i32 = arith.constant 0 : i32
    %c0_i32_0 = arith.constant 0 : i32
    %c0_i32_1 = arith.constant 0 : i32
    return %c0_i32, %c0_i32_0 : i32, i32
  }
  func.func @transform_14(%arg0: i32) -> (i32, i32) {
    %c0_i32 = arith.constant 0 : i32
    %c0_i32_0 = arith.constant 0 : i32
    %c0_i32_1 = arith.constant 0 : i32
    return %c0_i32, %c0_i32_0 : i32, i32
  }
  func.func @transform_15(%arg0: i32) -> (i32, i32) {
    %c0_i32 = arith.constant 0 : i32
    %c0_i32_0 = arith.constant 0 : i32
    %c0_i32_1 = arith.constant 0 : i32
    return %c0_i32, %c0_i32_0 : i32, i32
  }
  func.func @transform_16(%arg0: i32) -> (i32, i32) {
    %c0_i32 = arith.constant 0 : i32
    %c0_i32_0 = arith.constant 0 : i32
    %c0_i32_1 = arith.constant 0 : i32
    return %c0_i32, %c0_i32_0 : i32, i32
  }
  func.func @transform_17(%arg0: i32) -> (i32, i32) {
    %c0_i32 = arith.constant 0 : i32
    %c0_i32_0 = arith.constant 0 : i32
    %c0_i32_1 = arith.constant 0 : i32
    return %c0_i32, %c0_i32_0 : i32, i32
  }
  func.func @transform_18(%arg0: i32) -> (i32, i32) {
    %c0_i32 = arith.constant 0 : i32
    %c0_i32_0 = arith.constant 0 : i32
    return %arg0, %c0_i32 : i32, i32
  }
}

</mosaic_0001>

<llo_original>
// kernel: _esg_forward_impl.1
$region0: #{_esg_forward_impl.1}
  #allocation0 [shape = 'u32[]', space=smem, size = 0x4, offset = 0x4, fixed_abs, tag = 'smem constant byte address 0x4 - core index']
  #allocation1 [shape = 'u32[144,128]{1,0:T(1,128)}', space=vmem, size = 0x12000, scoped, tag = 'internal scratch']
  %s0 = inlined_call_operand.vmem [shape: bf16[8,8,32], index: 0, kind: input, shape index: {}]
  %s1 = inlined_call_operand.vmem [shape: f32[8,8], index: 1, kind: input, shape index: {}]
  %s2 = inlined_call_operand.vmem [shape: bf16[32,4], index: 2, kind: input, shape index: {}]
  %s3 = inlined_call_operand.vmem [shape: f32[4,1], index: 3, kind: input, shape index: {}]
  %s4 = inlined_call_operand.vmem [shape: bf16[32,64], index: 4, kind: input, shape index: {}]
  %s5 = inlined_call_operand.vmem [shape: f32[1,64], index: 5, kind: input, shape index: {}]
  %s6 = inlined_call_operand.vmem [shape: f32[1,64], index: 6, kind: input, shape index: {}]
  %s7 = inlined_call_operand.vmem [shape: f32[1,64], index: 7, kind: input, shape index: {}]
  %s8 = inlined_call_operand.vmem [shape: bf16[32,32], index: 8, kind: input, shape index: {}]
  %s9 = inlined_call_operand.vmem [shape: f32[1,32], index: 9, kind: input, shape index: {}]
  %s10 = inlined_call_operand.vmem [shape: f32[1,32], index: 10, kind: input, shape index: {}]
  %s11 = inlined_call_operand.vmem [shape: f32[1,32], index: 11, kind: input, shape index: {}]
  %s12 = inlined_call_operand.vmem [shape: bf16[32,32], index: 12, kind: input, shape index: {}]
  %s13 = inlined_call_operand.vmem [shape: f32[1,32], index: 13, kind: input, shape index: {}]
  %s14 = inlined_call_operand.vmem [shape: f32[1,32], index: 14, kind: input, shape index: {}]
  %s15 = inlined_call_operand.vmem [shape: f32[1,32], index: 15, kind: input, shape index: {}]
  %s16 = inlined_call_operand.vmem [shape: bf16[64,128], index: 16, kind: input, shape index: {}]
  %s17 = inlined_call_operand.vmem [shape: f32[1,128], index: 17, kind: input, shape index: {}]
  %s18 = inlined_call_operand.vmem [shape: f32[8,128], index: 18, kind: output, shape index: {}]
  %s19 = sld [smem:[#allocation0]]
  $region82: #{_esg_forward_impl.1} parent=0
    _
  %s21 = ssub.s32 1, %s19
  %s22 = scalar_select 0, %s21, %s19
  // Predicated region
  $region2: #{_esg_forward_impl.1} parent=0 // pred_check
    _
  $region3: #{_esg_forward_impl.1} parent=0 // pred_check_branch
    %24 = sbr.rel (0) target = $region5
  $region4: #{_esg_forward_impl.1} parent=0 // pred_region
    _
  $region5: #{_esg_forward_impl.1} parent=0 // pred_fallthru
    _
  // Predicated region
  $region6: #{_esg_forward_impl.1} parent=0 // pred_check
    _
  $region7: #{_esg_forward_impl.1} parent=0 // pred_check_branch
    %26 = sbr.rel (0) target = $region9
  $region8: #{_esg_forward_impl.1} parent=0 // pred_region
    _
  $region9: #{_esg_forward_impl.1} parent=0 // pred_fallthru
    _
  // Predicated region
  $region10: #{_esg_forward_impl.1} parent=0 // pred_check
    _
  $region11: #{_esg_forward_impl.1} parent=0 // pred_check_branch
    %28 = sbr.rel (0) target = $region13
  $region12: #{_esg_forward_impl.1} parent=0 // pred_region
    _
  $region13: #{_esg_forward_impl.1} parent=0 // pred_fallthru
    _
  // Predicated region
  $region14: #{_esg_forward_impl.1} parent=0 // pred_check
    _
  $region15: #{_esg_forward_impl.1} parent=0 // pred_check_branch
    %30 = sbr.rel (0) target = $region17
  $region16: #{_esg_forward_impl.1} parent=0 // pred_region
    _
  $region17: #{_esg_forward_impl.1} parent=0 // pred_fallthru
    _
  // Predicated region
  $region18: #{_esg_forward_impl.1} parent=0 // pred_check
    _
  $region19: #{_esg_forward_impl.1} parent=0 // pred_check_branch
    %32 = sbr.rel (0) target = $region21
  $region20: #{_esg_forward_impl.1} parent=0 // pred_region
    _
  $region21: #{_esg_forward_impl.1} parent=0 // pred_fallthru
    _
  // Predicated region
  $region22: #{_esg_forward_impl.1} parent=0 // pred_check
    _
  $region23: #{_esg_forward_impl.1} parent=0 // pred_check_branch
    %34 = sbr.rel (0) target = $region25
  $region24: #{_esg_forward_impl.1} parent=0 // pred_region
    _
  $region25: #{_esg_forward_impl.1} parent=0 // pred_fallthru
    _
  // Predicated region
  $region26: #{_esg_forward_impl.1} parent=0 // pred_check
    _
  $region27: #{_esg_forward_impl.1} parent=0 // pred_check_branch
    %36 = sbr.rel (0) target = $region29
  $region28: #{_esg_forward_impl.1} parent=0 // pred_region
    _
  $region29: #{_esg_forward_impl.1} parent=0 // pred_fallthru
    _
  // Predicated region
  $region30: #{_esg_forward_impl.1} parent=0 // pred_check
    _
  $region31: #{_esg_forward_impl.1} parent=0 // pred_check_branch
    %38 = sbr.rel (0) target = $region33
  $region32: #{_esg_forward_impl.1} parent=0 // pred_region
    _
  $region33: #{_esg_forward_impl.1} parent=0 // pred_fallthru
    _
  // Predicated region
  $region34: #{_esg_forward_impl.1} parent=0 // pred_check
    _
  $region35: #{_esg_forward_impl.1} parent=0 // pred_check_branch
    %40 = sbr.rel (0) target = $region37
  $region36: #{_esg_forward_impl.1} parent=0 // pred_region
    _
  $region37: #{_esg_forward_impl.1} parent=0 // pred_fallthru
    _
  // Predicated region
  $region38: #{_esg_forward_impl.1} parent=0 // pred_check
    _
  $region39: #{_esg_forward_impl.1} parent=0 // pred_check_branch
    %42 = sbr.rel (0) target = $region41
  $region40: #{_esg_forward_impl.1} parent=0 // pred_region
    _
  $region41: #{_esg_forward_impl.1} parent=0 // pred_fallthru
    _
  // Predicated region
  $region42: #{_esg_forward_impl.1} parent=0 // pred_check
    _
  $region43: #{_esg_forward_impl.1} parent=0 // pred_check_branch
    %44 = sbr.rel (0) target = $region45
  $region44: #{_esg_forward_impl.1} parent=0 // pred_region
    _
  $region45: #{_esg_forward_impl.1} parent=0 // pred_fallthru
    _
  // Predicated region
  $region46: #{_esg_forward_impl.1} parent=0 // pred_check
    _
  $region47: #{_esg_forward_impl.1} parent=0 // pred_check_branch
    %46 = sbr.rel (0) target = $region49
  $region48: #{_esg_forward_impl.1} parent=0 // pred_region
    _
  $region49: #{_esg_forward_impl.1} parent=0 // pred_fallthru
    _
  // Predicated region
  $region50: #{_esg_forward_impl.1} parent=0 // pred_check
    _
  $region51: #{_esg_forward_impl.1} parent=0 // pred_check_branch
    %48 = sbr.rel (0) target = $region53
  $region52: #{_esg_forward_impl.1} parent=0 // pred_region
    _
  $region53: #{_esg_forward_impl.1} parent=0 // pred_fallthru
    _
  // Predicated region
  $region54: #{_esg_forward_impl.1} parent=0 // pred_check
    _
  $region55: #{_esg_forward_impl.1} parent=0 // pred_check_branch
    %50 = sbr.rel (0) target = $region57
  $region56: #{_esg_forward_impl.1} parent=0 // pred_region
    _
  $region57: #{_esg_forward_impl.1} parent=0 // pred_fallthru
    _
  // Predicated region
  $region58: #{_esg_forward_impl.1} parent=0 // pred_check
    _
  $region59: #{_esg_forward_impl.1} parent=0 // pred_check_branch
    %52 = sbr.rel (0) target = $region61
  $region60: #{_esg_forward_impl.1} parent=0 // pred_region
    _
  $region61: #{_esg_forward_impl.1} parent=0 // pred_fallthru
    _
  // Predicated region
  $region62: #{_esg_forward_impl.1} parent=0 // pred_check
    _
  $region63: #{_esg_forward_impl.1} parent=0 // pred_check_branch
    %54 = sbr.rel (0) target = $region65
  $region64: #{_esg_forward_impl.1} parent=0 // pred_region
    _
  $region65: #{_esg_forward_impl.1} parent=0 // pred_fallthru
    _
  // Predicated region
  $region66: #{_esg_forward_impl.1} parent=0 // pred_check
    _
  $region67: #{_esg_forward_impl.1} parent=0 // pred_check_branch
    %56 = sbr.rel (0) target = $region69
  $region68: #{_esg_forward_impl.1} parent=0 // pred_region
    _
  $region69: #{_esg_forward_impl.1} parent=0 // pred_fallthru
    _
  // Predicated region
  $region70: #{_esg_forward_impl.1} parent=0 // pred_check
    _
  $region71: #{_esg_forward_impl.1} parent=0 // pred_check_branch
    %58 = sbr.rel (0) target = $region73
  $region72: #{_esg_forward_impl.1} parent=0 // pred_region
    _
  $region73: #{_esg_forward_impl.1} parent=0 // pred_fallthru
    _
  %v60 = vld [vmem:[%s0] sm:$0xf]
  %v61 = vld [vmem:[%s0 + $0x4] sm:$0xf]
  %v62 = vld [vmem:[%s0 + $0x8] sm:$0xf]
  %v63 = vld [vmem:[%s0 + $0xc] sm:$0xf]
  %v64 = vld [vmem:[%s0 + $0x10] sm:$0xf]
  %v65 = vld [vmem:[%s0 + $0x14] sm:$0xf]
  %v66 = vld [vmem:[%s0 + $0x18] sm:$0xf]
  %v67 = vld [vmem:[%s0 + $0x1c] sm:$0xf]
  %v68 = vld [vmem:[%s1] sm:$0xff]
  %v69 = vld [vmem:[%s2] sm:$0xf]
  %v70 = vld [vmem:[%s2 + $0x4] sm:$0xf]
  %v71 = vld [vmem:[%s2 + $0x8] sm:$0xf]
  %v72 = vld [vmem:[%s2 + $0xc] sm:$0xf]
  %v81 = vunpack.c.l.b16 %v60
  %v82 = vunpack.c.l.b16 %v61
  %v83 = vunpack.c.l.b16 %v62
  %v84 = vunpack.c.l.b16 %v63
  %v85 = vunpack.c.l.b16 %v64
  %v86 = vunpack.c.l.b16 %v65
  %v87 = vunpack.c.l.b16 %v66
  %v88 = vunpack.c.l.b16 %v67
  %v89 = vpack.c.b16 %v82, %v81
  %v90 = vpack.c.b16 %v84, %v83
  %v91 = vpack.c.b16 %v86, %v85
  %v92 = vpack.c.b16 %v88, %v87
  %v97 = vunpack.c.l.b16 %v69
  %v98 = vunpack.c.l.b16 %v70
  %v99 = vunpack.c.l.b16 %v71
  %v100 = vunpack.c.l.b16 %v72
  %v101 = vpack.c.b16 %v98, %v97
  %v102 = vpack.c.b16 %v100, %v99
  %vm105 = vcmask 261120
  %v107 = vsel %vm105, %v89, 0
  %v110 = vsel %vm105, %v90, 0
  %v113 = vsel %vm105, %v91, 0
  %v116 = vsel %vm105, %v92, 0
  %118 = vmatprep.subr.bf16.mxu0 0
  %119 = vmatpush1.bf16.msra.mxu0 %v101
  %120 = vmatprep.subr.bf16.mxu0 0
  %121 = vmatpush1.bf16.msra.mxu0 %v102
  %122 = vmatprep.subr.bf16.mxu0 0
  %123 = vmatpush1.bf16.msra.mxu0 0
  %124 = vmatprep.subr.bf16.mxu0 0
  %125 = vmatpush1.bf16.msra.mxu0 0
  %126 = vmatprep.subr.bf16.mxu0 0
  %127 = vmatpush1.bf16.msra.mxu0 0
  %128 = vmatprep.subr.bf16.mxu0 0
  %129 = vmatpush1.bf16.msra.mxu0 0
  %130 = vmatprep.subr.bf16.mxu0 0
  %131 = vmatpush1.bf16.msra.mxu0 0
  %132 = vmatprep.subr.bf16.mxu0 0
  %133 = vmatpush1.bf16.msra.mxu0 0
  %134 = vmatprep.subr.bf16.mxu0 0
  %135 = vmatpush1.bf16.msra.mxu0 0
  %136 = vmatprep.subr.bf16.mxu0 0
  %137 = vmatpush1.bf16.msra.mxu0 0
  %138 = vmatprep.subr.bf16.mxu0 0
  %139 = vmatpush1.bf16.msra.mxu0 0
  %140 = vmatprep.subr.bf16.mxu0 0
  %141 = vmatpush1.bf16.msra.mxu0 0
  %142 = vmatprep.subr.bf16.mxu0 0
  %143 = vmatpush1.bf16.msra.mxu0 0
  %144 = vmatprep.subr.bf16.mxu0 0
  %145 = vmatpush1.bf16.msra.mxu0 0
  %146 = vmatprep.subr.bf16.mxu0 0
  %147 = vmatpush1.bf16.msra.mxu0 0
  %148 = vmatprep.subr.bf16.mxu0 0
  %149 = vmatpush1.bf16.msra.mxu0 0
  %150 = vmatprep.mubr.bf16.mxu0 0
  %151 = vmatmul.mubr.bf16.gmra.mrb[0].mxu0 %v107
  %v152 = vpop.f32.mrb[0].mxu0
  %v153 = vadd.f32 0.0, %v152
  %v154 = vpop.f32.mrb[0].mxu0
  %v155 = vpop.f32.mrb[0].mxu0
  %v156 = vadd.f32 0.0, %v155
  %v157 = vpop.f32.mrb[0].mxu0
  %158 = vmatprep.mubr.bf16.mxu0 0
  %159 = vmatmul.mubr.bf16.gmra.mrb[0].mxu0 %v110
  %v160 = vpop.f32.mrb[0].mxu0
  %v161 = vadd.f32 0.0, %v160
  %v162 = vpop.f32.mrb[0].mxu0
  %v163 = vpop.f32.mrb[0].mxu0
  %v164 = vadd.f32 0.0, %v163
  %v165 = vpop.f32.mrb[0].mxu0
  %166 = vmatprep.mubr.bf16.mxu0 0
  %167 = vmatmul.mubr.bf16.gmra.mrb[0].mxu0 %v113
  %v168 = vpop.f32.mrb[0].mxu0
  %v169 = vadd.f32 0.0, %v168
  %v170 = vpop.f32.mrb[0].mxu0
  %v171 = vpop.f32.mrb[0].mxu0
  %v172 = vadd.f32 0.0, %v171
  %v173 = vpop.f32.mrb[0].mxu0
  %174 = vmatprep.mubr.bf16.mxu0 0
  %175 = vmatmul.mubr.bf16.gmra.mrb[0].mxu0 %v116
  %v176 = vpop.f32.mrb[0].mxu0
  %v177 = vadd.f32 0.0, %v176
  %v178 = vpop.f32.mrb[0].mxu0
  %v179 = vpop.f32.mrb[0].mxu0
  %v180 = vadd.f32 0.0, %v179
  %v181 = vpop.f32.mrb[0].mxu0
  %182 = vdwg.mxu0
  %183 = vxpose.xlu0.b32.start [1/16] %v153, 128
  %184 = vxpose.xlu0.b32.cont [2/16] 0.0, 128
  %185 = vxpose.xlu0.b32.cont [3/16] 0.0, 128
  %186 = vxpose.xlu0.b32.cont [4/16] 0.0, 128
  %187 = vxpose.xlu0.b32.cont [5/16] 0.0, 128
  %188 = vxpose.xlu0.b32.cont [6/16] 0.0, 128
  %189 = vxpose.xlu0.b32.cont [7/16] 0.0, 128
  %190 = vxpose.xlu0.b32.cont [8/16] 0.0, 128
  %191 = vxpose.xlu0.b32.cont [9/16] 0.0, 128
  %192 = vxpose.xlu0.b32.cont [10/16] 0.0, 128
  %193 = vxpose.xlu0.b32.cont [11/16] 0.0, 128
  %194 = vxpose.xlu0.b32.cont [12/16] 0.0, 128
  %195 = vxpose.xlu0.b32.cont [13/16] 0.0, 128
  %196 = vxpose.xlu0.b32.cont [14/16] 0.0, 128
  %197 = vxpose.xlu0.b32.cont [15/16] 0.0, 128
  %198 = vxpose.xlu0.b32.end [16/16] 0.0, 128
  %v199 = vpop.trf.xlu0
  %v200 = vpop.trf.xlu0
  %v201 = vpop.trf.xlu0
  %v202 = vpop.trf.xlu0
  %v203 = vpop.trf.xlu0
  %v204 = vpop.trf.xlu0
  %v205 = vpop.trf.xlu0
  %v206 = vpop.trf.xlu0
  %v207 = vpop.trf.xlu0
  %v208 = vpop.trf.xlu0
  %v209 = vpop.trf.xlu0
  %v210 = vpop.trf.xlu0
  %v211 = vpop.trf.xlu0
  %v212 = vpop.trf.xlu0
  %v213 = vpop.trf.xlu0
  %v214 = vpop.trf.xlu0
  %215 = vxpose.xlu0.b32.start [1/16] %v156, 128
  %216 = vxpose.xlu0.b32.cont [2/16] 0.0, 128
  %217 = vxpose.xlu0.b32.cont [3/16] 0.0, 128
  %218 = vxpose.xlu0.b32.cont [4/16] 0.0, 128
  %219 = vxpose.xlu0.b32.cont [5/16] 0.0, 128
  %220 = vxpose.xlu0.b32.cont [6/16] 0.0, 128
  %221 = vxpose.xlu0.b32.cont [7/16] 0.0, 128
  %222 = vxpose.xlu0.b32.cont [8/16] 0.0, 128
  %223 = vxpose.xlu0.b32.cont [9/16] 0.0, 128
  %224 = vxpose.xlu0.b32.cont [10/16] 0.0, 128
  %225 = vxpose.xlu0.b32.cont [11/16] 0.0, 128
  %226 = vxpose.xlu0.b32.cont [12/16] 0.0, 128
  %227 = vxpose.xlu0.b32.cont [13/16] 0.0, 128
  %228 = vxpose.xlu0.b32.cont [14/16] 0.0, 128
  %229 = vxpose.xlu0.b32.cont [15/16] 0.0, 128
  %230 = vxpose.xlu0.b32.end [16/16] 0.0, 128
  %v231 = vpop.trf.xlu0
  %v232 = vpop.trf.xlu0
  %v233 = vpop.trf.xlu0
  %v234 = vpop.trf.xlu0
  %v235 = vpop.trf.xlu0
  %v236 = vpop.trf.xlu0
  %v237 = vpop.trf.xlu0
  %v238 = vpop.trf.xlu0
  %v239 = vpop.trf.xlu0
  %v240 = vpop.trf.xlu0
  %v241 = vpop.trf.xlu0
  %v242 = vpop.trf.xlu0
  %v243 = vpop.trf.xlu0
  %v244 = vpop.trf.xlu0
  %v245 = vpop.trf.xlu0
  %v246 = vpop.trf.xlu0
  %247 = vxpose.xlu0.b32.start [1/16] %v161, 128
  %248 = vxpose.xlu0.b32.cont [2/16] 0.0, 128
  %249 = vxpose.xlu0.b32.cont [3/16] 0.0, 128
  %250 = vxpose.xlu0.b32.cont [4/16] 0.0, 128
  %251 = vxpose.xlu0.b32.cont [5/16] 0.0, 128
  %252 = vxpose.xlu0.b32.cont [6/16] 0.0, 128
  %253 = vxpose.xlu0.b32.cont [7/16] 0.0, 128
  %254 = vxpose.xlu0.b32.cont [8/16] 0.0, 128
  %255 = vxpose.xlu0.b32.cont [9/16] 0.0, 128
  %256 = vxpose.xlu0.b32.cont [10/16] 0.0, 128
  %257 = vxpose.xlu0.b32.cont [11/16] 0.0, 128
  %258 = vxpose.xlu0.b32.cont [12/16] 0.0, 128
  %259 = vxpose.xlu0.b32.cont [13/16] 0.0, 128
  %260 = vxpose.xlu0.b32.cont [14/16] 0.0, 128
  %261 = vxpose.xlu0.b32.cont [15/16] 0.0, 128
  %262 = vxpose.xlu0.b32.end [16/16] 0.0, 128
  %v263 = vpop.trf.xlu0
  %v264 = vpop.trf.xlu0
  %v265 = vpop.trf.xlu0
  %v266 = vpop.trf.xlu0
  %v267 = vpop.trf.xlu0
  %v268 = vpop.trf.xlu0
  %v269 = vpop.trf.xlu0
  %v270 = vpop.trf.xlu0
  %v271 = vpop.trf.xlu0
  %v272 = vpop.trf.xlu0
  %v273 = vpop.trf.xlu0
  %v274 = vpop.trf.xlu0
  %v275 = vpop.trf.xlu0
  %v276 = vpop.trf.xlu0
  %v277 = vpop.trf.xlu0
  %v278 = vpop.trf.xlu0
  %279 = vxpose.xlu0.b32.start [1/16] %v164, 128
  %280 = vxpose.xlu0.b32.cont [2/16] 0.0, 128
  %281 = vxpose.xlu0.b32.cont [3/16] 0.0, 128
  %282 = vxpose.xlu0.b32.cont [4/16] 0.0, 128
  %283 = vxpose.xlu0.b32.cont [5/16] 0.0, 128
  %284 = vxpose.xlu0.b32.cont [6/16] 0.0, 128
  %285 = vxpose.xlu0.b32.cont [7/16] 0.0, 128
  %286 = vxpose.xlu0.b32.cont [8/16] 0.0, 128
  %287 = vxpose.xlu0.b32.cont [9/16] 0.0, 128
  %288 = vxpose.xlu0.b32.cont [10/16] 0.0, 128
  %289 = vxpose.xlu0.b32.cont [11/16] 0.0, 128
  %290 = vxpose.xlu0.b32.cont [12/16] 0.0, 128
  %291 = vxpose.xlu0.b32.cont [13/16] 0.0, 128
  %292 = vxpose.xlu0.b32.cont [14/16] 0.0, 128
  %293 = vxpose.xlu0.b32.cont [15/16] 0.0, 128
  %294 = vxpose.xlu0.b32.end [16/16] 0.0, 128
  %v295 = vpop.trf.xlu0
  %v296 = vpop.trf.xlu0
  %v297 = vpop.trf.xlu0
  %v298 = vpop.trf.xlu0
  %v299 = vpop.trf.xlu0
  %v300 = vpop.trf.xlu0
  %v301 = vpop.trf.xlu0
  %v302 = vpop.trf.xlu0
  %v303 = vpop.trf.xlu0
  %v304 = vpop.trf.xlu0
  %v305 = vpop.trf.xlu0
  %v306 = vpop.trf.xlu0
  %v307 = vpop.trf.xlu0
  %v308 = vpop.trf.xlu0
  %v309 = vpop.trf.xlu0
  %v310 = vpop.trf.xlu0
  %311 = vxpose.xlu0.b32.start [1/16] %v169, 128
  %312 = vxpose.xlu0.b32.cont [2/16] 0.0, 128
  %313 = vxpose.xlu0.b32.cont [3/16] 0.0, 128
  %314 = vxpose.xlu0.b32.cont [4/16] 0.0, 128
  %315 = vxpose.xlu0.b32.cont [5/16] 0.0, 128
  %316 = vxpose.xlu0.b32.cont [6/16] 0.0, 128
  %317 = vxpose.xlu0.b32.cont [7/16] 0.0, 128
  %318 = vxpose.xlu0.b32.cont [8/16] 0.0, 128
  %319 = vxpose.xlu0.b32.cont [9/16] 0.0, 128
  %320 = vxpose.xlu0.b32.cont [10/16] 0.0, 128
  %321 = vxpose.xlu0.b32.cont [11/16] 0.0, 128
  %322 = vxpose.xlu0.b32.cont [12/16] 0.0, 128
  %323 = vxpose.xlu0.b32.cont [13/16] 0.0, 128
  %324 = vxpose.xlu0.b32.cont [14/16] 0.0, 128
  %325 = vxpose.xlu0.b32.cont [15/16] 0.0, 128
  %326 = vxpose.xlu0.b32.end [16/16] 0.0, 128
  %v327 = vpop.trf.xlu0
  %v328 = vpop.trf.xlu0
  %v329 = vpop.trf.xlu0
  %v330 = vpop.trf.xlu0
  %v331 = vpop.trf.xlu0
  %v332 = vpop.trf.xlu0
  %v333 = vpop.trf.xlu0
  %v334 = vpop.trf.xlu0
  %v335 = vpop.trf.xlu0
  %v336 = vpop.trf.xlu0
  %v337 = vpop.trf.xlu0
  %v338 = vpop.trf.xlu0
  %v339 = vpop.trf.xlu0
  %v340 = vpop.trf.xlu0
  %v341 = vpop.trf.xlu0
  %v342 = vpop.trf.xlu0
  %343 = vxpose.xlu0.b32.start [1/16] %v172, 128
  %344 = vxpose.xlu0.b32.cont [2/16] 0.0, 128
  %345 = vxpose.xlu0.b32.cont [3/16] 0.0, 128
  %346 = vxpose.xlu0.b32.cont [4/16] 0.0, 128
  %347 = vxpose.xlu0.b32.cont [5/16] 0.0, 128
  %348 = vxpose.xlu0.b32.cont [6/16] 0.0, 128
  %349 = vxpose.xlu0.b32.cont [7/16] 0.0, 128
  %350 = vxpose.xlu0.b32.cont [8/16] 0.0, 128
  %351 = vxpose.xlu0.b32.cont [9/16] 0.0, 128
  %352 = vxpose.xlu0.b32.cont [10/16] 0.0, 128
  %353 = vxpose.xlu0.b32.cont [11/16] 0.0, 128
  %354 = vxpose.xlu0.b32.cont [12/16] 0.0, 128
  %355 = vxpose.xlu0.b32.cont [13/16] 0.0, 128
  %356 = vxpose.xlu0.b32.cont [14/16] 0.0, 128
  %357 = vxpose.xlu0.b32.cont [15/16] 0.0, 128
  %358 = vxpose.xlu0.b32.end [16/16] 0.0, 128
  %v359 = vpop.trf.xlu0
  %v360 = vpop.trf.xlu0
  %v361 = vpop.trf.xlu0
  %v362 = vpop.trf.xlu0
  %v363 = vpop.trf.xlu0
  %v364 = vpop.trf.xlu0
  %v365 = vpop.trf.xlu0
  %v366 = vpop.trf.xlu0
  %v367 = vpop.trf.xlu0
  %v368 = vpop.trf.xlu0
  %v369 = vpop.trf.xlu0
  %v370 = vpop.trf.xlu0
  %v371 = vpop.trf.xlu0
  %v372 = vpop.trf.xlu0
  %v373 = vpop.trf.xlu0
  %v374 = vpop.trf.xlu0
  %375 = vxpose.xlu0.b32.start [1/16] %v177, 128
  %376 = vxpose.xlu0.b32.cont [2/16] 0.0, 128
  %377 = vxpose.xlu0.b32.cont [3/16] 0.0, 128
  %378 = vxpose.xlu0.b32.cont [4/16] 0.0, 128
  %379 = vxpose.xlu0.b32.cont [5/16] 0.0, 128
  %380 = vxpose.xlu0.b32.cont [6/16] 0.0, 128
  %381 = vxpose.xlu0.b32.cont [7/16] 0.0, 128
  %382 = vxpose.xlu0.b32.cont [8/16] 0.0, 128
  %383 = vxpose.xlu0.b32.cont [9/16] 0.0, 128
  %384 = vxpose.xlu0.b32.cont [10/16] 0.0, 128
  %385 = vxpose.xlu0.b32.cont [11/16] 0.0, 128
  %386 = vxpose.xlu0.b32.cont [12/16] 0.0, 128
  %387 = vxpose.xlu0.b32.cont [13/16] 0.0, 128
  %388 = vxpose.xlu0.b32.cont [14/16] 0.0, 128
  %389 = vxpose.xlu0.b32.cont [15/16] 0.0, 128
  %390 = vxpose.xlu0.b32.end [16/16] 0.0, 128
  %v391 = vpop.trf.xlu0
  %v392 = vpop.trf.xlu0
  %v393 = vpop.trf.xlu0
  %v394 = vpop.trf.xlu0
  %v395 = vpop.trf.xlu0
  %v396 = vpop.trf.xlu0
  %v397 = vpop.trf.xlu0
  %v398 = vpop.trf.xlu0
  %v399 = vpop.trf.xlu0
  %v400 = vpop.trf.xlu0
  %v401 = vpop.trf.xlu0
  %v402 = vpop.trf.xlu0
  %v403 = vpop.trf.xlu0
  %v404 = vpop.trf.xlu0
  %v405 = vpop.trf.xlu0
  %v406 = vpop.trf.xlu0
  %407 = vxpose.xlu0.b32.start [1/16] %v180, 128
  %408 = vxpose.xlu0.b32.cont [2/16] 0.0, 128
  %409 = vxpose.xlu0.b32.cont [3/16] 0.0, 128
  %410 = vxpose.xlu0.b32.cont [4/16] 0.0, 128
  %411 = vxpose.xlu0.b32.cont [5/16] 0.0, 128
  %412 = vxpose.xlu0.b32.cont [6/16] 0.0, 128
  %413 = vxpose.xlu0.b32.cont [7/16] 0.0, 128
  %414 = vxpose.xlu0.b32.cont [8/16] 0.0, 128
  %415 = vxpose.xlu0.b32.cont [9/16] 0.0, 128
  %416 = vxpose.xlu0.b32.cont [10/16] 0.0, 128
  %417 = vxpose.xlu0.b32.cont [11/16] 0.0, 128
  %418 = vxpose.xlu0.b32.cont [12/16] 0.0, 128
  %419 = vxpose.xlu0.b32.cont [13/16] 0.0, 128
  %420 = vxpose.xlu0.b32.cont [14/16] 0.0, 128
  %421 = vxpose.xlu0.b32.cont [15/16] 0.0, 128
  %422 = vxpose.xlu0.b32.end [16/16] 0.0, 128
  %v423 = vpop.trf.xlu0
  %v424 = vpop.trf.xlu0
  %v425 = vpop.trf.xlu0
  %v426 = vpop.trf.xlu0
  %v427 = vpop.trf.xlu0
  %v428 = vpop.trf.xlu0
  %v429 = vpop.trf.xlu0
  %v430 = vpop.trf.xlu0
  %v431 = vpop.trf.xlu0
  %v432 = vpop.trf.xlu0
  %v433 = vpop.trf.xlu0
  %v434 = vpop.trf.xlu0
  %v435 = vpop.trf.xlu0
  %v436 = vpop.trf.xlu0
  %v437 = vpop.trf.xlu0
  %v438 = vpop.trf.xlu0
  %v439 = vld [vmem:[%s3] sm:$0xf]
  %441 = vset.pattern.permute.xlu0 0
  %442 = vperm.xlu0 %441, %v439
  %v443 = vpop.permute.xlu0 %442
  %v445 = vadd.f32 %v199, %v443
  %v446 = vadd.f32 %v231, %v443
  %v447 = vadd.f32 %v263, %v443
  %v448 = vadd.f32 %v295, %v443
  %v449 = vadd.f32 %v327, %v443
  %v450 = vadd.f32 %v359, %v443
  %v451 = vadd.f32 %v391, %v443
  %v452 = vadd.f32 %v423, %v443
  %v454 = vcombine.high %v68, %v68
  %v456 = vunpack.c.l.s4 1966171168
  %v457 = vunpack.c.0.s8 %v456
  %v458 = vlaneseq
  %v459 = vshrl.u32 %v458, 7
  %v460 = vsub.s32 %v457, %v459
  %v461 = vrot.slane %v68, %v460
  %v463 = vunpack.c.l.s4 1966171168
  %v464 = vunpack.c.0.s8 %v463
  %v465 = vlaneseq
  %v466 = vshrl.u32 %v465, 7
  %v467 = vsub.s32 %v464, %v466
  %v468 = vrot.slane %v454, %v467
  %v469 = vcombine.high %v461, %v461
  %v470 = vcombine.high %v468, %v468
  %v472 = vunpack.c.l.s4 1966171168
  %v473 = vunpack.c.0.s8 %v472
  %v474 = vlaneseq
  %v475 = vshrl.u32 %v474, 7
  %v476 = vsub.s32 %v473, %v475
  %v477 = vrot.slane %v461, %v476
  %v479 = vunpack.c.l.s4 1966171168
  %v480 = vunpack.c.0.s8 %v479
  %v481 = vlaneseq
  %v482 = vshrl.u32 %v481, 7
  %v483 = vsub.s32 %v480, %v482
  %v484 = vrot.slane %v468, %v483
  %v486 = vunpack.c.l.s4 1966171168
  %v487 = vunpack.c.0.s8 %v486
  %v488 = vlaneseq
  %v489 = vshrl.u32 %v488, 7
  %v490 = vsub.s32 %v487, %v489
  %v491 = vrot.slane %v469, %v490
  %v493 = vunpack.c.l.s4 1966171168
  %v494 = vunpack.c.0.s8 %v493
  %v495 = vlaneseq
  %v496 = vshrl.u32 %v495, 7
  %v497 = vsub.s32 %v494, %v496
  %v498 = vrot.slane %v470, %v497
  %v499 = vcombine.high %v477, %v477
  %v500 = vcombine.high %v484, %v484
  %v501 = vcombine.high %v491, %v491
  %v502 = vcombine.high %v498, %v498
  %vm511 = vcmp.eq.f32.partialorder %v477, 0.0
  %vm512 = vcmp.eq.f32.partialorder %v491, 0.0
  %vm513 = vcmp.eq.f32.partialorder %v499, 0.0
  %vm514 = vcmp.eq.f32.partialorder %v501, 0.0
  %vm515 = vcmp.eq.f32.partialorder %v484, 0.0
  %vm516 = vcmp.eq.f32.partialorder %v498, 0.0
  %vm517 = vcmp.eq.f32.partialorder %v500, 0.0
  %vm518 = vcmp.eq.f32.partialorder %v502, 0.0
  %v519 = vsel %vm511, 1, 0
  %v520 = vsel %vm512, 1, 0
  %v521 = vsel %vm513, 1, 0
  %v522 = vsel %vm514, 1, 0
  %v523 = vsel %vm515, 1, 0
  %v524 = vsel %vm516, 1, 0
  %v525 = vsel %vm517, 1, 0
  %v526 = vsel %vm518, 1, 0
  %v527 = vlaneseq
  %v528 = vshrl.u32 %v527, 7
  %v529 = vsub.s32 0, %v528
  %v530 = vrot.slane %v519, %v529
  %v531 = vlaneseq
  %v532 = vshrl.u32 %v531, 7
  %v533 = vsub.s32 0, %v532
  %v534 = vrot.slane %v520, %v533
  %v535 = vlaneseq
  %v536 = vshrl.u32 %v535, 7
  %v537 = vsub.s32 0, %v536
  %v538 = vrot.slane %v521, %v537
  %v539 = vlaneseq
  %v540 = vshrl.u32 %v539, 7
  %v541 = vsub.s32 0, %v540
  %v542 = vrot.slane %v522, %v541
  %v543 = vlaneseq
  %v544 = vshrl.u32 %v543, 7
  %v545 = vsub.s32 0, %v544
  %v546 = vrot.slane %v523, %v545
  %v547 = vlaneseq
  %v548 = vshrl.u32 %v547, 7
  %v549 = vsub.s32 0, %v548
  %v550 = vrot.slane %v524, %v549
  %v551 = vlaneseq
  %v552 = vshrl.u32 %v551, 7
  %v553 = vsub.s32 0, %v552
  %v554 = vrot.slane %v525, %v553
  %v555 = vlaneseq
  %v556 = vshrl.u32 %v555, 7
  %v557 = vsub.s32 0, %v556
  %v558 = vrot.slane %v526, %v557
  %vm559 = vcmp.eq.s32.totalorder %v530, 1
  %vm560 = vcmp.eq.s32.totalorder %v534, 1
  %vm561 = vcmp.eq.s32.totalorder %v538, 1
  %vm562 = vcmp.eq.s32.totalorder %v542, 1
  %vm563 = vcmp.eq.s32.totalorder %v546, 1
  %vm564 = vcmp.eq.s32.totalorder %v550, 1
  %vm565 = vcmp.eq.s32.totalorder %v554, 1
  %vm566 = vcmp.eq.s32.totalorder %v558, 1
  %v567 = vsel %vm559, -1e+30, %v445
  %v568 = vsel %vm560, -1e+30, %v446
  %v569 = vsel %vm561, -1e+30, %v447
  %v570 = vsel %vm562, -1e+30, %v448
  %v571 = vsel %vm563, -1e+30, %v449
  %v572 = vsel %vm564, -1e+30, %v450
  %v573 = vsel %vm565, -1e+30, %v451
  %v574 = vsel %vm566, -1e+30, %v452
  %vm575 = vcmask 60416
  %v576 = vsel %vm575, %v567, -inf
  %577 = vmax.xlane.f32.xlu0 %v576
  %v578 = vpop.xlane.xlu0 %577
  %v579 = vsel %vm575, %v568, -inf
  %580 = vmax.xlane.f32.xlu0 %v579
  %v581 = vpop.xlane.xlu0 %580
  %v582 = vsel %vm575, %v569, -inf
  %583 = vmax.xlane.f32.xlu0 %v582
  %v584 = vpop.xlane.xlu0 %583
  %v585 = vsel %vm575, %v570, -inf
  %586 = vmax.xlane.f32.xlu0 %v585
  %v587 = vpop.xlane.xlu0 %586
  %v588 = vsel %vm575, %v571, -inf
  %589 = vmax.xlane.f32.xlu0 %v588
  %v590 = vpop.xlane.xlu0 %589
  %v591 = vsel %vm575, %v572, -inf
  %592 = vmax.xlane.f32.xlu0 %v591
  %v593 = vpop.xlane.xlu0 %592
  %v594 = vsel %vm575, %v573, -inf
  %595 = vmax.xlane.f32.xlu0 %v594
  %v596 = vpop.xlane.xlu0 %595
  %v597 = vsel %vm575, %v574, -inf
  %598 = vmax.xlane.f32.xlu0 %v597
  %v599 = vpop.xlane.xlu0 %598
  %v600 = vsub.f32 %v567, %v578
  %v601 = vsub.f32 %v568, %v581
  %v602 = vsub.f32 %v569, %v584
  %v603 = vsub.f32 %v570, %v587
  %v604 = vsub.f32 %v571, %v590
  %v605 = vsub.f32 %v572, %v593
  %v606 = vsub.f32 %v573, %v596
  %v607 = vsub.f32 %v574, %v599
  %v608 = vmul.f32 %v600, 1.442695
  %v609 = vpow.pop %v608
  %v610 = vmul.f32 %v601, 1.442695
  %v611 = vpow.pop %v610
  %v612 = vmul.f32 %v602, 1.442695
  %v613 = vpow.pop %v612
  %v614 = vmul.f32 %v603, 1.442695
  %v615 = vpow.pop %v614
  %v616 = vmul.f32 %v604, 1.442695
  %v617 = vpow.pop %v616
  %v618 = vmul.f32 %v605, 1.442695
  %v619 = vpow.pop %v618
  %v620 = vmul.f32 %v606, 1.442695
  %v621 = vpow.pop %v620
  %v622 = vmul.f32 %v607, 1.442695
  %v623 = vpow.pop %v622
  %v624 = vsel %vm575, %v609, 0.0
  %625 = vadd.xlane.f32.xlu0 %v624
  %v626 = vpop.xlane.xlu0 %625
  %v627 = vsel %vm575, %v611, 0.0
  %628 = vadd.xlane.f32.xlu0 %v627
  %v629 = vpop.xlane.xlu0 %628
  %v630 = vsel %vm575, %v613, 0.0
  %631 = vadd.xlane.f32.xlu0 %v630
  %v632 = vpop.xlane.xlu0 %631
  %v633 = vsel %vm575, %v615, 0.0
  %634 = vadd.xlane.f32.xlu0 %v633
  %v635 = vpop.xlane.xlu0 %634
  %v636 = vsel %vm575, %v617, 0.0
  %637 = vadd.xlane.f32.xlu0 %v636
  %v638 = vpop.xlane.xlu0 %637
  %v639 = vsel %vm575, %v619, 0.0
  %640 = vadd.xlane.f32.xlu0 %v639
  %v641 = vpop.xlane.xlu0 %640
  %v642 = vsel %vm575, %v621, 0.0
  %643 = vadd.xlane.f32.xlu0 %v642
  %v644 = vpop.xlane.xlu0 %643
  %v645 = vsel %vm575, %v623, 0.0
  %646 = vadd.xlane.f32.xlu0 %v645
  %v647 = vpop.xlane.xlu0 %646
  %v648 = vrcp.pop %v626
  %v649 = vrcp.pop %v629
  %v650 = vrcp.pop %v632
  %v651 = vrcp.pop %v635
  %v652 = vrcp.pop %v638
  %v653 = vrcp.pop %v641
  %v654 = vrcp.pop %v644
  %v655 = vrcp.pop %v647
  %v656 = vmul.f32 %v609, %v648
  %v657 = vmul.f32 %v611, %v649
  %v658 = vmul.f32 %v613, %v650
  %v659 = vmul.f32 %v615, %v651
  %v660 = vmul.f32 %v617, %v652
  %v661 = vmul.f32 %v619, %v653
  %v662 = vmul.f32 %v621, %v654
  %v663 = vmul.f32 %v623, %v655
  %v664 = vsel %vm575, %v656, 0.0
  %v665 = vrot.slane %v664, 4
  %v666 = vadd.f32 %v664, %v665
  %v667 = vrot.slane %v666, 2
  %v668 = vadd.f32 %v666, %v667
  %v669 = vrot.slane %v668, 1
  %v670 = vadd.f32 %v668, %v669
  %v671 = vsel %vm575, %v657, 0.0
  %v672 = vrot.slane %v671, 4
  %v673 = vadd.f32 %v671, %v672
  %v674 = vrot.slane %v673, 2
  %v675 = vadd.f32 %v673, %v674
  %v676 = vrot.slane %v675, 1
  %v677 = vadd.f32 %v675, %v676
  %v678 = vsel %vm575, %v658, 0.0
  %v679 = vrot.slane %v678, 4
  %v680 = vadd.f32 %v678, %v679
  %v681 = vrot.slane %v680, 2
  %v682 = vadd.f32 %v680, %v681
  %v683 = vrot.slane %v682, 1
  %v684 = vadd.f32 %v682, %v683
  %v685 = vsel %vm575, %v659, 0.0
  %v686 = vrot.slane %v685, 4
  %v687 = vadd.f32 %v685, %v686
  %v688 = vrot.slane %v687, 2
  %v689 = vadd.f32 %v687, %v688
  %v690 = vrot.slane %v689, 1
  %v691 = vadd.f32 %v689, %v690
  %v692 = vsel %vm575, %v660, 0.0
  %v693 = vrot.slane %v692, 4
  %v694 = vadd.f32 %v692, %v693
  %v695 = vrot.slane %v694, 2
  %v696 = vadd.f32 %v694, %v695
  %v697 = vrot.slane %v696, 1
  %v698 = vadd.f32 %v696, %v697
  %v699 = vsel %vm575, %v661, 0.0
  %v700 = vrot.slane %v699, 4
  %v701 = vadd.f32 %v699, %v700
  %v702 = vrot.slane %v701, 2
  %v703 = vadd.f32 %v701, %v702
  %v704 = vrot.slane %v703, 1
  %v705 = vadd.f32 %v703, %v704
  %v706 = vsel %vm575, %v662, 0.0
  %v707 = vrot.slane %v706, 4
  %v708 = vadd.f32 %v706, %v707
  %v709 = vrot.slane %v708, 2
  %v710 = vadd.f32 %v708, %v709
  %v711 = vrot.slane %v710, 1
  %v712 = vadd.f32 %v710, %v711
  %v713 = vsel %vm575, %v663, 0.0
  %v714 = vrot.slane %v713, 4
  %v715 = vadd.f32 %v713, %v714
  %v716 = vrot.slane %v715, 2
  %v717 = vadd.f32 %v715, %v716
  %v718 = vrot.slane %v717, 1
  %v719 = vadd.f32 %v717, %v718
  %v720 = vmul.f32 %v670, 0.25
  %v721 = vmul.f32 %v677, 0.25
  %v722 = vmul.f32 %v684, 0.25
  %v723 = vmul.f32 %v691, 0.25
  %v724 = vmul.f32 %v698, 0.25
  %v725 = vmul.f32 %v705, 0.25
  %v726 = vmul.f32 %v712, 0.25
  %v727 = vmul.f32 %v719, 0.25
  %v728 = vpack.c.bf16 %v720, %v720
  %v729 = vpack.c.bf16 %v721, %v721
  %v730 = vpack.c.bf16 %v722, %v722
  %v731 = vpack.c.bf16 %v723, %v723
  %v732 = vpack.c.bf16 %v724, %v724
  %v733 = vpack.c.bf16 %v725, %v725
  %v734 = vpack.c.bf16 %v726, %v726
  %v735 = vpack.c.bf16 %v727, %v727
  %vm736 = vcmask 64512
  %v738 = vsel %vm736, %v728, 0
  %vm740 = vcmask 1043456
  %v742 = vsel %vm740, %v60, 0
  %744 = vmatprep.subr.bf16.mxu0 0
  %745 = vmatpush1.bf16.msra.mxu0 %v742
  %746 = vmatprep.subr.bf16.mxu0 0
  %747 = vmatpush1.bf16.msra.mxu0 0
  %748 = vmatprep.subr.bf16.mxu0 0
  %749 = vmatpush1.bf16.msra.mxu0 0
  %750 = vmatprep.subr.bf16.mxu0 0
  %751 = vmatpush1.bf16.msra.mxu0 0
  %752 = vmatprep.subr.bf16.mxu0 0
  %753 = vmatpush1.bf16.msra.mxu0 0
  %754 = vmatprep.subr.bf16.mxu0 0
  %755 = vmatpush1.bf16.msra.mxu0 0
  %756 = vmatprep.subr.bf16.mxu0 0
  %757 = vmatpush1.bf16.msra.mxu0 0
  %758 = vmatprep.subr.bf16.mxu0 0
  %759 = vmatpush1.bf16.msra.mxu0 0
  %760 = vmatprep.subr.bf16.mxu0 0
  %761 = vmatpush1.bf16.msra.mxu0 0
  %762 = vmatprep.subr.bf16.mxu0 0
  %763 = vmatpush1.bf16.msra.mxu0 0
  %764 = vmatprep.subr.bf16.mxu0 0
  %765 = vmatpush1.bf16.msra.mxu0 0
  %766 = vmatprep.subr.bf16.mxu0 0
  %767 = vmatpush1.bf16.msra.mxu0 0
  %768 = vmatprep.subr.bf16.mxu0 0
  %769 = vmatpush1.bf16.msra.mxu0 0
  %770 = vmatprep.subr.bf16.mxu0 0
  %771 = vmatpush1.bf16.msra.mxu0 0
  %772 = vmatprep.subr.bf16.mxu0 0
  %773 = vmatpush1.bf16.msra.mxu0 0
  %774 = vmatprep.subr.bf16.mxu0 0
  %775 = vmatpush1.bf16.msra.mxu0 0
  %776 = vmatprep.mubr.bf16.mxu0 0
  %777 = vmatmul.mubr.bf16.gmra.mrb[0].mxu0 %v738
  %v778 = vpop.f32.mrb[0].mxu0
  %v779 = vadd.f32 0.0, %v778
  %v780 = vpop.f32.mrb[0].mxu0
  %v781 = vpop.f32.mrb[0].mxu0
  %v782 = vpop.f32.mrb[0].mxu0
  %783 = vdwg.mxu0
  %v785 = vsel %vm736, %v729, 0
  %v788 = vsel %vm740, %v61, 0
  %790 = vmatprep.subr.bf16.mxu0 0
  %791 = vmatpush1.bf16.msra.mxu0 %v788
  %792 = vmatprep.subr.bf16.mxu0 0
  %793 = vmatpush1.bf16.msra.mxu0 0
  %794 = vmatprep.subr.bf16.mxu0 0
  %795 = vmatpush1.bf16.msra.mxu0 0
  %796 = vmatprep.subr.bf16.mxu0 0
  %797 = vmatpush1.bf16.msra.mxu0 0
  %798 = vmatprep.subr.bf16.mxu0 0
  %799 = vmatpush1.bf16.msra.mxu0 0
  %800 = vmatprep.subr.bf16.mxu0 0
  %801 = vmatpush1.bf16.msra.mxu0 0
  %802 = vmatprep.subr.bf16.mxu0 0
  %803 = vmatpush1.bf16.msra.mxu0 0
  %804 = vmatprep.subr.bf16.mxu0 0
  %805 = vmatpush1.bf16.msra.mxu0 0
  %806 = vmatprep.subr.bf16.mxu0 0
  %807 = vmatpush1.bf16.msra.mxu0 0
  %808 = vmatprep.subr.bf16.mxu0 0
  %809 = vmatpush1.bf16.msra.mxu0 0
  %810 = vmatprep.subr.bf16.mxu0 0
  %811 = vmatpush1.bf16.msra.mxu0 0
  %812 = vmatprep.subr.bf16.mxu0 0
  %813 = vmatpush1.bf16.msra.mxu0 0
  %814 = vmatprep.subr.bf16.mxu0 0
  %815 = vmatpush1.bf16.msra.mxu0 0
  %816 = vmatprep.subr.bf16.mxu0 0
  %817 = vmatpush1.bf16.msra.mxu0 0
  %818 = vmatprep.subr.bf16.mxu0 0
  %819 = vmatpush1.bf16.msra.mxu0 0
  %820 = vmatprep.subr.bf16.mxu0 0
  %821 = vmatpush1.bf16.msra.mxu0 0
  %822 = vmatprep.mubr.bf16.mxu0 0
  %823 = vmatmul.mubr.bf16.gmra.mrb[0].mxu0 %v785
  %v824 = vpop.f32.mrb[0].mxu0
  %v825 = vadd.f32 0.0, %v824
  %v826 = vpop.f32.mrb[0].mxu0
  %v827 = vpop.f32.mrb[0].mxu0
  %v828 = vpop.f32.mrb[0].mxu0
  %829 = vdwg.mxu0
  %v831 = vsel %vm736, %v730, 0
  %v834 = vsel %vm740, %v62, 0
  %836 = vmatprep.subr.bf16.mxu0 0
  %837 = vmatpush1.bf16.msra.mxu0 %v834
  %838 = vmatprep.subr.bf16.mxu0 0
  %839 = vmatpush1.bf16.msra.mxu0 0
  %840 = vmatprep.subr.bf16.mxu0 0
  %841 = vmatpush1.bf16.msra.mxu0 0
  %842 = vmatprep.subr.bf16.mxu0 0
  %843 = vmatpush1.bf16.msra.mxu0 0
  %844 = vmatprep.subr.bf16.mxu0 0
  %845 = vmatpush1.bf16.msra.mxu0 0
  %846 = vmatprep.subr.bf16.mxu0 0
  %847 = vmatpush1.bf16.msra.mxu0 0
  %848 = vmatprep.subr.bf16.mxu0 0
  %849 = vmatpush1.bf16.msra.mxu0 0
  %850 = vmatprep.subr.bf16.mxu0 0
  %851 = vmatpush1.bf16.msra.mxu0 0
  %852 = vmatprep.subr.bf16.mxu0 0
  %853 = vmatpush1.bf16.msra.mxu0 0
  %854 = vmatprep.subr.bf16.mxu0 0
  %855 = vmatpush1.bf16.msra.mxu0 0
  %856 = vmatprep.subr.bf16.mxu0 0
  %857 = vmatpush1.bf16.msra.mxu0 0
  %858 = vmatprep.subr.bf16.mxu0 0
  %859 = vmatpush1.bf16.msra.mxu0 0
  %860 = vmatprep.subr.bf16.mxu0 0
  %861 = vmatpush1.bf16.msra.mxu0 0
  %862 = vmatprep.subr.bf16.mxu0 0
  %863 = vmatpush1.bf16.msra.mxu0 0
  %864 = vmatprep.subr.bf16.mxu0 0
  %865 = vmatpush1.bf16.msra.mxu0 0
  %866 = vmatprep.subr.bf16.mxu0 0
  %867 = vmatpush1.bf16.msra.mxu0 0
  %868 = vmatprep.mubr.bf16.mxu0 0
  %869 = vmatmul.mubr.bf16.gmra.mrb[0].mxu0 %v831
  %v870 = vpop.f32.mrb[0].mxu0
  %v871 = vadd.f32 0.0, %v870
  %v872 = vpop.f32.mrb[0].mxu0
  %v873 = vpop.f32.mrb[0].mxu0
  %v874 = vpop.f32.mrb[0].mxu0
  %875 = vdwg.mxu0
  %v877 = vsel %vm736, %v731, 0
  %v880 = vsel %vm740, %v63, 0
  %882 = vmatprep.subr.bf16.mxu0 0
  %883 = vmatpush1.bf16.msra.mxu0 %v880
  %884 = vmatprep.subr.bf16.mxu0 0
  %885 = vmatpush1.bf16.msra.mxu0 0
  %886 = vmatprep.subr.bf16.mxu0 0
  %887 = vmatpush1.bf16.msra.mxu0 0
  %888 = vmatprep.subr.bf16.mxu0 0
  %889 = vmatpush1.bf16.msra.mxu0 0
  %890 = vmatprep.subr.bf16.mxu0 0
  %891 = vmatpush1.bf16.msra.mxu0 0
  %892 = vmatprep.subr.bf16.mxu0 0
  %893 = vmatpush1.bf16.msra.mxu0 0
  %894 = vmatprep.subr.bf16.mxu0 0
  %895 = vmatpush1.bf16.msra.mxu0 0
  %896 = vmatprep.subr.bf16.mxu0 0
  %897 = vmatpush1.bf16.msra.mxu0 0
  %898 = vmatprep.subr.bf16.mxu0 0
  %899 = vmatpush1.bf16.msra.mxu0 0
  %900 = vmatprep.subr.bf16.mxu0 0
  %901 = vmatpush1.bf16.msra.mxu0 0
  %902 = vmatprep.subr.bf16.mxu0 0
  %903 = vmatpush1.bf16.msra.mxu0 0
  %904 = vmatprep.subr.bf16.mxu0 0
  %905 = vmatpush1.bf16.msra.mxu0 0
  %906 = vmatprep.subr.bf16.mxu0 0
  %907 = vmatpush1.bf16.msra.mxu0 0
  %908 = vmatprep.subr.bf16.mxu0 0
  %909 = vmatpush1.bf16.msra.mxu0 0
  %910 = vmatprep.subr.bf16.mxu0 0
  %911 = vmatpush1.bf16.msra.mxu0 0
  %912 = vmatprep.subr.bf16.mxu0 0
  %913 = vmatpush1.bf16.msra.mxu0 0
  %914 = vmatprep.mubr.bf16.mxu0 0
  %915 = vmatmul.mubr.bf16.gmra.mrb[0].mxu0 %v877
  %v916 = vpop.f32.mrb[0].mxu0
  %v917 = vadd.f32 0.0, %v916
  %v918 = vpop.f32.mrb[0].mxu0
  %v919 = vpop.f32.mrb[0].mxu0
  %v920 = vpop.f32.mrb[0].mxu0
  %921 = vdwg.mxu0
  %v923 = vsel %vm736, %v732, 0
  %v926 = vsel %vm740, %v64, 0
  %928 = vmatprep.subr.bf16.mxu0 0
  %929 = vmatpush1.bf16.msra.mxu0 %v926
  %930 = vmatprep.subr.bf16.mxu0 0
  %931 = vmatpush1.bf16.msra.mxu0 0
  %932 = vmatprep.subr.bf16.mxu0 0
  %933 = vmatpush1.bf16.msra.mxu0 0
  %934 = vmatprep.subr.bf16.mxu0 0
  %935 = vmatpush1.bf16.msra.mxu0 0
  %936 = vmatprep.subr.bf16.mxu0 0
  %937 = vmatpush1.bf16.msra.mxu0 0
  %938 = vmatprep.subr.bf16.mxu0 0
  %939 = vmatpush1.bf16.msra.mxu0 0
  %940 = vmatprep.subr.bf16.mxu0 0
  %941 = vmatpush1.bf16.msra.mxu0 0
  %942 = vmatprep.subr.bf16.mxu0 0
  %943 = vmatpush1.bf16.msra.mxu0 0
  %944 = vmatprep.subr.bf16.mxu0 0
  %945 = vmatpush1.bf16.msra.mxu0 0
  %946 = vmatprep.subr.bf16.mxu0 0
  %947 = vmatpush1.bf16.msra.mxu0 0
  %948 = vmatprep.subr.bf16.mxu0 0
  %949 = vmatpush1.bf16.msra.mxu0 0
  %950 = vmatprep.subr.bf16.mxu0 0
  %951 = vmatpush1.bf16.msra.mxu0 0
  %952 = vmatprep.subr.bf16.mxu0 0
  %953 = vmatpush1.bf16.msra.mxu0 0
  %954 = vmatprep.subr.bf16.mxu0 0
  %955 = vmatpush1.bf16.msra.mxu0 0
  %956 = vmatprep.subr.bf16.mxu0 0
  %957 = vmatpush1.bf16.msra.mxu0 0
  %958 = vmatprep.subr.bf16.mxu0 0
  %959 = vmatpush1.bf16.msra.mxu0 0
  %960 = vmatprep.mubr.bf16.mxu0 0
  %961 = vmatmul.mubr.bf16.gmra.mrb[0].mxu0 %v923
  %v962 = vpop.f32.mrb[0].mxu0
  %v963 = vadd.f32 0.0, %v962
  %v964 = vpop.f32.mrb[0].mxu0
  %v965 = vpop.f32.mrb[0].mxu0
  %v966 = vpop.f32.mrb[0].mxu0
  %967 = vdwg.mxu0
  %v969 = vsel %vm736, %v733, 0
  %v972 = vsel %vm740, %v65, 0
  %974 = vmatprep.subr.bf16.mxu0 0
  %975 = vmatpush1.bf16.msra.mxu0 %v972
  %976 = vmatprep.subr.bf16.mxu0 0
  %977 = vmatpush1.bf16.msra.mxu0 0
  %978 = vmatprep.subr.bf16.mxu0 0
  %979 = vmatpush1.bf16.msra.mxu0 0
  %980 = vmatprep.subr.bf16.mxu0 0
  %981 = vmatpush1.bf16.msra.mxu0 0
  %982 = vmatprep.subr.bf16.mxu0 0
  %983 = vmatpush1.bf16.msra.mxu0 0
  %984 = vmatprep.subr.bf16.mxu0 0
  %985 = vmatpush1.bf16.msra.mxu0 0
  %986 = vmatprep.subr.bf16.mxu0 0
  %987 = vmatpush1.bf16.msra.mxu0 0
  %988 = vmatprep.subr.bf16.mxu0 0
  %989 = vmatpush1.bf16.msra.mxu0 0
  %990 = vmatprep.subr.bf16.mxu0 0
  %991 = vmatpush1.bf16.msra.mxu0 0
  %992 = vmatprep.subr.bf16.mxu0 0
  %993 = vmatpush1.bf16.msra.mxu0 0
  %994 = vmatprep.subr.bf16.mxu0 0
  %995 = vmatpush1.bf16.msra.mxu0 0
  %996 = vmatprep.subr.bf16.mxu0 0
  %997 = vmatpush1.bf16.msra.mxu0 0
  %998 = vmatprep.subr.bf16.mxu0 0
  %999 = vmatpush1.bf16.msra.mxu0 0
  %1000 = vmatprep.subr.bf16.mxu0 0
  %1001 = vmatpush1.bf16.msra.mxu0 0
  %1002 = vmatprep.subr.bf16.mxu0 0
  %1003 = vmatpush1.bf16.msra.mxu0 0
  %1004 = vmatprep.subr.bf16.mxu0 0
  %1005 = vmatpush1.bf16.msra.mxu0 0
  %1006 = vmatprep.mubr.bf16.mxu0 0
  %1007 = vmatmul.mubr.bf16.gmra.mrb[0].mxu0 %v969
  %v1008 = vpop.f32.mrb[0].mxu0
  %v1009 = vadd.f32 0.0, %v1008
  %v1010 = vpop.f32.mrb[0].mxu0
  %v1011 = vpop.f32.mrb[0].mxu0
  %v1012 = vpop.f32.mrb[0].mxu0
  %1013 = vdwg.mxu0
  %v1015 = vsel %vm736, %v734, 0
  %v1018 = vsel %vm740, %v66, 0
  %1020 = vmatprep.subr.bf16.mxu0 0
  %1021 = vmatpush1.bf16.msra.mxu0 %v1018
  %1022 = vmatprep.subr.bf16.mxu0 0
  %1023 = vmatpush1.bf16.msra.mxu0 0
  %1024 = vmatprep.subr.bf16.mxu0 0
  %1025 = vmatpush1.bf16.msra.mxu0 0
  %1026 = vmatprep.subr.bf16.mxu0 0
  %1027 = vmatpush1.bf16.msra.mxu0 0
  %1028 = vmatprep.subr.bf16.mxu0 0
  %1029 = vmatpush1.bf16.msra.mxu0 0
  %1030 = vmatprep.subr.bf16.mxu0 0
  %1031 = vmatpush1.bf16.msra.mxu0 0
  %1032 = vmatprep.subr.bf16.mxu0 0
  %1033 = vmatpush1.bf16.msra.mxu0 0
  %1034 = vmatprep.subr.bf16.mxu0 0
  %1035 = vmatpush1.bf16.msra.mxu0 0
  %1036 = vmatprep.subr.bf16.mxu0 0
  %1037 = vmatpush1.bf16.msra.mxu0 0
  %1038 = vmatprep.subr.bf16.mxu0 0
  %1039 = vmatpush1.bf16.msra.mxu0 0
  %1040 = vmatprep.subr.bf16.mxu0 0
  %1041 = vmatpush1.bf16.msra.mxu0 0
  %1042 = vmatprep.subr.bf16.mxu0 0
  %1043 = vmatpush1.bf16.msra.mxu0 0
  %1044 = vmatprep.subr.bf16.mxu0 0
  %1045 = vmatpush1.bf16.msra.mxu0 0
  %1046 = vmatprep.subr.bf16.mxu0 0
  %1047 = vmatpush1.bf16.msra.mxu0 0
  %1048 = vmatprep.subr.bf16.mxu0 0
  %1049 = vmatpush1.bf16.msra.mxu0 0
  %1050 = vmatprep.subr.bf16.mxu0 0
  %1051 = vmatpush1.bf16.msra.mxu0 0
  %1052 = vmatprep.mubr.bf16.mxu0 0
  %1053 = vmatmul.mubr.bf16.gmra.mrb[0].mxu0 %v1015
  %v1054 = vpop.f32.mrb[0].mxu0
  %v1055 = vadd.f32 0.0, %v1054
  %v1056 = vpop.f32.mrb[0].mxu0
  %v1057 = vpop.f32.mrb[0].mxu0
  %v1058 = vpop.f32.mrb[0].mxu0
  %1059 = vdwg.mxu0
  %v1061 = vsel %vm736, %v735, 0
  %v1064 = vsel %vm740, %v67, 0
  %1066 = vmatprep.subr.bf16.mxu0 0
  %1067 = vmatpush1.bf16.msra.mxu0 %v1064
  %1068 = vmatprep.subr.bf16.mxu0 0
  %1069 = vmatpush1.bf16.msra.mxu0 0
  %1070 = vmatprep.subr.bf16.mxu0 0
  %1071 = vmatpush1.bf16.msra.mxu0 0
  %1072 = vmatprep.subr.bf16.mxu0 0
  %1073 = vmatpush1.bf16.msra.mxu0 0
  %1074 = vmatprep.subr.bf16.mxu0 0
  %1075 = vmatpush1.bf16.msra.mxu0 0
  %1076 = vmatprep.subr.bf16.mxu0 0
  %1077 = vmatpush1.bf16.msra.mxu0 0
  %1078 = vmatprep.subr.bf16.mxu0 0
  %1079 = vmatpush1.bf16.msra.mxu0 0
  %1080 = vmatprep.subr.bf16.mxu0 0
  %1081 = vmatpush1.bf16.msra.mxu0 0
  %1082 = vmatprep.subr.bf16.mxu0 0
  %1083 = vmatpush1.bf16.msra.mxu0 0
  %1084 = vmatprep.subr.bf16.mxu0 0
  %1085 = vmatpush1.bf16.msra.mxu0 0
  %1086 = vmatprep.subr.bf16.mxu0 0
  %1087 = vmatpush1.bf16.msra.mxu0 0
  %1088 = vmatprep.subr.bf16.mxu0 0
  %1089 = vmatpush1.bf16.msra.mxu0 0
  %1090 = vmatprep.subr.bf16.mxu0 0
  %1091 = vmatpush1.bf16.msra.mxu0 0
  %1092 = vmatprep.subr.bf16.mxu0 0
  %1093 = vmatpush1.bf16.msra.mxu0 0
  %1094 = vmatprep.subr.bf16.mxu0 0
  %1095 = vmatpush1.bf16.msra.mxu0 0
  %1096 = vmatprep.subr.bf16.mxu0 0
  %1097 = vmatpush1.bf16.msra.mxu0 0
  %1098 = vmatprep.mubr.bf16.mxu0 0
  %1099 = vmatmul.mubr.bf16.gmra.mrb[0].mxu0 %v1061
  %v1100 = vpop.f32.mrb[0].mxu0
  %v1101 = vadd.f32 0.0, %v1100
  %v1102 = vpop.f32.mrb[0].mxu0
  %v1103 = vpop.f32.mrb[0].mxu0
  %v1104 = vpop.f32.mrb[0].mxu0
  %1105 = vdwg.mxu0
  %v1106 = vpack.c.bf16 %v779, %v779
  %v1107 = vpack.c.bf16 %v825, %v825
  %v1108 = vpack.c.bf16 %v871, %v871
  %v1109 = vpack.c.bf16 %v917, %v917
  %v1110 = vpack.c.bf16 %v963, %v963
  %v1111 = vpack.c.bf16 %v1009, %v1009
  %v1112 = vpack.c.bf16 %v1055, %v1055
  %v1113 = vpack.c.bf16 %v1101, %v1101
  %v1114 = vld [vmem:[%s4] sm:$0xf]
  %v1115 = vld [vmem:[%s4 + $0x4] sm:$0xf]
  %v1116 = vld [vmem:[%s4 + $0x8] sm:$0xf]
  %v1117 = vld [vmem:[%s4 + $0xc] sm:$0xf]
  %v1118 = vld [vmem:[%s5] sm:$0x1]
  %v1120 = vlaneseq
  %v1121 = vshrl.u32 %v1120, 7
  %v1122 = vsub.s32 0, %v1121
  %v1123 = vrot.slane %v1118, %v1122
  %v1133 = vunpack.c.l.b16 %v1106
  %v1134 = vunpack.c.l.b16 %v1107
  %v1135 = vunpack.c.l.b16 %v1108
  %v1136 = vunpack.c.l.b16 %v1109
  %v1137 = vunpack.c.l.b16 %v1110
  %v1138 = vunpack.c.l.b16 %v1111
  %v1139 = vunpack.c.l.b16 %v1112
  %v1140 = vunpack.c.l.b16 %v1113
  %v1141 = vrot.slane %v1134, 7
  %vm1142 = vcmask 1041409
  %v1143 = vsel %vm1142, %v1141, %v1133
  %v1144 = vrot.slane %v1135, 6
  %vm1145 = vcmask 1042434
  %v1146 = vsel %vm1145, %v1144, %v1143
  %v1147 = vrot.slane %v1136, 5
  %vm1148 = vcmask 1043459
  %v1149 = vsel %vm1148, %v1147, %v1146
  %v1150 = vrot.slane %v1137, 4
  %vm1151 = vcmask 1044484
  %v1152 = vsel %vm1151, %v1150, %v1149
  %v1153 = vrot.slane %v1138, 3
  %vm1154 = vcmask 1045509
  %v1155 = vsel %vm1154, %v1153, %v1152
  %v1156 = vrot.slane %v1139, 2
  %vm1157 = vcmask 1046534
  %v1158 = vsel %vm1157, %v1156, %v1155
  %v1159 = vrot.slane %v1140, 1
  %vm1160 = vcmask 1047559
  %v1161 = vsel %vm1160, %v1159, %v1158
  %v1162 = vpack.c.b16 %v1161, %v1161
  %v1167 = vunpack.c.l.b16 %v1114
  %v1168 = vunpack.c.l.b16 %v1115
  %v1169 = vunpack.c.l.b16 %v1116
  %v1170 = vunpack.c.l.b16 %v1117
  %v1171 = vpack.c.b16 %v1168, %v1167
  %v1172 = vpack.c.b16 %v1170, %v1169
  %v1176 = vsel %vm105, %v1162, 0
  %1178 = vmatprep.subr.bf16.mxu0 0
  %1179 = vmatpush1.bf16.msra.mxu0 %v1171
  %1180 = vmatprep.subr.bf16.mxu0 0
  %1181 = vmatpush1.bf16.msra.mxu0 %v1172
  %1182 = vmatprep.subr.bf16.mxu0 0
  %1183 = vmatpush1.bf16.msra.mxu0 0
  %1184 = vmatprep.subr.bf16.mxu0 0
  %1185 = vmatpush1.bf16.msra.mxu0 0
  %1186 = vmatprep.subr.bf16.mxu0 0
  %1187 = vmatpush1.bf16.msra.mxu0 0
  %1188 = vmatprep.subr.bf16.mxu0 0
  %1189 = vmatpush1.bf16.msra.mxu0 0
  %1190 = vmatprep.subr.bf16.mxu0 0
  %1191 = vmatpush1.bf16.msra.mxu0 0
  %1192 = vmatprep.subr.bf16.mxu0 0
  %1193 = vmatpush1.bf16.msra.mxu0 0
  %1194 = vmatprep.subr.bf16.mxu0 0
  %1195 = vmatpush1.bf16.msra.mxu0 0
  %1196 = vmatprep.subr.bf16.mxu0 0
  %1197 = vmatpush1.bf16.msra.mxu0 0
  %1198 = vmatprep.subr.bf16.mxu0 0
  %1199 = vmatpush1.bf16.msra.mxu0 0
  %1200 = vmatprep.subr.bf16.mxu0 0
  %1201 = vmatpush1.bf16.msra.mxu0 0
  %1202 = vmatprep.subr.bf16.mxu0 0
  %1203 = vmatpush1.bf16.msra.mxu0 0
  %1204 = vmatprep.subr.bf16.mxu0 0
  %1205 = vmatpush1.bf16.msra.mxu0 0
  %1206 = vmatprep.subr.bf16.mxu0 0
  %1207 = vmatpush1.bf16.msra.mxu0 0
  %1208 = vmatprep.subr.bf16.mxu0 0
  %1209 = vmatpush1.bf16.msra.mxu0 0
  %1210 = vmatprep.mubr.bf16.mxu0 0
  %1211 = vmatmul.mubr.bf16.gmra.mrb[0].mxu0 %v1176
  %v1212 = vpop.f32.mrb[0].mxu0
  %v1213 = vadd.f32 %v1123, %v1212
  %v1214 = vpop.f32.mrb[0].mxu0
  %v1215 = vpop.f32.mrb[0].mxu0
  %v1216 = vpop.f32.mrb[0].mxu0
  %1217 = vdwg.mxu0
  %v1218 = vld [vmem:[%s6] sm:$0x1]
  %v1219 = vld [vmem:[%s7] sm:$0x1]
  %v1220 = vsel %vm105, %v1213, 0.0
  %1221 = vadd.xlane.f32.xlu0 %v1220
  %v1222 = vpop.xlane.xlu0 %1221
  %v1223 = vrcp.pop 32.0
  %v1224 = vmul.f32 %v1222, %v1223
  %v1225 = vsub.f32 %v1213, %v1224
  %v1226 = vmul.f32 %v1225, %v1225
  %v1227 = vsel %vm105, %v1226, 0.0
  %1228 = vadd.xlane.f32.xlu0 %v1227
  %v1229 = vpop.xlane.xlu0 %1228
  %v1230 = vmul.f32 %v1229, %v1223
  %v1231 = vadd.f32 %v1230, 1e-05
  %v1232 = vrsqrt.pop %v1231
  %v1233 = vmul.f32 %v1225, %v1232
  %v1235 = vlaneseq
  %v1236 = vshrl.u32 %v1235, 7
  %v1237 = vsub.s32 0, %v1236
  %v1238 = vrot.slane %v1218, %v1237
  %v1240 = vmul.f32 %v1233, %v1238
  %v1242 = vlaneseq
  %v1243 = vshrl.u32 %v1242, 7
  %v1244 = vsub.s32 0, %v1243
  %v1245 = vrot.slane %v1219, %v1244
  %v1247 = vadd.f32 %v1240, %v1245
  %v1248 = vmul.f32 %v1247, 0.5
  %v1249 = vmul.f32 %v1247, 0.70710677
  %v1250 = verf.f32.pop %v1249
  %v1251 = vadd.f32 %v1250, 1.0
  %v1252 = vmul.f32 %v1248, %v1251
  %v1261 = vrot.slane %v825, 7
  %v1262 = vsel %vm1142, %v1261, %v779
  %v1263 = vrot.slane %v871, 6
  %v1264 = vsel %vm1145, %v1263, %v1262
  %v1265 = vrot.slane %v917, 5
  %v1266 = vsel %vm1148, %v1265, %v1264
  %v1267 = vrot.slane %v963, 4
  %v1268 = vsel %vm1151, %v1267, %v1266
  %v1269 = vrot.slane %v1009, 3
  %v1270 = vsel %vm1154, %v1269, %v1268
  %v1271 = vrot.slane %v1055, 2
  %v1272 = vsel %vm1157, %v1271, %v1270
  %v1273 = vrot.slane %v1101, 1
  %v1274 = vsel %vm1160, %v1273, %v1272
  %v1276 = vadd.f32 %v1252, %v1274
  %1278 = vrot.lane.b32.xlu0 %v1213, 96
  %v1279 = vpop.permute.xlu0 %1278
  %v1281 = vsel %vm105, %v1279, 0.0
  %1282 = vadd.xlane.f32.xlu0 %v1281
  %v1283 = vpop.xlane.xlu0 %1282
  %v1284 = vmul.f32 %v1283, %v1223
  %v1285 = vsub.f32 %v1213, %v1284
  %v1286 = vmul.f32 %v1285, %v1285
  %1288 = vrot.lane.b32.xlu0 %v1286, 96
  %v1289 = vpop.permute.xlu0 %1288
  %v1291 = vsel %vm105, %v1289, 0.0
  %1292 = vadd.xlane.f32.xlu0 %v1291
  %v1293 = vpop.xlane.xlu0 %1292
  %v1294 = vmul.f32 %v1293, %v1223
  %v1295 = vadd.f32 %v1294, 1e-05
  %v1296 = vrsqrt.pop %v1295
  %v1297 = vmul.f32 %v1285, %v1296
  %v1298 = vmul.f32 %v1297, %v1238
  %v1299 = vadd.f32 %v1298, %v1245
  %v1300 = vmul.f32 %v1299, 0.5
  %v1301 = vmul.f32 %v1299, 0.70710677
  %v1302 = verf.f32.pop %v1301
  %v1303 = vadd.f32 %v1302, 1.0
  %v1304 = vmul.f32 %v1300, %v1303
  %1305 = vrot.lane.b32.xlu0 %v1274, 32
  %v1306 = vpop.permute.xlu0 %1305
  %v1308 = vadd.f32 %v1304, %v1306
  %v1309 = vpack.c.bf16 %v1276, %v1276
  %v1310 = vld [vmem:[%s8] sm:$0xf]
  %v1311 = vld [vmem:[%s8 + $0x4] sm:$0xf]
  %v1312 = vld [vmem:[%s8 + $0x8] sm:$0xf]
  %v1313 = vld [vmem:[%s8 + $0xc] sm:$0xf]
  %v1314 = vld [vmem:[%s9] sm:$0x1]
  %v1316 = vlaneseq
  %v1317 = vshrl.u32 %v1316, 7
  %v1318 = vsub.s32 0, %v1317
  %v1319 = vrot.slane %v1314, %v1318
  %v1325 = vunpack.c.l.b16 %v1310
  %v1326 = vunpack.c.l.b16 %v1311
  %v1327 = vunpack.c.l.b16 %v1312
  %v1328 = vunpack.c.l.b16 %v1313
  %v1329 = vpack.c.b16 %v1326, %v1325
  %v1330 = vpack.c.b16 %v1328, %v1327
  %v1334 = vsel %vm105, %v1309, 0
  %1336 = vmatprep.subr.bf16.mxu0 0
  %1337 = vmatpush1.bf16.msra.mxu0 %v1329
  %1338 = vmatprep.subr.bf16.mxu0 0
  %1339 = vmatpush1.bf16.msra.mxu0 %v1330
  %1340 = vmatprep.subr.bf16.mxu0 0
  %1341 = vmatpush1.bf16.msra.mxu0 0
  %1342 = vmatprep.subr.bf16.mxu0 0
  %1343 = vmatpush1.bf16.msra.mxu0 0
  %1344 = vmatprep.subr.bf16.mxu0 0
  %1345 = vmatpush1.bf16.msra.mxu0 0
  %1346 = vmatprep.subr.bf16.mxu0 0
  %1347 = vmatpush1.bf16.msra.mxu0 0
  %1348 = vmatprep.subr.bf16.mxu0 0
  %1349 = vmatpush1.bf16.msra.mxu0 0
  %1350 = vmatprep.subr.bf16.mxu0 0
  %1351 = vmatpush1.bf16.msra.mxu0 0
  %1352 = vmatprep.subr.bf16.mxu0 0
  %1353 = vmatpush1.bf16.msra.mxu0 0
  %1354 = vmatprep.subr.bf16.mxu0 0
  %1355 = vmatpush1.bf16.msra.mxu0 0
  %1356 = vmatprep.subr.bf16.mxu0 0
  %1357 = vmatpush1.bf16.msra.mxu0 0
  %1358 = vmatprep.subr.bf16.mxu0 0
  %1359 = vmatpush1.bf16.msra.mxu0 0
  %1360 = vmatprep.subr.bf16.mxu0 0
  %1361 = vmatpush1.bf16.msra.mxu0 0
  %1362 = vmatprep.subr.bf16.mxu0 0
  %1363 = vmatpush1.bf16.msra.mxu0 0
  %1364 = vmatprep.subr.bf16.mxu0 0
  %1365 = vmatpush1.bf16.msra.mxu0 0
  %1366 = vmatprep.subr.bf16.mxu0 0
  %1367 = vmatpush1.bf16.msra.mxu0 0
  %1368 = vmatprep.mubr.bf16.mxu0 0
  %1369 = vmatmul.mubr.bf16.gmra.mrb[0].mxu0 %v1334
  %v1370 = vpop.f32.mrb[0].mxu0
  %v1371 = vadd.f32 %v1319, %v1370
  %v1372 = vpop.f32.mrb[0].mxu0
  %v1373 = vpop.f32.mrb[0].mxu0
  %v1374 = vpop.f32.mrb[0].mxu0
  %1375 = vdwg.mxu0
  %v1376 = vld [vmem:[%s10] sm:$0x1]
  %v1377 = vld [vmem:[%s11] sm:$0x1]
  %v1378 = vsel %vm105, %v1371, 0.0
  %1379 = vadd.xlane.f32.xlu0 %v1378
  %v1380 = vpop.xlane.xlu0 %1379
  %v1381 = vmul.f32 %v1380, %v1223
  %v1382 = vsub.f32 %v1371, %v1381
  %v1383 = vmul.f32 %v1382, %v1382
  %v1384 = vsel %vm105, %v1383, 0.0
  %1385 = vadd.xlane.f32.xlu0 %v1384
  %v1386 = vpop.xlane.xlu0 %1385
  %v1387 = vmul.f32 %v1386, %v1223
  %v1388 = vadd.f32 %v1387, 1e-05
  %v1389 = vrsqrt.pop %v1388
  %v1390 = vmul.f32 %v1382, %v1389
  %v1392 = vlaneseq
  %v1393 = vshrl.u32 %v1392, 7
  %v1394 = vsub.s32 0, %v1393
  %v1395 = vrot.slane %v1376, %v1394
  %v1397 = vmul.f32 %v1390, %v1395
  %v1399 = vlaneseq
  %v1400 = vshrl.u32 %v1399, 7
  %v1401 = vsub.s32 0, %v1400
  %v1402 = vrot.slane %v1377, %v1401
  %v1404 = vadd.f32 %v1397, %v1402
  %v1405 = vmul.f32 %v1404, 0.5
  %v1406 = vmul.f32 %v1404, 0.70710677
  %v1407 = verf.f32.pop %v1406
  %v1408 = vadd.f32 %v1407, 1.0
  %v1409 = vmul.f32 %v1405, %v1408
  %v1410 = vadd.f32 %v1409, %v1276
  %v1411 = vpack.c.bf16 %v1308, %v1308
  %v1412 = vld [vmem:[%s12] sm:$0xf]
  %v1413 = vld [vmem:[%s12 + $0x4] sm:$0xf]
  %v1414 = vld [vmem:[%s12 + $0x8] sm:$0xf]
  %v1415 = vld [vmem:[%s12 + $0xc] sm:$0xf]
  %v1416 = vld [vmem:[%s13] sm:$0x1]
  %v1418 = vlaneseq
  %v1419 = vshrl.u32 %v1418, 7
  %v1420 = vsub.s32 0, %v1419
  %v1421 = vrot.slane %v1416, %v1420
  %1424 = vrot.lane.b32.xlu0 %v1411, 96
  %v1425 = vpop.permute.xlu0 %1424
  %v1430 = vunpack.c.l.b16 %v1412
  %v1431 = vunpack.c.l.b16 %v1413
  %v1432 = vunpack.c.l.b16 %v1414
  %v1433 = vunpack.c.l.b16 %v1415
  %v1434 = vpack.c.b16 %v1431, %v1430
  %v1435 = vpack.c.b16 %v1433, %v1432
  %v1439 = vsel %vm105, %v1425, 0
  %1441 = vmatprep.subr.bf16.mxu0 0
  %1442 = vmatpush1.bf16.msra.mxu0 %v1434
  %1443 = vmatprep.subr.bf16.mxu0 0
  %1444 = vmatpush1.bf16.msra.mxu0 %v1435
  %1445 = vmatprep.subr.bf16.mxu0 0
  %1446 = vmatpush1.bf16.msra.mxu0 0
  %1447 = vmatprep.subr.bf16.mxu0 0
  %1448 = vmatpush1.bf16.msra.mxu0 0
  %1449 = vmatprep.subr.bf16.mxu0 0
  %1450 = vmatpush1.bf16.msra.mxu0 0
  %1451 = vmatprep.subr.bf16.mxu0 0
  %1452 = vmatpush1.bf16.msra.mxu0 0
  %1453 = vmatprep.subr.bf16.mxu0 0
  %1454 = vmatpush1.bf16.msra.mxu0 0
  %1455 = vmatprep.subr.bf16.mxu0 0
  %1456 = vmatpush1.bf16.msra.mxu0 0
  %1457 = vmatprep.subr.bf16.mxu0 0
  %1458 = vmatpush1.bf16.msra.mxu0 0
  %1459 = vmatprep.subr.bf16.mxu0 0
  %1460 = vmatpush1.bf16.msra.mxu0 0
  %1461 = vmatprep.subr.bf16.mxu0 0
  %1462 = vmatpush1.bf16.msra.mxu0 0
  %1463 = vmatprep.subr.bf16.mxu0 0
  %1464 = vmatpush1.bf16.msra.mxu0 0
  %1465 = vmatprep.subr.bf16.mxu0 0
  %1466 = vmatpush1.bf16.msra.mxu0 0
  %1467 = vmatprep.subr.bf16.mxu0 0
  %1468 = vmatpush1.bf16.msra.mxu0 0
  %1469 = vmatprep.subr.bf16.mxu0 0
  %1470 = vmatpush1.bf16.msra.mxu0 0
  %1471 = vmatprep.subr.bf16.mxu0 0
  %1472 = vmatpush1.bf16.msra.mxu0 0
  %1473 = vmatprep.mubr.bf16.mxu0 0
  %1474 = vmatmul.mubr.bf16.gmra.mrb[0].mxu0 %v1439
  %v1475 = vpop.f32.mrb[0].mxu0
  %v1476 = vadd.f32 %v1421, %v1475
  %v1477 = vpop.f32.mrb[0].mxu0
  %v1478 = vpop.f32.mrb[0].mxu0
  %v1479 = vpop.f32.mrb[0].mxu0
  %1480 = vdwg.mxu0
  %v1481 = vld [vmem:[%s14] sm:$0x1]
  %v1482 = vld [vmem:[%s15] sm:$0x1]
  %v1483 = vsel %vm105, %v1476, 0.0
  %1484 = vadd.xlane.f32.xlu0 %v1483
  %v1485 = vpop.xlane.xlu0 %1484
  %v1486 = vmul.f32 %v1485, %v1223
  %v1487 = vsub.f32 %v1476, %v1486
  %v1488 = vmul.f32 %v1487, %v1487
  %v1489 = vsel %vm105, %v1488, 0.0
  %1490 = vadd.xlane.f32.xlu0 %v1489
  %v1491 = vpop.xlane.xlu0 %1490
  %v1492 = vmul.f32 %v1491, %v1223
  %v1493 = vadd.f32 %v1492, 1e-05
  %v1494 = vrsqrt.pop %v1493
  %v1495 = vmul.f32 %v1487, %v1494
  %v1497 = vlaneseq
  %v1498 = vshrl.u32 %v1497, 7
  %v1499 = vsub.s32 0, %v1498
  %v1500 = vrot.slane %v1481, %v1499
  %v1502 = vmul.f32 %v1495, %v1500
  %v1504 = vlaneseq
  %v1505 = vshrl.u32 %v1504, 7
  %v1506 = vsub.s32 0, %v1505
  %v1507 = vrot.slane %v1482, %v1506
  %v1509 = vadd.f32 %v1502, %v1507
  %v1510 = vmul.f32 %v1509, 0.5
  %v1511 = vmul.f32 %v1509, 0.70710677
  %v1512 = verf.f32.pop %v1511
  %v1513 = vadd.f32 %v1512, 1.0
  %v1514 = vmul.f32 %v1510, %v1513
  %1516 = vrot.lane.b32.xlu0 %v1308, 96
  %v1517 = vpop.permute.xlu0 %1516
  %v1519 = vadd.f32 %v1514, %v1517
  %1521 = vrot.lane.b32.xlu0 %v1519, 32
  %v1522 = vpop.permute.xlu0 %1521
  %v1524 = vsel %vm105, %v1410, %v1522
  %v1525 = vpack.c.bf16 %v1524, %v1524
  %v1526 = vld [vmem:[%s16] sm:$0xf]
  %v1527 = vld [vmem:[%s16 + $0x4] sm:$0xf]
  %v1528 = vld [vmem:[%s16 + $0x8] sm:$0xf]
  %v1529 = vld [vmem:[%s16 + $0xc] sm:$0xf]
  %v1530 = vld [vmem:[%s16 + $0x10] sm:$0xf]
  %v1531 = vld [vmem:[%s16 + $0x14] sm:$0xf]
  %v1532 = vld [vmem:[%s16 + $0x18] sm:$0xf]
  %v1533 = vld [vmem:[%s16 + $0x1c] sm:$0xf]
  %v1534 = vld [vmem:[%s17] sm:$0x1]
  %v1536 = vlaneseq
  %v1537 = vshrl.u32 %v1536, 7
  %v1538 = vsub.s32 0, %v1537
  %v1539 = vrot.slane %v1534, %v1538
  %v1549 = vunpack.c.l.b16 %v1526
  %v1550 = vunpack.c.l.b16 %v1527
  %v1551 = vunpack.c.l.b16 %v1528
  %v1552 = vunpack.c.l.b16 %v1529
  %v1553 = vunpack.c.l.b16 %v1530
  %v1554 = vunpack.c.l.b16 %v1531
  %v1555 = vunpack.c.l.b16 %v1532
  %v1556 = vunpack.c.l.b16 %v1533
  %v1557 = vpack.c.b16 %v1550, %v1549
  %v1558 = vpack.c.b16 %v1552, %v1551
  %v1559 = vpack.c.b16 %v1554, %v1553
  %v1560 = vpack.c.b16 %v1556, %v1555
  %vm1565 = vcmask 523264
  %v1567 = vsel %vm1565, %v1525, 0
  %1569 = vmatprep.subr.bf16.mxu0 0
  %1570 = vmatpush1.bf16.msra.mxu0 %v1557
  %1571 = vmatprep.subr.bf16.mxu0 0
  %1572 = vmatpush1.bf16.msra.mxu0 %v1558
  %1573 = vmatprep.subr.bf16.mxu0 0
  %1574 = vmatpush1.bf16.msra.mxu0 %v1559
  %1575 = vmatprep.subr.bf16.mxu0 0
  %1576 = vmatpush1.bf16.msra.mxu0 %v1560
  %1577 = vmatprep.subr.bf16.mxu0 0
  %1578 = vmatpush1.bf16.msra.mxu0 0
  %1579 = vmatprep.subr.bf16.mxu0 0
  %1580 = vmatpush1.bf16.msra.mxu0 0
  %1581 = vmatprep.subr.bf16.mxu0 0
  %1582 = vmatpush1.bf16.msra.mxu0 0
  %1583 = vmatprep.subr.bf16.mxu0 0
  %1584 = vmatpush1.bf16.msra.mxu0 0
  %1585 = vmatprep.subr.bf16.mxu0 0
  %1586 = vmatpush1.bf16.msra.mxu0 0
  %1587 = vmatprep.subr.bf16.mxu0 0
  %1588 = vmatpush1.bf16.msra.mxu0 0
  %1589 = vmatprep.subr.bf16.mxu0 0
  %1590 = vmatpush1.bf16.msra.mxu0 0
  %1591 = vmatprep.subr.bf16.mxu0 0
  %1592 = vmatpush1.bf16.msra.mxu0 0
  %1593 = vmatprep.subr.bf16.mxu0 0
  %1594 = vmatpush1.bf16.msra.mxu0 0
  %1595 = vmatprep.subr.bf16.mxu0 0
  %1596 = vmatpush1.bf16.msra.mxu0 0
  %1597 = vmatprep.subr.bf16.mxu0 0
  %1598 = vmatpush1.bf16.msra.mxu0 0
  %1599 = vmatprep.subr.bf16.mxu0 0
  %1600 = vmatpush1.bf16.msra.mxu0 0
  %1601 = vmatprep.mubr.bf16.mxu0 0
  %1602 = vmatmul.mubr.bf16.gmra.mrb[0].mxu0 %v1567
  %v1603 = vpop.f32.mrb[0].mxu0
  %v1604 = vadd.f32 %v1539, %v1603
  %v1605 = vpop.f32.mrb[0].mxu0
  %v1606 = vpop.f32.mrb[0].mxu0
  %v1607 = vpop.f32.mrb[0].mxu0
  %1608 = vdwg.mxu0
  %1609 = vst [vmem:[%s18] sm:$0xff] %v1604
  // Predicated region
  $region74: #{_esg_forward_impl.1} parent=0 // pred_check
    _
  $region75: #{_esg_forward_impl.1} parent=0 // pred_check_branch
    %1611 = sbr.rel (0) target = $region77
  $region76: #{_esg_forward_impl.1} parent=0 // pred_region
    _
  $region77: #{_esg_forward_impl.1} parent=0 // pred_fallthru
    _
  // Predicated region
  $region78: #{_esg_forward_impl.1} parent=0 // pred_check
    _
  $region79: #{_esg_forward_impl.1} parent=0 // pred_check_branch
    %1613 = sbr.rel (0) target = $region81
  $region80: #{_esg_forward_impl.1} parent=0 // pred_region
    _
  $region81: #{_esg_forward_impl.1} parent=0 // pred_fallthru
    _

// kernel: _esg_forward_impl.1
$region0: #{_esg_forward_impl.1}
  #allocation0 [shape = 'u32[]', space=smem, size = 0x4, offset = 0x4, fixed_abs, tag = 'smem constant byte address 0x4 - core index']
  #allocation1 [shape = 'u32[144,128]{1,0:T(1,128)}', space=vmem, size = 0x12000, scoped, tag = 'internal scratch']
  %s0 = inlined_call_operand.vmem [shape: bf16[8,8,32], index: 0, kind: input, shape index: {}]
  %s1 = inlined_call_operand.vmem [shape: f32[8,8], index: 1, kind: input, shape index: {}]
  %s2 = inlined_call_operand.vmem [shape: bf16[32,4], index: 2, kind: input, shape index: {}]
  %s3 = inlined_call_operand.vmem [shape: f32[4,1], index: 3, kind: input, shape index: {}]
  %s4 = inlined_call_operand.vmem [shape: bf16[32,64], index: 4, kind: input, shape index: {}]
  %s5 = inlined_call_operand.vmem [shape: f32[1,64], index: 5, kind: input, shape index: {}]
  %s6 = inlined_call_operand.vmem [shape: f32[1,64], index: 6, kind: input, shape index: {}]
  %s7 = inlined_call_operand.vmem [shape: f32[1,64], index: 7, kind: input, shape index: {}]
  %s8 = inlined_call_operand.vmem [shape: bf16[32,32], index: 8, kind: input, shape index: {}]
  %s9 = inlined_call_operand.vmem [shape: f32[1,32], index: 9, kind: input, shape index: {}]
  %s10 = inlined_call_operand.vmem [shape: f32[1,32], index: 10, kind: input, shape index: {}]
  %s11 = inlined_call_operand.vmem [shape: f32[1,32], index: 11, kind: input, shape index: {}]
  %s12 = inlined_call_operand.vmem [shape: bf16[32,32], index: 12, kind: input, shape index: {}]
  %s13 = inlined_call_operand.vmem [shape: f32[1,32], index: 13, kind: input, shape index: {}]
  %s14 = inlined_call_operand.vmem [shape: f32[1,32], index: 14, kind: input, shape index: {}]
  %s15 = inlined_call_operand.vmem [shape: f32[1,32], index: 15, kind: input, shape index: {}]
  %s16 = inlined_call_operand.vmem [shape: bf16[64,128], index: 16, kind: input, shape index: {}]
  %s17 = inlined_call_operand.vmem [shape: f32[1,128], index: 17, kind: input, shape index: {}]
  %s18 = inlined_call_operand.vmem [shape: f32[8,128], index: 18, kind: output, shape index: {}]
  %s19 = sld [smem:[#allocation0]]
  $region82: #{_esg_forward_impl.1} parent=0
    _
  %s21 = ssub.s32 1, %s19
  %s22 = scalar_select 0, %s21, %s19
  // Predicated region
  $region2: #{_esg_forward_impl.1} parent=0 // pred_check
    _
  $region3: #{_esg_forward_impl.1} parent=0 // pred_check_branch
    %24 = sbr.rel (0) target = $region5
  $region4: #{_esg_forward_impl.1} parent=0 // pred_region
    _
  $region5: #{_esg_forward_impl.1} parent=0 // pred_fallthru
    _
  // Predicated region
  $region6: #{_esg_forward_impl.1} parent=0 // pred_check
    _
  $region7: #{_esg_forward_impl.1} parent=0 // pred_check_branch
    %26 = sbr.rel (0) target = $region9
  $region8: #{_esg_forward_impl.1} parent=0 // pred_region
    _
  $region9: #{_esg_forward_impl.1} parent=0 // pred_fallthru
    _
  // Predicated region
  $region10: #{_esg_forward_impl.1} parent=0 // pred_check
    _
  $region11: #{_esg_forward_impl.1} parent=0 // pred_check_branch
    %28 = sbr.rel (0) target = $region13
  $region12: #{_esg_forward_impl.1} parent=0 // pred_region
    _
  $region13: #{_esg_forward_impl.1} parent=0 // pred_fallthru
    _
  // Predicated region
  $region14: #{_esg_forward_impl.1} parent=0 // pred_check
    _
  $region15: #{_esg_forward_impl.1} parent=0 // pred_check_branch
    %30 = sbr.rel (0) target = $region17
  $region16: #{_esg_forward_impl.1} parent=0 // pred_region
    _
  $region17: #{_esg_forward_impl.1} parent=0 // pred_fallthru
    _
  // Predicated region
  $region18: #{_esg_forward_impl.1} parent=0 // pred_check
    _
  $region19: #{_esg_forward_impl.1} parent=0 // pred_check_branch
    %32 = sbr.rel (0) target = $region21
  $region20: #{_esg_forward_impl.1} parent=0 // pred_region
    _
  $region21: #{_esg_forward_impl.1} parent=0 // pred_fallthru
    _
  // Predicated region
  $region22: #{_esg_forward_impl.1} parent=0 // pred_check
    _
  $region23: #{_esg_forward_impl.1} parent=0 // pred_check_branch
    %34 = sbr.rel (0) target = $region25
  $region24: #{_esg_forward_impl.1} parent=0 // pred_region
    _
  $region25: #{_esg_forward_impl.1} parent=0 // pred_fallthru
    _
  // Predicated region
  $region26: #{_esg_forward_impl.1} parent=0 // pred_check
    _
  $region27: #{_esg_forward_impl.1} parent=0 // pred_check_branch
    %36 = sbr.rel (0) target = $region29
  $region28: #{_esg_forward_impl.1} parent=0 // pred_region
    _
  $region29: #{_esg_forward_impl.1} parent=0 // pred_fallthru
    _
  // Predicated region
  $region30: #{_esg_forward_impl.1} parent=0 // pred_check
    _
  $region31: #{_esg_forward_impl.1} parent=0 // pred_check_branch
    %38 = sbr.rel (0) target = $region33
  $region32: #{_esg_forward_impl.1} parent=0 // pred_region
    _
  $region33: #{_esg_forward_impl.1} parent=0 // pred_fallthru
    _
  // Predicated region
  $region34: #{_esg_forward_impl.1} parent=0 // pred_check
    _
  $region35: #{_esg_forward_impl.1} parent=0 // pred_check_branch
    %40 = sbr.rel (0) target = $region37
  $region36: #{_esg_forward_impl.1} parent=0 // pred_region
    _
  $region37: #{_esg_forward_impl.1} parent=0 // pred_fallthru
    _
  // Predicated region
  $region38: #{_esg_forward_impl.1} parent=0 // pred_check
    _
  $region39: #{_esg_forward_impl.1} parent=0 // pred_check_branch
    %42 = sbr.rel (0) target = $region41
  $region40: #{_esg_forward_impl.1} parent=0 // pred_region
    _
  $region41: #{_esg_forward_impl.1} parent=0 // pred_fallthru
    _
  // Predicated region
  $region42: #{_esg_forward_impl.1} parent=0 // pred_check
    _
  $region43: #{_esg_forward_impl.1} parent=0 // pred_check_branch
    %44 = sbr.rel (0) target = $region45
  $region44: #{_esg_forward_impl.1} parent=0 // pred_region
    _
  $region45: #{_esg_forward_impl.1} parent=0 // pred_fallthru
    _
  // Predicated region
  $region46: #{_esg_forward_impl.1} parent=0 // pred_check
    _
  $region47: #{_esg_forward_impl.1} parent=0 // pred_check_branch
    %46 = sbr.rel (0) target = $region49
  $region48: #{_esg_forward_impl.1} parent=0 // pred_region
    _
  $region49: #{_esg_forward_impl.1} parent=0 // pred_fallthru
    _
  // Predicated region
  $region50: #{_esg_forward_impl.1} parent=0 // pred_check
    _
  $region51: #{_esg_forward_impl.1} parent=0 // pred_check_branch
    %48 = sbr.rel (0) target = $region53
  $region52: #{_esg_forward_impl.1} parent=0 // pred_region
    _
  $region53: #{_esg_forward_impl.1} parent=0 // pred_fallthru
    _
  // Predicated region
  $region54: #{_esg_forward_impl.1} parent=0 // pred_check
    _
  $region55: #{_esg_forward_impl.1} parent=0 // pred_check_branch
    %50 = sbr.rel (0) target = $region57
  $region56: #{_esg_forward_impl.1} parent=0 // pred_region
    _
  $region57: #{_esg_forward_impl.1} parent=0 // pred_fallthru
    _
  // Predicated region
  $region58: #{_esg_forward_impl.1} parent=0 // pred_check
    _
  $region59: #{_esg_forward_impl.1} parent=0 // pred_check_branch
    %52 = sbr.rel (0) target = $region61
  $region60: #{_esg_forward_impl.1} parent=0 // pred_region
    _
  $region61: #{_esg_forward_impl.1} parent=0 // pred_fallthru
    _
  // Predicated region
  $region62: #{_esg_forward_impl.1} parent=0 // pred_check
    _
  $region63: #{_esg_forward_impl.1} parent=0 // pred_check_branch
    %54 = sbr.rel (0) target = $region65
  $region64: #{_esg_forward_impl.1} parent=0 // pred_region
    _
  $region65: #{_esg_forward_impl.1} parent=0 // pred_fallthru
    _
  // Predicated region
  $region66: #{_esg_forward_impl.1} parent=0 // pred_check
    _
  $region67: #{_esg_forward_impl.1} parent=0 // pred_check_branch
    %56 = sbr.rel (0) target = $region69
  $region68: #{_esg_forward_impl.1} parent=0 // pred_region
    _
  $region69: #{_esg_forward_impl.1} parent=0 // pred_fallthru
    _
  // Predicated region
  $region70: #{_esg_forward_impl.1} parent=0 // pred_check
    _
  $region71: #{_esg_forward_impl.1} parent=0 // pred_check_branch
    %58 = sbr.rel (0) target = $region73
  $region72: #{_esg_forward_impl.1} parent=0 // pred_region
    _
  $region73: #{_esg_forward_impl.1} parent=0 // pred_fallthru
    _
  %v60 = vld [vmem:[%s0] sm:$0xf]
  %v61 = vld [vmem:[%s0 + $0x4] sm:$0xf]
  %v62 = vld [vmem:[%s0 + $0x8] sm:$0xf]
  %v63 = vld [vmem:[%s0 + $0xc] sm:$0xf]
  %v64 = vld [vmem:[%s0 + $0x10] sm:$0xf]
  %v65 = vld [vmem:[%s0 + $0x14] sm:$0xf]
  %v66 = vld [vmem:[%s0 + $0x18] sm:$0xf]
  %v67 = vld [vmem:[%s0 + $0x1c] sm:$0xf]
  %v68 = vld [vmem:[%s1] sm:$0xff]
  %v69 = vld [vmem:[%s2] sm:$0xf]
  %v70 = vld [vmem:[%s2 + $0x4] sm:$0xf]
  %v71 = vld [vmem:[%s2 + $0x8] sm:$0xf]
  %v72 = vld [vmem:[%s2 + $0xc] sm:$0xf]
  %v81 = vunpack.c.l.b16 %v60
  %v82 = vunpack.c.l.b16 %v61
  %v83 = vunpack.c.l.b16 %v62
  %v84 = vunpack.c.l.b16 %v63
  %v85 = vunpack.c.l.b16 %v64
  %v86 = vunpack.c.l.b16 %v65
  %v87 = vunpack.c.l.b16 %v66
  %v88 = vunpack.c.l.b16 %v67
  %v89 = vpack.c.b16 %v82, %v81
  %v90 = vpack.c.b16 %v84, %v83
  %v91 = vpack.c.b16 %v86, %v85
  %v92 = vpack.c.b16 %v88, %v87
  %v97 = vunpack.c.l.b16 %v69
  %v98 = vunpack.c.l.b16 %v70
  %v99 = vunpack.c.l.b16 %v71
  %v100 = vunpack.c.l.b16 %v72
  %v101 = vpack.c.b16 %v98, %v97
  %v102 = vpack.c.b16 %v100, %v99
  %vm105 = vcmask 261120
  %v107 = vsel %vm105, %v89, 0
  %v110 = vsel %vm105, %v90, 0
  %v113 = vsel %vm105, %v91, 0
  %v116 = vsel %vm105, %v92, 0
  %118 = vmatprep.subr.bf16.mxu0 0
  %119 = vmatpush1.bf16.msra.mxu0 %v101
  %120 = vmatprep.subr.bf16.mxu0 0
  %121 = vmatpush1.bf16.msra.mxu0 %v102
  %122 = vmatprep.subr.bf16.mxu0 0
  %123 = vmatpush1.bf16.msra.mxu0 0
  %124 = vmatprep.subr.bf16.mxu0 0
  %125 = vmatpush1.bf16.msra.mxu0 0
  %126 = vmatprep.subr.bf16.mxu0 0
  %127 = vmatpush1.bf16.msra.mxu0 0
  %128 = vmatprep.subr.bf16.mxu0 0
  %129 = vmatpush1.bf16.msra.mxu0 0
  %130 = vmatprep.subr.bf16.mxu0 0
  %131 = vmatpush1.bf16.msra.mxu0 0
  %132 = vmatprep.subr.bf16.mxu0 0
  %133 = vmatpush1.bf16.msra.mxu0 0
  %134 = vmatprep.subr.bf16.mxu0 0
  %135 = vmatpush1.bf16.msra.mxu0 0
  %136 = vmatprep.subr.bf16.mxu0 0
  %137 = vmatpush1.bf16.msra.mxu0 0
  %138 = vmatprep.subr.bf16.mxu0 0
  %139 = vmatpush1.bf16.msra.mxu0 0
  %140 = vmatprep.subr.bf16.mxu0 0
  %141 = vmatpush1.bf16.msra.mxu0 0
  %142 = vmatprep.subr.bf16.mxu0 0
  %143 = vmatpush1.bf16.msra.mxu0 0
  %144 = vmatprep.subr.bf16.mxu0 0
  %145 = vmatpush1.bf16.msra.mxu0 0
  %146 = vmatprep.subr.bf16.mxu0 0
  %147 = vmatpush1.bf16.msra.mxu0 0
  %148 = vmatprep.subr.bf16.mxu0 0
  %149 = vmatpush1.bf16.msra.mxu0 0
  %150 = vmatprep.mubr.bf16.mxu0 0
  %151 = vmatmul.mubr.bf16.gmra.mrb[0].mxu0 %v107
  %v152 = vpop.f32.mrb[0].mxu0
  %v153 = vadd.f32 0.0, %v152
  %v154 = vpop.f32.mrb[0].mxu0
  %v155 = vpop.f32.mrb[0].mxu0
  %v156 = vadd.f32 0.0, %v155
  %v157 = vpop.f32.mrb[0].mxu0
  %158 = vmatprep.mubr.bf16.mxu0 0
  %159 = vmatmul.mubr.bf16.gmra.mrb[0].mxu0 %v110
  %v160 = vpop.f32.mrb[0].mxu0
  %v161 = vadd.f32 0.0, %v160
  %v162 = vpop.f32.mrb[0].mxu0
  %v163 = vpop.f32.mrb[0].mxu0
  %v164 = vadd.f32 0.0, %v163
  %v165 = vpop.f32.mrb[0].mxu0
  %166 = vmatprep.mubr.bf16.mxu0 0
  %167 = vmatmul.mubr.bf16.gmra.mrb[0].mxu0 %v113
  %v168 = vpop.f32.mrb[0].mxu0
  %v169 = vadd.f32 0.0, %v168
  %v170 = vpop.f32.mrb[0].mxu0
  %v171 = vpop.f32.mrb[0].mxu0
  %v172 = vadd.f32 0.0, %v171
  %v173 = vpop.f32.mrb[0].mxu0
  %174 = vmatprep.mubr.bf16.mxu0 0
  %175 = vmatmul.mubr.bf16.gmra.mrb[0].mxu0 %v116
  %v176 = vpop.f32.mrb[0].mxu0
  %v177 = vadd.f32 0.0, %v176
  %v178 = vpop.f32.mrb[0].mxu0
  %v179 = vpop.f32.mrb[0].mxu0
  %v180 = vadd.f32 0.0, %v179
  %v181 = vpop.f32.mrb[0].mxu0
  %182 = vdwg.mxu0
  %183 = vxpose.xlu0.b32.start [1/16] %v153, 128
  %184 = vxpose.xlu0.b32.cont [2/16] 0.0, 128
  %185 = vxpose.xlu0.b32.cont [3/16] 0.0, 128
  %186 = vxpose.xlu0.b32.cont [4/16] 0.0, 128
  %187 = vxpose.xlu0.b32.cont [5/16] 0.0, 128
  %188 = vxpose.xlu0.b32.cont [6/16] 0.0, 128
  %189 = vxpose.xlu0.b32.cont [7/16] 0.0, 128
  %190 = vxpose.xlu0.b32.cont [8/16] 0.0, 128
  %191 = vxpose.xlu0.b32.cont [9/16] 0.0, 128
  %192 = vxpose.xlu0.b32.cont [10/16] 0.0, 128
  %193 = vxpose.xlu0.b32.cont [11/16] 0.0, 128
  %194 = vxpose.xlu0.b32.cont [12/16] 0.0, 128
  %195 = vxpose.xlu0.b32.cont [13/16] 0.0, 128
  %196 = vxpose.xlu0.b32.cont [14/16] 0.0, 128
  %197 = vxpose.xlu0.b32.cont [15/16] 0.0, 128
  %198 = vxpose.xlu0.b32.end [16/16] 0.0, 128
  %v199 = vpop.trf.xlu0
  %v200 = vpop.trf.xlu0
  %v201 = vpop.trf.xlu0
  %v202 = vpop.trf.xlu0
  %v203 = vpop.trf.xlu0
  %v204 = vpop.trf.xlu0
  %v205 = vpop.trf.xlu0
  %v206 = vpop.trf.xlu0
  %v207 = vpop.trf.xlu0
  %v208 = vpop.trf.xlu0
  %v209 = vpop.trf.xlu0
  %v210 = vpop.trf.xlu0
  %v211 = vpop.trf.xlu0
  %v212 = vpop.trf.xlu0
  %v213 = vpop.trf.xlu0
  %v214 = vpop.trf.xlu0
  %215 = vxpose.xlu0.b32.start [1/16] %v156, 128
  %216 = vxpose.xlu0.b32.cont [2/16] 0.0, 128
  %217 = vxpose.xlu0.b32.cont [3/16] 0.0, 128
  %218 = vxpose.xlu0.b32.cont [4/16] 0.0, 128
  %219 = vxpose.xlu0.b32.cont [5/16] 0.0, 128
  %220 = vxpose.xlu0.b32.cont [6/16] 0.0, 128
  %221 = vxpose.xlu0.b32.cont [7/16] 0.0, 128
  %222 = vxpose.xlu0.b32.cont [8/16] 0.0, 128
  %223 = vxpose.xlu0.b32.cont [9/16] 0.0, 128
  %224 = vxpose.xlu0.b32.cont [10/16] 0.0, 128
  %225 = vxpose.xlu0.b32.cont [11/16] 0.0, 128
  %226 = vxpose.xlu0.b32.cont [12/16] 0.0, 128
  %227 = vxpose.xlu0.b32.cont [13/16] 0.0, 128
  %228 = vxpose.xlu0.b32.cont [14/16] 0.0, 128
  %229 = vxpose.xlu0.b32.cont [15/16] 0.0, 128
  %230 = vxpose.xlu0.b32.end [16/16] 0.0, 128
  %v231 = vpop.trf.xlu0
  %v232 = vpop.trf.xlu0
  %v233 = vpop.trf.xlu0
  %v234 = vpop.trf.xlu0
  %v235 = vpop.trf.xlu0
  %v236 = vpop.trf.xlu0
  %v237 = vpop.trf.xlu0
  %v238 = vpop.trf.xlu0
  %v239 = vpop.trf.xlu0
  %v240 = vpop.trf.xlu0
  %v241 = vpop.trf.xlu0
  %v242 = vpop.trf.xlu0
  %v243 = vpop.trf.xlu0
  %v244 = vpop.trf.xlu0
  %v245 = vpop.trf.xlu0
  %v246 = vpop.trf.xlu0
  %247 = vxpose.xlu0.b32.start [1/16] %v161, 128
  %248 = vxpose.xlu0.b32.cont [2/16] 0.0, 128
  %249 = vxpose.xlu0.b32.cont [3/16] 0.0, 128
  %250 = vxpose.xlu0.b32.cont [4/16] 0.0, 128
  %251 = vxpose.xlu0.b32.cont [5/16] 0.0, 128
  %252 = vxpose.xlu0.b32.cont [6/16] 0.0, 128
  %253 = vxpose.xlu0.b32.cont [7/16] 0.0, 128
  %254 = vxpose.xlu0.b32.cont [8/16] 0.0, 128
  %255 = vxpose.xlu0.b32.cont [9/16] 0.0, 128
  %256 = vxpose.xlu0.b32.cont [10/16] 0.0, 128
  %257 = vxpose.xlu0.b32.cont [11/16] 0.0, 128
  %258 = vxpose.xlu0.b32.cont [12/16] 0.0, 128
  %259 = vxpose.xlu0.b32.cont [13/16] 0.0, 128
  %260 = vxpose.xlu0.b32.cont [14/16] 0.0, 128
  %261 = vxpose.xlu0.b32.cont [15/16] 0.0, 128
  %262 = vxpose.xlu0.b32.end [16/16] 0.0, 128
  %v263 = vpop.trf.xlu0
  %v264 = vpop.trf.xlu0
  %v265 = vpop.trf.xlu0
  %v266 = vpop.trf.xlu0
  %v267 = vpop.trf.xlu0
  %v268 = vpop.trf.xlu0
  %v269 = vpop.trf.xlu0
  %v270 = vpop.trf.xlu0
  %v271 = vpop.trf.xlu0
  %v272 = vpop.trf.xlu0
  %v273 = vpop.trf.xlu0
  %v274 = vpop.trf.xlu0
  %v275 = vpop.trf.xlu0
  %v276 = vpop.trf.xlu0
  %v277 = vpop.trf.xlu0
  %v278 = vpop.trf.xlu0
  %279 = vxpose.xlu0.b32.start [1/16] %v164, 128
  %280 = vxpose.xlu0.b32.cont [2/16] 0.0, 128
  %281 = vxpose.xlu0.b32.cont [3/16] 0.0, 128
  %282 = vxpose.xlu0.b32.cont [4/16] 0.0, 128
  %283 = vxpose.xlu0.b32.cont [5/16] 0.0, 128
  %284 = vxpose.xlu0.b32.cont [6/16] 0.0, 128
  %285 = vxpose.xlu0.b32.cont [7/16] 0.0, 128
  %286 = vxpose.xlu0.b32.cont [8/16] 0.0, 128
  %287 = vxpose.xlu0.b32.cont [9/16] 0.0, 128
  %288 = vxpose.xlu0.b32.cont [10/16] 0.0, 128
  %289 = vxpose.xlu0.b32.cont [11/16] 0.0, 128
  %290 = vxpose.xlu0.b32.cont [12/16] 0.0, 128
  %291 = vxpose.xlu0.b32.cont [13/16] 0.0, 128
  %292 = vxpose.xlu0.b32.cont [14/16] 0.0, 128
  %293 = vxpose.xlu0.b32.cont [15/16] 0.0, 128
  %294 = vxpose.xlu0.b32.end [16/16] 0.0, 128
  %v295 = vpop.trf.xlu0
  %v296 = vpop.trf.xlu0
  %v297 = vpop.trf.xlu0
  %v298 = vpop.trf.xlu0
  %v299 = vpop.trf.xlu0
  %v300 = vpop.trf.xlu0
  %v301 = vpop.trf.xlu0
  %v302 = vpop.trf.xlu0
  %v303 = vpop.trf.xlu0
  %v304 = vpop.trf.xlu0
  %v305 = vpop.trf.xlu0
  %v306 = vpop.trf.xlu0
  %v307 = vpop.trf.xlu0
  %v308 = vpop.trf.xlu0
  %v309 = vpop.trf.xlu0
  %v310 = vpop.trf.xlu0
  %311 = vxpose.xlu0.b32.start [1/16] %v169, 128
  %312 = vxpose.xlu0.b32.cont [2/16] 0.0, 128
  %313 = vxpose.xlu0.b32.cont [3/16] 0.0, 128
  %314 = vxpose.xlu0.b32.cont [4/16] 0.0, 128
  %315 = vxpose.xlu0.b32.cont [5/16] 0.0, 128
  %316 = vxpose.xlu0.b32.cont [6/16] 0.0, 128
  %317 = vxpose.xlu0.b32.cont [7/16] 0.0, 128
  %318 = vxpose.xlu0.b32.cont [8/16] 0.0, 128
  %319 = vxpose.xlu0.b32.cont [9/16] 0.0, 128
  %320 = vxpose.xlu0.b32.cont [10/16] 0.0, 128
  %321 = vxpose.xlu0.b32.cont [11/16] 0.0, 128
  %322 = vxpose.xlu0.b32.cont [12/16] 0.0, 128
  %323 = vxpose.xlu0.b32.cont [13/16] 0.0, 128
  %324 = vxpose.xlu0.b32.cont [14/16] 0.0, 128
  %325 = vxpose.xlu0.b32.cont [15/16] 0.0, 128
  %326 = vxpose.xlu0.b32.end [16/16] 0.0, 128
  %v327 = vpop.trf.xlu0
  %v328 = vpop.trf.xlu0
  %v329 = vpop.trf.xlu0
  %v330 = vpop.trf.xlu0
  %v331 = vpop.trf.xlu0
  %v332 = vpop.trf.xlu0
  %v333 = vpop.trf.xlu0
  %v334 = vpop.trf.xlu0
  %v335 = vpop.trf.xlu0
  %v336 = vpop.trf.xlu0
  %v337 = vpop.trf.xlu0
  %v338 = vpop.trf.xlu0
  %v339 = vpop.trf.xlu0
  %v340 = vpop.trf.xlu0
  %v341 = vpop.trf.xlu0
  %v342 = vpop.trf.xlu0
  %343 = vxpose.xlu0.b32.start [1/16] %v172, 128
  %344 = vxpose.xlu0.b32.cont [2/16] 0.0, 128
  %345 = vxpose.xlu0.b32.cont [3/16] 0.0, 128
  %346 = vxpose.xlu0.b32.cont [4/16] 0.0, 128
  %347 = vxpose.xlu0.b32.cont [5/16] 0.0, 128
  %348 = vxpose.xlu0.b32.cont [6/16] 0.0, 128
  %349 = vxpose.xlu0.b32.cont [7/16] 0.0, 128
  %350 = vxpose.xlu0.b32.cont [8/16] 0.0, 128
  %351 = vxpose.xlu0.b32.cont [9/16] 0.0, 128
  %352 = vxpose.xlu0.b32.cont [10/16] 0.0, 128
  %353 = vxpose.xlu0.b32.cont [11/16] 0.0, 128
  %354 = vxpose.xlu0.b32.cont [12/16] 0.0, 128
  %355 = vxpose.xlu0.b32.cont [13/16] 0.0, 128
  %356 = vxpose.xlu0.b32.cont [14/16] 0.0, 128
  %357 = vxpose.xlu0.b32.cont [15/16] 0.0, 128
  %358 = vxpose.xlu0.b32.end [16/16] 0.0, 128
  %v359 = vpop.trf.xlu0
  %v360 = vpop.trf.xlu0
  %v361 = vpop.trf.xlu0
  %v362 = vpop.trf.xlu0
  %v363 = vpop.trf.xlu0
  %v364 = vpop.trf.xlu0
  %v365 = vpop.trf.xlu0
  %v366 = vpop.trf.xlu0
  %v367 = vpop.trf.xlu0
  %v368 = vpop.trf.xlu0
  %v369 = vpop.trf.xlu0
  %v370 = vpop.trf.xlu0
  %v371 = vpop.trf.xlu0
  %v372 = vpop.trf.xlu0
  %v373 = vpop.trf.xlu0
  %v374 = vpop.trf.xlu0
  %375 = vxpose.xlu0.b32.start [1/16] %v177, 128
  %376 = vxpose.xlu0.b32.cont [2/16] 0.0, 128
  %377 = vxpose.xlu0.b32.cont [3/16] 0.0, 128
  %378 = vxpose.xlu0.b32.cont [4/16] 0.0, 128
  %379 = vxpose.xlu0.b32.cont [5/16] 0.0, 128
  %380 = vxpose.xlu0.b32.cont [6/16] 0.0, 128
  %381 = vxpose.xlu0.b32.cont [7/16] 0.0, 128
  %382 = vxpose.xlu0.b32.cont [8/16] 0.0, 128
  %383 = vxpose.xlu0.b32.cont [9/16] 0.0, 128
  %384 = vxpose.xlu0.b32.cont [10/16] 0.0, 128
  %385 = vxpose.xlu0.b32.cont [11/16] 0.0, 128
  %386 = vxpose.xlu0.b32.cont [12/16] 0.0, 128
  %387 = vxpose.xlu0.b32.cont [13/16] 0.0, 128
  %388 = vxpose.xlu0.b32.cont [14/16] 0.0, 128
  %389 = vxpose.xlu0.b32.cont [15/16] 0.0, 128
  %390 = vxpose.xlu0.b32.end [16/16] 0.0, 128
  %v391 = vpop.trf.xlu0
  %v392 = vpop.trf.xlu0
  %v393 = vpop.trf.xlu0
  %v394 = vpop.trf.xlu0
  %v395 = vpop.trf.xlu0
  %v396 = vpop.trf.xlu0
  %v397 = vpop.trf.xlu0
  %v398 = vpop.trf.xlu0
  %v399 = vpop.trf.xlu0
  %v400 = vpop.trf.xlu0
  %v401 = vpop.trf.xlu0
  %v402 = vpop.trf.xlu0
  %v403 = vpop.trf.xlu0
  %v404 = vpop.trf.xlu0
  %v405 = vpop.trf.xlu0
  %v406 = vpop.trf.xlu0
  %407 = vxpose.xlu0.b32.start [1/16] %v180, 128
  %408 = vxpose.xlu0.b32.cont [2/16] 0.0, 128
  %409 = vxpose.xlu0.b32.cont [3/16] 0.0, 128
  %410 = vxpose.xlu0.b32.cont [4/16] 0.0, 128
  %411 = vxpose.xlu0.b32.cont [5/16] 0.0, 128
  %412 = vxpose.xlu0.b32.cont [6/16] 0.0, 128
  %413 = vxpose.xlu0.b32.cont [7/16] 0.0, 128
  %414 = vxpose.xlu0.b32.cont [8/16] 0.0, 128
  %415 = vxpose.xlu0.b32.cont [9/16] 0.0, 128
  %416 = vxpose.xlu0.b32.cont [10/16] 0.0, 128
  %417 = vxpose.xlu0.b32.cont [11/16] 0.0, 128
  %418 = vxpose.xlu0.b32.cont [12/16] 0.0, 128
  %419 = vxpose.xlu0.b32.cont [13/16] 0.0, 128
  %420 = vxpose.xlu0.b32.cont [14/16] 0.0, 128
  %421 = vxpose.xlu0.b32.cont [15/16] 0.0, 128
  %422 = vxpose.xlu0.b32.end [16/16] 0.0, 128
  %v423 = vpop.trf.xlu0
  %v424 = vpop.trf.xlu0
  %v425 = vpop.trf.xlu0
  %v426 = vpop.trf.xlu0
  %v427 = vpop.trf.xlu0
  %v428 = vpop.trf.xlu0
  %v429 = vpop.trf.xlu0
  %v430 = vpop.trf.xlu0
  %v431 = vpop.trf.xlu0
  %v432 = vpop.trf.xlu0
  %v433 = vpop.trf.xlu0
  %v434 = vpop.trf.xlu0
  %v435 = vpop.trf.xlu0
  %v436 = vpop.trf.xlu0
  %v437 = vpop.trf.xlu0
  %v438 = vpop.trf.xlu0
  %v439 = vld [vmem:[%s3] sm:$0xf]
  %441 = vset.pattern.permute.xlu0 0
  %442 = vperm.xlu0 %441, %v439
  %v443 = vpop.permute.xlu0 %442
  %v445 = vadd.f32 %v199, %v443
  %v446 = vadd.f32 %v231, %v443
  %v447 = vadd.f32 %v263, %v443
  %v448 = vadd.f32 %v295, %v443
  %v449 = vadd.f32 %v327, %v443
  %v450 = vadd.f32 %v359, %v443
  %v451 = vadd.f32 %v391, %v443
  %v452 = vadd.f32 %v423, %v443
  %v454 = vcombine.high %v68, %v68
  %v456 = vunpack.c.l.s4 1966171168
  %v457 = vunpack.c.0.s8 %v456
  %v458 = vlaneseq
  %v459 = vshrl.u32 %v458, 7
  %v460 = vsub.s32 %v457, %v459
  %v461 = vrot.slane %v68, %v460
  %v463 = vunpack.c.l.s4 1966171168
  %v464 = vunpack.c.0.s8 %v463
  %v465 = vlaneseq
  %v466 = vshrl.u32 %v465, 7
  %v467 = vsub.s32 %v464, %v466
  %v468 = vrot.slane %v454, %v467
  %v469 = vcombine.high %v461, %v461
  %v470 = vcombine.high %v468, %v468
  %v472 = vunpack.c.l.s4 1966171168
  %v473 = vunpack.c.0.s8 %v472
  %v474 = vlaneseq
  %v475 = vshrl.u32 %v474, 7
  %v476 = vsub.s32 %v473, %v475
  %v477 = vrot.slane %v461, %v476
  %v479 = vunpack.c.l.s4 1966171168
  %v480 = vunpack.c.0.s8 %v479
  %v481 = vlaneseq
  %v482 = vshrl.u32 %v481, 7
  %v483 = vsub.s32 %v480, %v482
  %v484 = vrot.slane %v468, %v483
  %v486 = vunpack.c.l.s4 1966171168
  %v487 = vunpack.c.0.s8 %v486
  %v488 = vlaneseq
  %v489 = vshrl.u32 %v488, 7
  %v490 = vsub.s32 %v487, %v489
  %v491 = vrot.slane %v469, %v490
  %v493 = vunpack.c.l.s4 1966171168
  %v494 = vunpack.c.0.s8 %v493
  %v495 = vlaneseq
  %v496 = vshrl.u32 %v495, 7
  %v497 = vsub.s32 %v494, %v496
  %v498 = vrot.slane %v470, %v497
  %v499 = vcombine.high %v477, %v477
  %v500 = vcombine.high %v484, %v484
  %v501 = vcombine.high %v491, %v491
  %v502 = vcombine.high %v498, %v498
  %vm511 = vcmp.eq.f32.partialorder %v477, 0.0
  %vm512 = vcmp.eq.f32.partialorder %v491, 0.0
  %vm513 = vcmp.eq.f32.partialorder %v499, 0.0
  %vm514 = vcmp.eq.f32.partialorder %v501, 0.0
  %vm515 = vcmp.eq.f32.partialorder %v484, 0.0
  %vm516 = vcmp.eq.f32.partialorder %v498, 0.0
  %vm517 = vcmp.eq.f32.partialorder %v500, 0.0
  %vm518 = vcmp.eq.f32.partialorder %v502, 0.0
  %v519 = vsel %vm511, 1, 0
  %v520 = vsel %vm512, 1, 0
  %v521 = vsel %vm513, 1, 0
  %v522 = vsel %vm514, 1, 0
  %v523 = vsel %vm515, 1, 0
  %v524 = vsel %vm516, 1, 0
  %v525 = vsel %vm517, 1, 0
  %v526 = vsel %vm518, 1, 0
  %v527 = vlaneseq
  %v528 = vshrl.u32 %v527, 7
  %v529 = vsub.s32 0, %v528
  %v530 = vrot.slane %v519, %v529
  %v531 = vlaneseq
  %v532 = vshrl.u32 %v531, 7
  %v533 = vsub.s32 0, %v532
  %v534 = vrot.slane %v520, %v533
  %v535 = vlaneseq
  %v536 = vshrl.u32 %v535, 7
  %v537 = vsub.s32 0, %v536
  %v538 = vrot.slane %v521, %v537
  %v539 = vlaneseq
  %v540 = vshrl.u32 %v539, 7
  %v541 = vsub.s32 0, %v540
  %v542 = vrot.slane %v522, %v541
  %v543 = vlaneseq
  %v544 = vshrl.u32 %v543, 7
  %v545 = vsub.s32 0, %v544
  %v546 = vrot.slane %v523, %v545
  %v547 = vlaneseq
  %v548 = vshrl.u32 %v547, 7
  %v549 = vsub.s32 0, %v548
  %v550 = vrot.slane %v524, %v549
  %v551 = vlaneseq
  %v552 = vshrl.u32 %v551, 7
  %v553 = vsub.s32 0, %v552
  %v554 = vrot.slane %v525, %v553
  %v555 = vlaneseq
  %v556 = vshrl.u32 %v555, 7
  %v557 = vsub.s32 0, %v556
  %v558 = vrot.slane %v526, %v557
  %vm559 = vcmp.eq.s32.totalorder %v530, 1
  %vm560 = vcmp.eq.s32.totalorder %v534, 1
  %vm561 = vcmp.eq.s32.totalorder %v538, 1
  %vm562 = vcmp.eq.s32.totalorder %v542, 1
  %vm563 = vcmp.eq.s32.totalorder %v546, 1
  %vm564 = vcmp.eq.s32.totalorder %v550, 1
  %vm565 = vcmp.eq.s32.totalorder %v554, 1
  %vm566 = vcmp.eq.s32.totalorder %v558, 1
  %v567 = vsel %vm559, -1e+30, %v445
  %v568 = vsel %vm560, -1e+30, %v446
  %v569 = vsel %vm561, -1e+30, %v447
  %v570 = vsel %vm562, -1e+30, %v448
  %v571 = vsel %vm563, -1e+30, %v449
  %v572 = vsel %vm564, -1e+30, %v450
  %v573 = vsel %vm565, -1e+30, %v451
  %v574 = vsel %vm566, -1e+30, %v452
  %vm575 = vcmask 60416
  %v576 = vsel %vm575, %v567, -inf
  %577 = vmax.xlane.f32.xlu0 %v576
  %v578 = vpop.xlane.xlu0 %577
  %v579 = vsel %vm575, %v568, -inf
  %580 = vmax.xlane.f32.xlu0 %v579
  %v581 = vpop.xlane.xlu0 %580
  %v582 = vsel %vm575, %v569, -inf
  %583 = vmax.xlane.f32.xlu0 %v582
  %v584 = vpop.xlane.xlu0 %583
  %v585 = vsel %vm575, %v570, -inf
  %586 = vmax.xlane.f32.xlu0 %v585
  %v587 = vpop.xlane.xlu0 %586
  %v588 = vsel %vm575, %v571, -inf
  %589 = vmax.xlane.f32.xlu0 %v588
  %v590 = vpop.xlane.xlu0 %589
  %v591 = vsel %vm575, %v572, -inf
  %592 = vmax.xlane.f32.xlu0 %v591
  %v593 = vpop.xlane.xlu0 %592
  %v594 = vsel %vm575, %v573, -inf
  %595 = vmax.xlane.f32.xlu0 %v594
  %v596 = vpop.xlane.xlu0 %595
  %v597 = vsel %vm575, %v574, -inf
  %598 = vmax.xlane.f32.xlu0 %v597
  %v599 = vpop.xlane.xlu0 %598
  %v600 = vsub.f32 %v567, %v578
  %v601 = vsub.f32 %v568, %v581
  %v602 = vsub.f32 %v569, %v584
  %v603 = vsub.f32 %v570, %v587
  %v604 = vsub.f32 %v571, %v590
  %v605 = vsub.f32 %v572, %v593
  %v606 = vsub.f32 %v573, %v596
  %v607 = vsub.f32 %v574, %v599
  %v608 = vmul.f32 %v600, 1.442695
  %v609 = vpow.pop %v608
  %v610 = vmul.f32 %v601, 1.442695
  %v611 = vpow.pop %v610
  %v612 = vmul.f32 %v602, 1.442695
  %v613 = vpow.pop %v612
  %v614 = vmul.f32 %v603, 1.442695
  %v615 = vpow.pop %v614
  %v616 = vmul.f32 %v604, 1.442695
  %v617 = vpow.pop %v616
  %v618 = vmul.f32 %v605, 1.442695
  %v619 = vpow.pop %v618
  %v620 = vmul.f32 %v606, 1.442695
  %v621 = vpow.pop %v620
  %v622 = vmul.f32 %v607, 1.442695
  %v623 = vpow.pop %v622
  %v624 = vsel %vm575, %v609, 0.0
  %625 = vadd.xlane.f32.xlu0 %v624
  %v626 = vpop.xlane.xlu0 %625
  %v627 = vsel %vm575, %v611, 0.0
  %628 = vadd.xlane.f32.xlu0 %v627
  %v629 = vpop.xlane.xlu0 %628
  %v630 = vsel %vm575, %v613, 0.0
  %631 = vadd.xlane.f32.xlu0 %v630
  %v632 = vpop.xlane.xlu0 %631
  %v633 = vsel %vm575, %v615, 0.0
  %634 = vadd.xlane.f32.xlu0 %v633
  %v635 = vpop.xlane.xlu0 %634
  %v636 = vsel %vm575, %v617, 0.0
  %637 = vadd.xlane.f32.xlu0 %v636
  %v638 = vpop.xlane.xlu0 %637
  %v639 = vsel %vm575, %v619, 0.0
  %640 = vadd.xlane.f32.xlu0 %v639
  %v641 = vpop.xlane.xlu0 %640
  %v642 = vsel %vm575, %v621, 0.0
  %643 = vadd.xlane.f32.xlu0 %v642
  %v644 = vpop.xlane.xlu0 %643
  %v645 = vsel %vm575, %v623, 0.0
  %646 = vadd.xlane.f32.xlu0 %v645
  %v647 = vpop.xlane.xlu0 %646
  %v648 = vrcp.pop %v626
  %v649 = vrcp.pop %v629
  %v650 = vrcp.pop %v632
  %v651 = vrcp.pop %v635
  %v652 = vrcp.pop %v638
  %v653 = vrcp.pop %v641
  %v654 = vrcp.pop %v644
  %v655 = vrcp.pop %v647
  %v656 = vmul.f32 %v609, %v648
  %v657 = vmul.f32 %v611, %v649
  %v658 = vmul.f32 %v613, %v650
  %v659 = vmul.f32 %v615, %v651
  %v660 = vmul.f32 %v617, %v652
  %v661 = vmul.f32 %v619, %v653
  %v662 = vmul.f32 %v621, %v654
  %v663 = vmul.f32 %v623, %v655
  %v664 = vsel %vm575, %v656, 0.0
  %v665 = vrot.slane %v664, 4
  %v666 = vadd.f32 %v664, %v665
  %v667 = vrot.slane %v666, 2
  %v668 = vadd.f32 %v666, %v667
  %v669 = vrot.slane %v668, 1
  %v670 = vadd.f32 %v668, %v669
  %v671 = vsel %vm575, %v657, 0.0
  %v672 = vrot.slane %v671, 4
  %v673 = vadd.f32 %v671, %v672
  %v674 = vrot.slane %v673, 2
  %v675 = vadd.f32 %v673, %v674
  %v676 = vrot.slane %v675, 1
  %v677 = vadd.f32 %v675, %v676
  %v678 = vsel %vm575, %v658, 0.0
  %v679 = vrot.slane %v678, 4
  %v680 = vadd.f32 %v678, %v679
  %v681 = vrot.slane %v680, 2
  %v682 = vadd.f32 %v680, %v681
  %v683 = vrot.slane %v682, 1
  %v684 = vadd.f32 %v682, %v683
  %v685 = vsel %vm575, %v659, 0.0
  %v686 = vrot.slane %v685, 4
  %v687 = vadd.f32 %v685, %v686
  %v688 = vrot.slane %v687, 2
  %v689 = vadd.f32 %v687, %v688
  %v690 = vrot.slane %v689, 1
  %v691 = vadd.f32 %v689, %v690
  %v692 = vsel %vm575, %v660, 0.0
  %v693 = vrot.slane %v692, 4
  %v694 = vadd.f32 %v692, %v693
  %v695 = vrot.slane %v694, 2
  %v696 = vadd.f32 %v694, %v695
  %v697 = vrot.slane %v696, 1
  %v698 = vadd.f32 %v696, %v697
  %v699 = vsel %vm575, %v661, 0.0
  %v700 = vrot.slane %v699, 4
  %v701 = vadd.f32 %v699, %v700
  %v702 = vrot.slane %v701, 2
  %v703 = vadd.f32 %v701, %v702
  %v704 = vrot.slane %v703, 1
  %v705 = vadd.f32 %v703, %v704
  %v706 = vsel %vm575, %v662, 0.0
  %v707 = vrot.slane %v706, 4
  %v708 = vadd.f32 %v706, %v707
  %v709 = vrot.slane %v708, 2
  %v710 = vadd.f32 %v708, %v709
  %v711 = vrot.slane %v710, 1
  %v712 = vadd.f32 %v710, %v711
  %v713 = vsel %vm575, %v663, 0.0
  %v714 = vrot.slane %v713, 4
  %v715 = vadd.f32 %v713, %v714
  %v716 = vrot.slane %v715, 2
  %v717 = vadd.f32 %v715, %v716
  %v718 = vrot.slane %v717, 1
  %v719 = vadd.f32 %v717, %v718
  %v720 = vmul.f32 %v670, 0.25
  %v721 = vmul.f32 %v677, 0.25
  %v722 = vmul.f32 %v684, 0.25
  %v723 = vmul.f32 %v691, 0.25
  %v724 = vmul.f32 %v698, 0.25
  %v725 = vmul.f32 %v705, 0.25
  %v726 = vmul.f32 %v712, 0.25
  %v727 = vmul.f32 %v719, 0.25
  %v728 = vpack.c.bf16 %v720, %v720
  %v729 = vpack.c.bf16 %v721, %v721
  %v730 = vpack.c.bf16 %v722, %v722
  %v731 = vpack.c.bf16 %v723, %v723
  %v732 = vpack.c.bf16 %v724, %v724
  %v733 = vpack.c.bf16 %v725, %v725
  %v734 = vpack.c.bf16 %v726, %v726
  %v735 = vpack.c.bf16 %v727, %v727
  %vm736 = vcmask 64512
  %v738 = vsel %vm736, %v728, 0
  %vm740 = vcmask 1043456
  %v742 = vsel %vm740, %v60, 0
  %744 = vmatprep.subr.bf16.mxu0 0
  %745 = vmatpush1.bf16.msra.mxu0 %v742
  %746 = vmatprep.subr.bf16.mxu0 0
  %747 = vmatpush1.bf16.msra.mxu0 0
  %748 = vmatprep.subr.bf16.mxu0 0
  %749 = vmatpush1.bf16.msra.mxu0 0
  %750 = vmatprep.subr.bf16.mxu0 0
  %751 = vmatpush1.bf16.msra.mxu0 0
  %752 = vmatprep.subr.bf16.mxu0 0
  %753 = vmatpush1.bf16.msra.mxu0 0
  %754 = vmatprep.subr.bf16.mxu0 0
  %755 = vmatpush1.bf16.msra.mxu0 0
  %756 = vmatprep.subr.bf16.mxu0 0
  %757 = vmatpush1.bf16.msra.mxu0 0
  %758 = vmatprep.subr.bf16.mxu0 0
  %759 = vmatpush1.bf16.msra.mxu0 0
  %760 = vmatprep.subr.bf16.mxu0 0
  %761 = vmatpush1.bf16.msra.mxu0 0
  %762 = vmatprep.subr.bf16.mxu0 0
  %763 = vmatpush1.bf16.msra.mxu0 0
  %764 = vmatprep.subr.bf16.mxu0 0
  %765 = vmatpush1.bf16.msra.mxu0 0
  %766 = vmatprep.subr.bf16.mxu0 0
  %767 = vmatpush1.bf16.msra.mxu0 0
  %768 = vmatprep.subr.bf16.mxu0 0
  %769 = vmatpush1.bf16.msra.mxu0 0
  %770 = vmatprep.subr.bf16.mxu0 0
  %771 = vmatpush1.bf16.msra.mxu0 0
  %772 = vmatprep.subr.bf16.mxu0 0
  %773 = vmatpush1.bf16.msra.mxu0 0
  %774 = vmatprep.subr.bf16.mxu0 0
  %775 = vmatpush1.bf16.msra.mxu0 0
  %776 = vmatprep.mubr.bf16.mxu0 0
  %777 = vmatmul.mubr.bf16.gmra.mrb[0].mxu0 %v738
  %v778 = vpop.f32.mrb[0].mxu0
  %v779 = vadd.f32 0.0, %v778
  %v780 = vpop.f32.mrb[0].mxu0
  %v781 = vpop.f32.mrb[0].mxu0
  %v782 = vpop.f32.mrb[0].mxu0
  %783 = vdwg.mxu0
  %v785 = vsel %vm736, %v729, 0
  %v788 = vsel %vm740, %v61, 0
  %790 = vmatprep.subr.bf16.mxu0 0
  %791 = vmatpush1.bf16.msra.mxu0 %v788
  %792 = vmatprep.subr.bf16.mxu0 0
  %793 = vmatpush1.bf16.msra.mxu0 0
  %794 = vmatprep.subr.bf16.mxu0 0
  %795 = vmatpush1.bf16.msra.mxu0 0
  %796 = vmatprep.subr.bf16.mxu0 0
  %797 = vmatpush1.bf16.msra.mxu0 0
  %798 = vmatprep.subr.bf16.mxu0 0
  %799 = vmatpush1.bf16.msra.mxu0 0
  %800 = vmatprep.subr.bf16.mxu0 0
  %801 = vmatpush1.bf16.msra.mxu0 0
  %802 = vmatprep.subr.bf16.mxu0 0
  %803 = vmatpush1.bf16.msra.mxu0 0
  %804 = vmatprep.subr.bf16.mxu0 0
  %805 = vmatpush1.bf16.msra.mxu0 0
  %806 = vmatprep.subr.bf16.mxu0 0
  %807 = vmatpush1.bf16.msra.mxu0 0
  %808 = vmatprep.subr.bf16.mxu0 0
  %809 = vmatpush1.bf16.msra.mxu0 0
  %810 = vmatprep.subr.bf16.mxu0 0
  %811 = vmatpush1.bf16.msra.mxu0 0
  %812 = vmatprep.subr.bf16.mxu0 0
  %813 = vmatpush1.bf16.msra.mxu0 0
  %814 = vmatprep.subr.bf16.mxu0 0
  %815 = vmatpush1.bf16.msra.mxu0 0
  %816 = vmatprep.subr.bf16.mxu0 0
  %817 = vmatpush1.bf16.msra.mxu0 0
  %818 = vmatprep.subr.bf16.mxu0 0
  %819 = vmatpush1.bf16.msra.mxu0 0
  %820 = vmatprep.subr.bf16.mxu0 0
  %821 = vmatpush1.bf16.msra.mxu0 0
  %822 = vmatprep.mubr.bf16.mxu0 0
  %823 = vmatmul.mubr.bf16.gmra.mrb[0].mxu0 %v785
  %v824 = vpop.f32.mrb[0].mxu0
  %v825 = vadd.f32 0.0, %v824
  %v826 = vpop.f32.mrb[0].mxu0
  %v827 = vpop.f32.mrb[0].mxu0
  %v828 = vpop.f32.mrb[0].mxu0
  %829 = vdwg.mxu0
  %v831 = vsel %vm736, %v730, 0
  %v834 = vsel %vm740, %v62, 0
  %836 = vmatprep.subr.bf16.mxu0 0
  %837 = vmatpush1.bf16.msra.mxu0 %v834
  %838 = vmatprep.subr.bf16.mxu0 0
  %839 = vmatpush1.bf16.msra.mxu0 0
  %840 = vmatprep.subr.bf16.mxu0 0
  %841 = vmatpush1.bf16.msra.mxu0 0
  %842 = vmatprep.subr.bf16.mxu0 0
  %843 = vmatpush1.bf16.msra.mxu0 0
  %844 = vmatprep.subr.bf16.mxu0 0
  %845 = vmatpush1.bf16.msra.mxu0 0
  %846 = vmatprep.subr.bf16.mxu0 0
  %847 = vmatpush1.bf16.msra.mxu0 0
  %848 = vmatprep.subr.bf16.mxu0 0
  %849 = vmatpush1.bf16.msra.mxu0 0
  %850 = vmatprep.subr.bf16.mxu0 0
  %851 = vmatpush1.bf16.msra.mxu0 0
  %852 = vmatprep.subr.bf16.mxu0 0
  %853 = vmatpush1.bf16.msra.mxu0 0
  %854 = vmatprep.subr.bf16.mxu0 0
  %855 = vmatpush1.bf16.msra.mxu0 0
  %856 = vmatprep.subr.bf16.mxu0 0
  %857 = vmatpush1.bf16.msra.mxu0 0
  %858 = vmatprep.subr.bf16.mxu0 0
  %859 = vmatpush1.bf16.msra.mxu0 0
  %860 = vmatprep.subr.bf16.mxu0 0
  %861 = vmatpush1.bf16.msra.mxu0 0
  %862 = vmatprep.subr.bf16.mxu0 0
  %863 = vmatpush1.bf16.msra.mxu0 0
  %864 = vmatprep.subr.bf16.mxu0 0
  %865 = vmatpush1.bf16.msra.mxu0 0
  %866 = vmatprep.subr.bf16.mxu0 0
  %867 = vmatpush1.bf16.msra.mxu0 0
  %868 = vmatprep.mubr.bf16.mxu0 0
  %869 = vmatmul.mubr.bf16.gmra.mrb[0].mxu0 %v831
  %v870 = vpop.f32.mrb[0].mxu0
  %v871 = vadd.f32 0.0, %v870
  %v872 = vpop.f32.mrb[0].mxu0
  %v873 = vpop.f32.mrb[0].mxu0
  %v874 = vpop.f32.mrb[0].mxu0
  %875 = vdwg.mxu0
  %v877 = vsel %vm736, %v731, 0
  %v880 = vsel %vm740, %v63, 0
  %882 = vmatprep.subr.bf16.mxu0 0
  %883 = vmatpush1.bf16.msra.mxu0 %v880
  %884 = vmatprep.subr.bf16.mxu0 0
  %885 = vmatpush1.bf16.msra.mxu0 0
  %886 = vmatprep.subr.bf16.mxu0 0
  %887 = vmatpush1.bf16.msra.mxu0 0
  %888 = vmatprep.subr.bf16.mxu0 0
  %889 = vmatpush1.bf16.msra.mxu0 0
  %890 = vmatprep.subr.bf16.mxu0 0
  %891 = vmatpush1.bf16.msra.mxu0 0
  %892 = vmatprep.subr.bf16.mxu0 0
  %893 = vmatpush1.bf16.msra.mxu0 0
  %894 = vmatprep.subr.bf16.mxu0 0
  %895 = vmatpush1.bf16.msra.mxu0 0
  %896 = vmatprep.subr.bf16.mxu0 0
  %897 = vmatpush1.bf16.msra.mxu0 0
  %898 = vmatprep.subr.bf16.mxu0 0
  %899 = vmatpush1.bf16.msra.mxu0 0
  %900 = vmatprep.subr.bf16.mxu0 0
  %901 = vmatpush1.bf16.msra.mxu0 0
  %902 = vmatprep.subr.bf16.mxu0 0
  %903 = vmatpush1.bf16.msra.mxu0 0
  %904 = vmatprep.subr.bf16.mxu0 0
  %905 = vmatpush1.bf16.msra.mxu0 0
  %906 = vmatprep.subr.bf16.mxu0 0
  %907 = vmatpush1.bf16.msra.mxu0 0
  %908 = vmatprep.subr.bf16.mxu0 0
  %909 = vmatpush1.bf16.msra.mxu0 0
  %910 = vmatprep.subr.bf16.mxu0 0
  %911 = vmatpush1.bf16.msra.mxu0 0
  %912 = vmatprep.subr.bf16.mxu0 0
  %913 = vmatpush1.bf16.msra.mxu0 0
  %914 = vmatprep.mubr.bf16.mxu0 0
  %915 = vmatmul.mubr.bf16.gmra.mrb[0].mxu0 %v877
  %v916 = vpop.f32.mrb[0].mxu0
  %v917 = vadd.f32 0.0, %v916
  %v918 = vpop.f32.mrb[0].mxu0
  %v919 = vpop.f32.mrb[0].mxu0
  %v920 = vpop.f32.mrb[0].mxu0
  %921 = vdwg.mxu0
  %v923 = vsel %vm736, %v732, 0
  %v926 = vsel %vm740, %v64, 0
  %928 = vmatprep.subr.bf16.mxu0 0
  %929 = vmatpush1.bf16.msra.mxu0 %v926
  %930 = vmatprep.subr.bf16.mxu0 0
  %931 = vmatpush1.bf16.msra.mxu0 0
  %932 = vmatprep.subr.bf16.mxu0 0
  %933 = vmatpush1.bf16.msra.mxu0 0
  %934 = vmatprep.subr.bf16.mxu0 0
  %935 = vmatpush1.bf16.msra.mxu0 0
  %936 = vmatprep.subr.bf16.mxu0 0
  %937 = vmatpush1.bf16.msra.mxu0 0
  %938 = vmatprep.subr.bf16.mxu0 0
  %939 = vmatpush1.bf16.msra.mxu0 0
  %940 = vmatprep.subr.bf16.mxu0 0
  %941 = vmatpush1.bf16.msra.mxu0 0
  %942 = vmatprep.subr.bf16.mxu0 0
  %943 = vmatpush1.bf16.msra.mxu0 0
  %944 = vmatprep.subr.bf16.mxu0 0
  %945 = vmatpush1.bf16.msra.mxu0 0
  %946 = vmatprep.subr.bf16.mxu0 0
  %947 = vmatpush1.bf16.msra.mxu0 0
  %948 = vmatprep.subr.bf16.mxu0 0
  %949 = vmatpush1.bf16.msra.mxu0 0
  %950 = vmatprep.subr.bf16.mxu0 0
  %951 = vmatpush1.bf16.msra.mxu0 0
  %952 = vmatprep.subr.bf16.mxu0 0
  %953 = vmatpush1.bf16.msra.mxu0 0
  %954 = vmatprep.subr.bf16.mxu0 0
  %955 = vmatpush1.bf16.msra.mxu0 0
  %956 = vmatprep.subr.bf16.mxu0 0
  %957 = vmatpush1.bf16.msra.mxu0 0
  %958 = vmatprep.subr.bf16.mxu0 0
  %959 = vmatpush1.bf16.msra.mxu0 0
  %960 = vmatprep.mubr.bf16.mxu0 0
  %961 = vmatmul.mubr.bf16.gmra.mrb[0].mxu0 %v923
  %v962 = vpop.f32.mrb[0].mxu0
  %v963 = vadd.f32 0.0, %v962
  %v964 = vpop.f32.mrb[0].mxu0
  %v965 = vpop.f32.mrb[0].mxu0
  %v966 = vpop.f32.mrb[0].mxu0
  %967 = vdwg.mxu0
  %v969 = vsel %vm736, %v733, 0
  %v972 = vsel %vm740, %v65, 0
  %974 = vmatprep.subr.bf16.mxu0 0
  %975 = vmatpush1.bf16.msra.mxu0 %v972
  %976 = vmatprep.subr.bf16.mxu0 0
  %977 = vmatpush1.bf16.msra.mxu0 0
  %978 = vmatprep.subr.bf16.mxu0 0
  %979 = vmatpush1.bf16.msra.mxu0 0
  %980 = vmatprep.subr.bf16.mxu0 0
  %981 = vmatpush1.bf16.msra.mxu0 0
  %982 = vmatprep.subr.bf16.mxu0 0
  %983 = vmatpush1.bf16.msra.mxu0 0
  %984 = vmatprep.subr.bf16.mxu0 0
  %985 = vmatpush1.bf16.msra.mxu0 0
  %986 = vmatprep.subr.bf16.mxu0 0
  %987 = vmatpush1.bf16.msra.mxu0 0
  %988 = vmatprep.subr.bf16.mxu0 0
  %989 = vmatpush1.bf16.msra.mxu0 0
  %990 = vmatprep.subr.bf16.mxu0 0
  %991 = vmatpush1.bf16.msra.mxu0 0
  %992 = vmatprep.subr.bf16.mxu0 0
  %993 = vmatpush1.bf16.msra.mxu0 0
  %994 = vmatprep.subr.bf16.mxu0 0
  %995 = vmatpush1.bf16.msra.mxu0 0
  %996 = vmatprep.subr.bf16.mxu0 0
  %997 = vmatpush1.bf16.msra.mxu0 0
  %998 = vmatprep.subr.bf16.mxu0 0
  %999 = vmatpush1.bf16.msra.mxu0 0
  %1000 = vmatprep.subr.bf16.mxu0 0
  %1001 = vmatpush1.bf16.msra.mxu0 0
  %1002 = vmatprep.subr.bf16.mxu0 0
  %1003 = vmatpush1.bf16.msra.mxu0 0
  %1004 = vmatprep.subr.bf16.mxu0 0
  %1005 = vmatpush1.bf16.msra.mxu0 0
  %1006 = vmatprep.mubr.bf16.mxu0 0
  %1007 = vmatmul.mubr.bf16.gmra.mrb[0].mxu0 %v969
  %v1008 = vpop.f32.mrb[0].mxu0
  %v1009 = vadd.f32 0.0, %v1008
  %v1010 = vpop.f32.mrb[0].mxu0
  %v1011 = vpop.f32.mrb[0].mxu0
  %v1012 = vpop.f32.mrb[0].mxu0
  %1013 = vdwg.mxu0
  %v1015 = vsel %vm736, %v734, 0
  %v1018 = vsel %vm740, %v66, 0
  %1020 = vmatprep.subr.bf16.mxu0 0
  %1021 = vmatpush1.bf16.msra.mxu0 %v1018
  %1022 = vmatprep.subr.bf16.mxu0 0
  %1023 = vmatpush1.bf16.msra.mxu0 0
  %1024 = vmatprep.subr.bf16.mxu0 0
  %1025 = vmatpush1.bf16.msra.mxu0 0
  %1026 = vmatprep.subr.bf16.mxu0 0
  %1027 = vmatpush1.bf16.msra.mxu0 0
  %1028 = vmatprep.subr.bf16.mxu0 0
  %1029 = vmatpush1.bf16.msra.mxu0 0
  %1030 = vmatprep.subr.bf16.mxu0 0
  %1031 = vmatpush1.bf16.msra.mxu0 0
  %1032 = vmatprep.subr.bf16.mxu0 0
  %1033 = vmatpush1.bf16.msra.mxu0 0
  %1034 = vmatprep.subr.bf16.mxu0 0
  %1035 = vmatpush1.bf16.msra.mxu0 0
  %1036 = vmatprep.subr.bf16.mxu0 0
  %1037 = vmatpush1.bf16.msra.mxu0 0
  %1038 = vmatprep.subr.bf16.mxu0 0
  %1039 = vmatpush1.bf16.msra.mxu0 0
  %1040 = vmatprep.subr.bf16.mxu0 0
  %1041 = vmatpush1.bf16.msra.mxu0 0
  %1042 = vmatprep.subr.bf16.mxu0 0
  %1043 = vmatpush1.bf16.msra.mxu0 0
  %1044 = vmatprep.subr.bf16.mxu0 0
  %1045 = vmatpush1.bf16.msra.mxu0 0
  %1046 = vmatprep.subr.bf16.mxu0 0
  %1047 = vmatpush1.bf16.msra.mxu0 0
  %1048 = vmatprep.subr.bf16.mxu0 0
  %1049 = vmatpush1.bf16.msra.mxu0 0
  %1050 = vmatprep.subr.bf16.mxu0 0
  %1051 = vmatpush1.bf16.msra.mxu0 0
  %1052 = vmatprep.mubr.bf16.mxu0 0
  %1053 = vmatmul.mubr.bf16.gmra.mrb[0].mxu0 %v1015
  %v1054 = vpop.f32.mrb[0].mxu0
  %v1055 = vadd.f32 0.0, %v1054
  %v1056 = vpop.f32.mrb[0].mxu0
  %v1057 = vpop.f32.mrb[0].mxu0
  %v1058 = vpop.f32.mrb[0].mxu0
  %1059 = vdwg.mxu0
  %v1061 = vsel %vm736, %v735, 0
  %v1064 = vsel %vm740, %v67, 0
  %1066 = vmatprep.subr.bf16.mxu0 0
  %1067 = vmatpush1.bf16.msra.mxu0 %v1064
  %1068 = vmatprep.subr.bf16.mxu0 0
  %1069 = vmatpush1.bf16.msra.mxu0 0
  %1070 = vmatprep.subr.bf16.mxu0 0
  %1071 = vmatpush1.bf16.msra.mxu0 0
  %1072 = vmatprep.subr.bf16.mxu0 0
  %1073 = vmatpush1.bf16.msra.mxu0 0
  %1074 = vmatprep.subr.bf16.mxu0 0
  %1075 = vmatpush1.bf16.msra.mxu0 0
  %1076 = vmatprep.subr.bf16.mxu0 0
  %1077 = vmatpush1.bf16.msra.mxu0 0
  %1078 = vmatprep.subr.bf16.mxu0 0
  %1079 = vmatpush1.bf16.msra.mxu0 0
  %1080 = vmatprep.subr.bf16.mxu0 0
  %1081 = vmatpush1.bf16.msra.mxu0 0
  %1082 = vmatprep.subr.bf16.mxu0 0
  %1083 = vmatpush1.bf16.msra.mxu0 0
  %1084 = vmatprep.subr.bf16.mxu0 0
  %1085 = vmatpush1.bf16.msra.mxu0 0
  %1086 = vmatprep.subr.bf16.mxu0 0
  %1087 = vmatpush1.bf16.msra.mxu0 0
  %1088 = vmatprep.subr.bf16.mxu0 0
  %1089 = vmatpush1.bf16.msra.mxu0 0
  %1090 = vmatprep.subr.bf16.mxu0 0
  %1091 = vmatpush1.bf16.msra.mxu0 0
  %1092 = vmatprep.subr.bf16.mxu0 0
  %1093 = vmatpush1.bf16.msra.mxu0 0
  %1094 = vmatprep.subr.bf16.mxu0 0
  %1095 = vmatpush1.bf16.msra.mxu0 0
  %1096 = vmatprep.subr.bf16.mxu0 0
  %1097 = vmatpush1.bf16.msra.mxu0 0
  %1098 = vmatprep.mubr.bf16.mxu0 0
  %1099 = vmatmul.mubr.bf16.gmra.mrb[0].mxu0 %v1061
  %v1100 = vpop.f32.mrb[0].mxu0
  %v1101 = vadd.f32 0.0, %v1100
  %v1102 = vpop.f32.mrb[0].mxu0
  %v1103 = vpop.f32.mrb[0].mxu0
  %v1104 = vpop.f32.mrb[0].mxu0
  %1105 = vdwg.mxu0
  %v1106 = vpack.c.bf16 %v779, %v779
  %v1107 = vpack.c.bf16 %v825, %v825
  %v1108 = vpack.c.bf16 %v871, %v871
  %v1109 = vpack.c.bf16 %v917, %v917
  %v1110 = vpack.c.bf16 %v963, %v963
  %v1111 = vpack.c.bf16 %v1009, %v1009
  %v1112 = vpack.c.bf16 %v1055, %v1055
  %v1113 = vpack.c.bf16 %v1101, %v1101
  %v1114 = vld [vmem:[%s4] sm:$0xf]
  %v1115 = vld [vmem:[%s4 + $0x4] sm:$0xf]
  %v1116 = vld [vmem:[%s4 + $0x8] sm:$0xf]
  %v1117 = vld [vmem:[%s4 + $0xc] sm:$0xf]
  %v1118 = vld [vmem:[%s5] sm:$0x1]
  %v1120 = vlaneseq
  %v1121 = vshrl.u32 %v1120, 7
  %v1122 = vsub.s32 0, %v1121
  %v1123 = vrot.slane %v1118, %v1122
  %v1133 = vunpack.c.l.b16 %v1106
  %v1134 = vunpack.c.l.b16 %v1107
  %v1135 = vunpack.c.l.b16 %v1108
  %v1136 = vunpack.c.l.b16 %v1109
  %v1137 = vunpack.c.l.b16 %v1110
  %v1138 = vunpack.c.l.b16 %v1111
  %v1139 = vunpack.c.l.b16 %v1112
  %v1140 = vunpack.c.l.b16 %v1113
  %v1141 = vrot.slane %v1134, 7
  %vm1142 = vcmask 1041409
  %v1143 = vsel %vm1142, %v1141, %v1133
  %v1144 = vrot.slane %v1135, 6
  %vm1145 = vcmask 1042434
  %v1146 = vsel %vm1145, %v1144, %v1143
  %v1147 = vrot.slane %v1136, 5
  %vm1148 = vcmask 1043459
  %v1149 = vsel %vm1148, %v1147, %v1146
  %v1150 = vrot.slane %v1137, 4
  %vm1151 = vcmask 1044484
  %v1152 = vsel %vm1151, %v1150, %v1149
  %v1153 = vrot.slane %v1138, 3
  %vm1154 = vcmask 1045509
  %v1155 = vsel %vm1154, %v1153, %v1152
  %v1156 = vrot.slane %v1139, 2
  %vm1157 = vcmask 1046534
  %v1158 = vsel %vm1157, %v1156, %v1155
  %v1159 = vrot.slane %v1140, 1
  %vm1160 = vcmask 1047559
  %v1161 = vsel %vm1160, %v1159, %v1158
  %v1162 = vpack.c.b16 %v1161, %v1161
  %v1167 = vunpack.c.l.b16 %v1114
  %v1168 = vunpack.c.l.b16 %v1115
  %v1169 = vunpack.c.l.b16 %v1116
  %v1170 = vunpack.c.l.b16 %v1117
  %v1171 = vpack.c.b16 %v1168, %v1167
  %v1172 = vpack.c.b16 %v1170, %v1169
  %v1176 = vsel %vm105, %v1162, 0
  %1178 = vmatprep.subr.bf16.mxu0 0
  %1179 = vmatpush1.bf16.msra.mxu0 %v1171
  %1180 = vmatprep.subr.bf16.mxu0 0
  %1181 = vmatpush1.bf16.msra.mxu0 %v1172
  %1182 = vmatprep.subr.bf16.mxu0 0
  %1183 = vmatpush1.bf16.msra.mxu0 0
  %1184 = vmatprep.subr.bf16.mxu0 0
  %1185 = vmatpush1.bf16.msra.mxu0 0
  %1186 = vmatprep.subr.bf16.mxu0 0
  %1187 = vmatpush1.bf16.msra.mxu0 0
  %1188 = vmatprep.subr.bf16.mxu0 0
  %1189 = vmatpush1.bf16.msra.mxu0 0
  %1190 = vmatprep.subr.bf16.mxu0 0
  %1191 = vmatpush1.bf16.msra.mxu0 0
  %1192 = vmatprep.subr.bf16.mxu0 0
  %1193 = vmatpush1.bf16.msra.mxu0 0
  %1194 = vmatprep.subr.bf16.mxu0 0
  %1195 = vmatpush1.bf16.msra.mxu0 0
  %1196 = vmatprep.subr.bf16.mxu0 0
  %1197 = vmatpush1.bf16.msra.mxu0 0
  %1198 = vmatprep.subr.bf16.mxu0 0
  %1199 = vmatpush1.bf16.msra.mxu0 0
  %1200 = vmatprep.subr.bf16.mxu0 0
  %1201 = vmatpush1.bf16.msra.mxu0 0
  %1202 = vmatprep.subr.bf16.mxu0 0
  %1203 = vmatpush1.bf16.msra.mxu0 0
  %1204 = vmatprep.subr.bf16.mxu0 0
  %1205 = vmatpush1.bf16.msra.mxu0 0
  %1206 = vmatprep.subr.bf16.mxu0 0
  %1207 = vmatpush1.bf16.msra.mxu0 0
  %1208 = vmatprep.subr.bf16.mxu0 0
  %1209 = vmatpush1.bf16.msra.mxu0 0
  %1210 = vmatprep.mubr.bf16.mxu0 0
  %1211 = vmatmul.mubr.bf16.gmra.mrb[0].mxu0 %v1176
  %v1212 = vpop.f32.mrb[0].mxu0
  %v1213 = vadd.f32 %v1123, %v1212
  %v1214 = vpop.f32.mrb[0].mxu0
  %v1215 = vpop.f32.mrb[0].mxu0
  %v1216 = vpop.f32.mrb[0].mxu0
  %1217 = vdwg.mxu0
  %v1218 = vld [vmem:[%s6] sm:$0x1]
  %v1219 = vld [vmem:[%s7] sm:$0x1]
  %v1220 = vsel %vm105, %v1213, 0.0
  %1221 = vadd.xlane.f32.xlu0 %v1220
  %v1222 = vpop.xlane.xlu0 %1221
  %v1223 = vrcp.pop 32.0
  %v1224 = vmul.f32 %v1222, %v1223
  %v1225 = vsub.f32 %v1213, %v1224
  %v1226 = vmul.f32 %v1225, %v1225
  %v1227 = vsel %vm105, %v1226, 0.0
  %1228 = vadd.xlane.f32.xlu0 %v1227
  %v1229 = vpop.xlane.xlu0 %1228
  %v1230 = vmul.f32 %v1229, %v1223
  %v1231 = vadd.f32 %v1230, 1e-05
  %v1232 = vrsqrt.pop %v1231
  %v1233 = vmul.f32 %v1225, %v1232
  %v1235 = vlaneseq
  %v1236 = vshrl.u32 %v1235, 7
  %v1237 = vsub.s32 0, %v1236
  %v1238 = vrot.slane %v1218, %v1237
  %v1240 = vmul.f32 %v1233, %v1238
  %v1242 = vlaneseq
  %v1243 = vshrl.u32 %v1242, 7
  %v1244 = vsub.s32 0, %v1243
  %v1245 = vrot.slane %v1219, %v1244
  %v1247 = vadd.f32 %v1240, %v1245
  %v1248 = vmul.f32 %v1247, 0.5
  %v1249 = vmul.f32 %v1247, 0.70710677
  %v1250 = verf.f32.pop %v1249
  %v1251 = vadd.f32 %v1250, 1.0
  %v1252 = vmul.f32 %v1248, %v1251
  %v1261 = vrot.slane %v825, 7
  %v1262 = vsel %vm1142, %v1261, %v779
  %v1263 = vrot.slane %v871, 6
  %v1264 = vsel %vm1145, %v1263, %v1262
  %v1265 = vrot.slane %v917, 5
  %v1266 = vsel %vm1148, %v1265, %v1264
  %v1267 = vrot.slane %v963, 4
  %v1268 = vsel %vm1151, %v1267, %v1266
  %v1269 = vrot.slane %v1009, 3
  %v1270 = vsel %vm1154, %v1269, %v1268
  %v1271 = vrot.slane %v1055, 2
  %v1272 = vsel %vm1157, %v1271, %v1270
  %v1273 = vrot.slane %v1101, 1
  %v1274 = vsel %vm1160, %v1273, %v1272
  %v1276 = vadd.f32 %v1252, %v1274
  %1278 = vrot.lane.b32.xlu0 %v1213, 96
  %v1279 = vpop.permute.xlu0 %1278
  %v1281 = vsel %vm105, %v1279, 0.0
  %1282 = vadd.xlane.f32.xlu0 %v1281
  %v1283 = vpop.xlane.xlu0 %1282
  %v1284 = vmul.f32 %v1283, %v1223
  %v1285 = vsub.f32 %v1213, %v1284
  %v1286 = vmul.f32 %v1285, %v1285
  %1288 = vrot.lane.b32.xlu0 %v1286, 96
  %v1289 = vpop.permute.xlu0 %1288
  %v1291 = vsel %vm105, %v1289, 0.0
  %1292 = vadd.xlane.f32.xlu0 %v1291
  %v1293 = vpop.xlane.xlu0 %1292
  %v1294 = vmul.f32 %v1293, %v1223
  %v1295 = vadd.f32 %v1294, 1e-05
  %v1296 = vrsqrt.pop %v1295
  %v1297 = vmul.f32 %v1285, %v1296
  %v1298 = vmul.f32 %v1297, %v1238
  %v1299 = vadd.f32 %v1298, %v1245
  %v1300 = vmul.f32 %v1299, 0.5
  %v1301 = vmul.f32 %v1299, 0.70710677
  %v1302 = verf.f32.pop %v1301
  %v1303 = vadd.f32 %v1302, 1.0
  %v1304 = vmul.f32 %v1300, %v1303
  %1305 = vrot.lane.b32.xlu0 %v1274, 32
  %v1306 = vpop.permute.xlu0 %1305
  %v1308 = vadd.f32 %v1304, %v1306
  %v1309 = vpack.c.bf16 %v1276, %v1276
  %v1310 = vld [vmem:[%s8] sm:$0xf]
  %v1311 = vld [vmem:[%s8 + $0x4] sm:$0xf]
  %v1312 = vld [vmem:[%s8 + $0x8] sm:$0xf]
  %v1313 = vld [vmem:[%s8 + $0xc] sm:$0xf]
  %v1314 = vld [vmem:[%s9] sm:$0x1]
  %v1316 = vlaneseq
  %v1317 = vshrl.u32 %v1316, 7
  %v1318 = vsub.s32 0, %v1317
  %v1319 = vrot.slane %v1314, %v1318
  %v1325 = vunpack.c.l.b16 %v1310
  %v1326 = vunpack.c.l.b16 %v1311
  %v1327 = vunpack.c.l.b16 %v1312
  %v1328 = vunpack.c.l.b16 %v1313
  %v1329 = vpack.c.b16 %v1326, %v1325
  %v1330 = vpack.c.b16 %v1328, %v1327
  %v1334 = vsel %vm105, %v1309, 0
  %1336 = vmatprep.subr.bf16.mxu0 0
  %1337 = vmatpush1.bf16.msra.mxu0 %v1329
  %1338 = vmatprep.subr.bf16.mxu0 0
  %1339 = vmatpush1.bf16.msra.mxu0 %v1330
  %1340 = vmatprep.subr.bf16.mxu0 0
  %1341 = vmatpush1.bf16.msra.mxu0 0
  %1342 = vmatprep.subr.bf16.mxu0 0
  %1343 = vmatpush1.bf16.msra.mxu0 0
  %1344 = vmatprep.subr.bf16.mxu0 0
  %1345 = vmatpush1.bf16.msra.mxu0 0
  %1346 = vmatprep.subr.bf16.mxu0 0
  %1347 = vmatpush1.bf16.msra.mxu0 0
  %1348 = vmatprep.subr.bf16.mxu0 0
  %1349 = vmatpush1.bf16.msra.mxu0 0
  %1350 = vmatprep.subr.bf16.mxu0 0
  %1351 = vmatpush1.bf16.msra.mxu0 0
  %1352 = vmatprep.subr.bf16.mxu0 0
  %1353 = vmatpush1.bf16.msra.mxu0 0
  %1354 = vmatprep.subr.bf16.mxu0 0
  %1355 = vmatpush1.bf16.msra.mxu0 0
  %1356 = vmatprep.subr.bf16.mxu0 0
  %1357 = vmatpush1.bf16.msra.mxu0 0
  %1358 = vmatprep.subr.bf16.mxu0 0
  %1359 = vmatpush1.bf16.msra.mxu0 0
  %1360 = vmatprep.subr.bf16.mxu0 0
  %1361 = vmatpush1.bf16.msra.mxu0 0
  %1362 = vmatprep.subr.bf16.mxu0 0
  %1363 = vmatpush1.bf16.msra.mxu0 0
  %1364 = vmatprep.subr.bf16.mxu0 0
  %1365 = vmatpush1.bf16.msra.mxu0 0
  %1366 = vmatprep.subr.bf16.mxu0 0
  %1367 = vmatpush1.bf16.msra.mxu0 0
  %1368 = vmatprep.mubr.bf16.mxu0 0
  %1369 = vmatmul.mubr.bf16.gmra.mrb[0].mxu0 %v1334
  %v1370 = vpop.f32.mrb[0].mxu0
  %v1371 = vadd.f32 %v1319, %v1370
  %v1372 = vpop.f32.mrb[0].mxu0
  %v1373 = vpop.f32.mrb[0].mxu0
  %v1374 = vpop.f32.mrb[0].mxu0
  %1375 = vdwg.mxu0
  %v1376 = vld [vmem:[%s10] sm:$0x1]
  %v1377 = vld [vmem:[%s11] sm:$0x1]
  %v1378 = vsel %vm105, %v1371, 0.0
  %1379 = vadd.xlane.f32.xlu0 %v1378
  %v1380 = vpop.xlane.xlu0 %1379
  %v1381 = vmul.f32 %v1380, %v1223
  %v1382 = vsub.f32 %v1371, %v1381
  %v1383 = vmul.f32 %v1382, %v1382
  %v1384 = vsel %vm105, %v1383, 0.0
  %1385 = vadd.xlane.f32.xlu0 %v1384
  %v1386 = vpop.xlane.xlu0 %1385
  %v1387 = vmul.f32 %v1386, %v1223
  %v1388 = vadd.f32 %v1387, 1e-05
  %v1389 = vrsqrt.pop %v1388
  %v1390 = vmul.f32 %v1382, %v1389
  %v1392 = vlaneseq
  %v1393 = vshrl.u32 %v1392, 7
  %v1394 = vsub.s32 0, %v1393
  %v1395 = vrot.slane %v1376, %v1394
  %v1397 = vmul.f32 %v1390, %v1395
  %v1399 = vlaneseq
  %v1400 = vshrl.u32 %v1399, 7
  %v1401 = vsub.s32 0, %v1400
  %v1402 = vrot.slane %v1377, %v1401
  %v1404 = vadd.f32 %v1397, %v1402
  %v1405 = vmul.f32 %v1404, 0.5
  %v1406 = vmul.f32 %v1404, 0.70710677
  %v1407 = verf.f32.pop %v1406
  %v1408 = vadd.f32 %v1407, 1.0
  %v1409 = vmul.f32 %v1405, %v1408
  %v1410 = vadd.f32 %v1409, %v1276
  %v1411 = vpack.c.bf16 %v1308, %v1308
  %v1412 = vld [vmem:[%s12] sm:$0xf]
  %v1413 = vld [vmem:[%s12 + $0x4] sm:$0xf]
  %v1414 = vld [vmem:[%s12 + $0x8] sm:$0xf]
  %v1415 = vld [vmem:[%s12 + $0xc] sm:$0xf]
  %v1416 = vld [vmem:[%s13] sm:$0x1]
  %v1418 = vlaneseq
  %v1419 = vshrl.u32 %v1418, 7
  %v1420 = vsub.s32 0, %v1419
  %v1421 = vrot.slane %v1416, %v1420
  %1424 = vrot.lane.b32.xlu0 %v1411, 96
  %v1425 = vpop.permute.xlu0 %1424
  %v1430 = vunpack.c.l.b16 %v1412
  %v1431 = vunpack.c.l.b16 %v1413
  %v1432 = vunpack.c.l.b16 %v1414
  %v1433 = vunpack.c.l.b16 %v1415
  %v1434 = vpack.c.b16 %v1431, %v1430
  %v1435 = vpack.c.b16 %v1433, %v1432
  %v1439 = vsel %vm105, %v1425, 0
  %1441 = vmatprep.subr.bf16.mxu0 0
  %1442 = vmatpush1.bf16.msra.mxu0 %v1434
  %1443 = vmatprep.subr.bf16.mxu0 0
  %1444 = vmatpush1.bf16.msra.mxu0 %v1435
  %1445 = vmatprep.subr.bf16.mxu0 0
  %1446 = vmatpush1.bf16.msra.mxu0 0
  %1447 = vmatprep.subr.bf16.mxu0 0
  %1448 = vmatpush1.bf16.msra.mxu0 0
  %1449 = vmatprep.subr.bf16.mxu0 0
  %1450 = vmatpush1.bf16.msra.mxu0 0
  %1451 = vmatprep.subr.bf16.mxu0 0
  %1452 = vmatpush1.bf16.msra.mxu0 0
  %1453 = vmatprep.subr.bf16.mxu0 0
  %1454 = vmatpush1.bf16.msra.mxu0 0
  %1455 = vmatprep.subr.bf16.mxu0 0
  %1456 = vmatpush1.bf16.msra.mxu0 0
  %1457 = vmatprep.subr.bf16.mxu0 0
  %1458 = vmatpush1.bf16.msra.mxu0 0
  %1459 = vmatprep.subr.bf16.mxu0 0
  %1460 = vmatpush1.bf16.msra.mxu0 0
  %1461 = vmatprep.subr.bf16.mxu0 0
  %1462 = vmatpush1.bf16.msra.mxu0 0
  %1463 = vmatprep.subr.bf16.mxu0 0
  %1464 = vmatpush1.bf16.msra.mxu0 0
  %1465 = vmatprep.subr.bf16.mxu0 0
  %1466 = vmatpush1.bf16.msra.mxu0 0
  %1467 = vmatprep.subr.bf16.mxu0 0
  %1468 = vmatpush1.bf16.msra.mxu0 0
  %1469 = vmatprep.subr.bf16.mxu0 0
  %1470 = vmatpush1.bf16.msra.mxu0 0
  %1471 = vmatprep.subr.bf16.mxu0 0
  %1472 = vmatpush1.bf16.msra.mxu0 0
  %1473 = vmatprep.mubr.bf16.mxu0 0
  %1474 = vmatmul.mubr.bf16.gmra.mrb[0].mxu0 %v1439
  %v1475 = vpop.f32.mrb[0].mxu0
  %v1476 = vadd.f32 %v1421, %v1475
  %v1477 = vpop.f32.mrb[0].mxu0
  %v1478 = vpop.f32.mrb[0].mxu0
  %v1479 = vpop.f32.mrb[0].mxu0
  %1480 = vdwg.mxu0
  %v1481 = vld [vmem:[%s14] sm:$0x1]
  %v1482 = vld [vmem:[%s15] sm:$0x1]
  %v1483 = vsel %vm105, %v1476, 0.0
  %1484 = vadd.xlane.f32.xlu0 %v1483
  %v1485 = vpop.xlane.xlu0 %1484
  %v1486 = vmul.f32 %v1485, %v1223
  %v1487 = vsub.f32 %v1476, %v1486
  %v1488 = vmul.f32 %v1487, %v1487
  %v1489 = vsel %vm105, %v1488, 0.0
  %1490 = vadd.xlane.f32.xlu0 %v1489
  %v1491 = vpop.xlane.xlu0 %1490
  %v1492 = vmul.f32 %v1491, %v1223
  %v1493 = vadd.f32 %v1492, 1e-05
  %v1494 = vrsqrt.pop %v1493
  %v1495 = vmul.f32 %v1487, %v1494
  %v1497 = vlaneseq
  %v1498 = vshrl.u32 %v1497, 7
  %v1499 = vsub.s32 0, %v1498
  %v1500 = vrot.slane %v1481, %v1499
  %v1502 = vmul.f32 %v1495, %v1500
  %v1504 = vlaneseq
  %v1505 = vshrl.u32 %v1504, 7
  %v1506 = vsub.s32 0, %v1505
  %v1507 = vrot.slane %v1482, %v1506
  %v1509 = vadd.f32 %v1502, %v1507
  %v1510 = vmul.f32 %v1509, 0.5
  %v1511 = vmul.f32 %v1509, 0.70710677
  %v1512 = verf.f32.pop %v1511
  %v1513 = vadd.f32 %v1512, 1.0
  %v1514 = vmul.f32 %v1510, %v1513
  %1516 = vrot.lane.b32.xlu0 %v1308, 96
  %v1517 = vpop.permute.xlu0 %1516
  %v1519 = vadd.f32 %v1514, %v1517
  %1521 = vrot.lane.b32.xlu0 %v1519, 32
  %v1522 = vpop.permute.xlu0 %1521
  %v1524 = vsel %vm105, %v1410, %v1522
  %v1525 = vpack.c.bf16 %v1524, %v1524
  %v1526 = vld [vmem:[%s16] sm:$0xf]
  %v1527 = vld [vmem:[%s16 + $0x4] sm:$0xf]
  %v1528 = vld [vmem:[%s16 + $0x8] sm:$0xf]
  %v1529 = vld [vmem:[%s16 + $0xc] sm:$0xf]
  %v1530 = vld [vmem:[%s16 + $0x10] sm:$0xf]
  %v1531 = vld [vmem:[%s16 + $0x14] sm:$0xf]
  %v1532 = vld [vmem:[%s16 + $0x18] sm:$0xf]
  %v1533 = vld [vmem:[%s16 + $0x1c] sm:$0xf]
  %v1534 = vld [vmem:[%s17] sm:$0x1]
  %v1536 = vlaneseq
  %v1537 = vshrl.u32 %v1536, 7
  %v1538 = vsub.s32 0, %v1537
  %v1539 = vrot.slane %v1534, %v1538
  %v1549 = vunpack.c.l.b16 %v1526
  %v1550 = vunpack.c.l.b16 %v1527
  %v1551 = vunpack.c.l.b16 %v1528
  %v1552 = vunpack.c.l.b16 %v1529
  %v1553 = vunpack.c.l.b16 %v1530
  %v1554 = vunpack.c.l.b16 %v1531
  %v1555 = vunpack.c.l.b16 %v1532
  %v1556 = vunpack.c.l.b16 %v1533
  %v1557 = vpack.c.b16 %v1550, %v1549
  %v1558 = vpack.c.b16 %v1552, %v1551
  %v1559 = vpack.c.b16 %v1554, %v1553
  %v1560 = vpack.c.b16 %v1556, %v1555
  %vm1565 = vcmask 523264
  %v1567 = vsel %vm1565, %v1525, 0
  %1569 = vmatprep.subr.bf16.mxu0 0
  %1570 = vmatpush1.bf16.msra.mxu0 %v1557
  %1571 = vmatprep.subr.bf16.mxu0 0
  %1572 = vmatpush1.bf16.msra.mxu0 %v1558
  %1573 = vmatprep.subr.bf16.mxu0 0
  %1574 = vmatpush1.bf16.msra.mxu0 %v1559
  %1575 = vmatprep.subr.bf16.mxu0 0
  %1576 = vmatpush1.bf16.msra.mxu0 %v1560
  %1577 = vmatprep.subr.bf16.mxu0 0
  %1578 = vmatpush1.bf16.msra.mxu0 0
  %1579 = vmatprep.subr.bf16.mxu0 0
  %1580 = vmatpush1.bf16.msra.mxu0 0
  %1581 = vmatprep.subr.bf16.mxu0 0
  %1582 = vmatpush1.bf16.msra.mxu0 0
  %1583 = vmatprep.subr.bf16.mxu0 0
  %1584 = vmatpush1.bf16.msra.mxu0 0
  %1585 = vmatprep.subr.bf16.mxu0 0
  %1586 = vmatpush1.bf16.msra.mxu0 0
  %1587 = vmatprep.subr.bf16.mxu0 0
  %1588 = vmatpush1.bf16.msra.mxu0 0
  %1589 = vmatprep.subr.bf16.mxu0 0
  %1590 = vmatpush1.bf16.msra.mxu0 0
  %1591 = vmatprep.subr.bf16.mxu0 0
  %1592 = vmatpush1.bf16.msra.mxu0 0
  %1593 = vmatprep.subr.bf16.mxu0 0
  %1594 = vmatpush1.bf16.msra.mxu0 0
  %1595 = vmatprep.subr.bf16.mxu0 0
  %1596 = vmatpush1.bf16.msra.mxu0 0
  %1597 = vmatprep.subr.bf16.mxu0 0
  %1598 = vmatpush1.bf16.msra.mxu0 0
  %1599 = vmatprep.subr.bf16.mxu0 0
  %1600 = vmatpush1.bf16.msra.mxu0 0
  %1601 = vmatprep.mubr.bf16.mxu0 0
  %1602 = vmatmul.mubr.bf16.gmra.mrb[0].mxu0 %v1567
  %v1603 = vpop.f32.mrb[0].mxu0
  %v1604 = vadd.f32 %v1539, %v1603
  %v1605 = vpop.f32.mrb[0].mxu0
  %v1606 = vpop.f32.mrb[0].mxu0
  %v1607 = vpop.f32.mrb[0].mxu0
  %1608 = vdwg.mxu0
  %1609 = vst [vmem:[%s18] sm:$0xff] %v1604
  // Predicated region
  $region74: #{_esg_forward_impl.1} parent=0 // pred_check
    _
  $region75: #{_esg_forward_impl.1} parent=0 // pred_check_branch
    %1611 = sbr.rel (0) target = $region77
  $region76: #{_esg_forward_impl.1} parent=0 // pred_region
    _
  $region77: #{_esg_forward_impl.1} parent=0 // pred_fallthru
    _
  // Predicated region
  $region78: #{_esg_forward_impl.1} parent=0 // pred_check
    _
  $region79: #{_esg_forward_impl.1} parent=0 // pred_check_branch
    %1613 = sbr.rel (0) target = $region81
  $region80: #{_esg_forward_impl.1} parent=0 // pred_region
    _
  $region81: #{_esg_forward_impl.1} parent=0 // pred_fallthru
    _

</llo_original>
